<compile_context>
chip_gen: v7x
topology: tpu7x:2x2x1
jax: 0.10.0
libtpu: 0.0.40
codegen_flags: <defaults>
</compile_context>

<pallas_src>
import functools

import jax
import jax.numpy as jnp
from jax.experimental import pallas as pl
from jax.experimental.pallas import tpu as pltpu


def _vmem_limit_bytes():
    # ~75% of per-core VMEM: 96 MiB on v5e/v6e (128 MiB), 48 MiB on v7x (64 MiB).
    try:
        cap = pltpu.get_tpu_info().vmem_capacity_bytes
    except Exception:
        cap = 64 * 1024 * 1024
    return int(cap) * 3 // 4


# -----------------------------------------------------------------------------
# Kernel: grid = (B, T, kT); temporal tap axis last ("arbitrary" reduction).
# Each step DMAs one UN-padded input frame, zero-pads it spatially into a small
# VMEM scratch, and accumulates kW MXU dots (K = kH*Cin) into an f32 scratch.
# -----------------------------------------------------------------------------
def _causal_conv3d_kernel(x_ref, w_ref, b_ref, o_ref, pad_ref, acc_ref, *,
                          kH, kW, H, W, hp, wp, compute_dtype):
    # x_ref  : (1, 1, H, W, Cin)      HBM dtype  -- un-padded frame at clamped time t+kt
    # w_ref  : (kT*kW, kH*Cin, Cout)  bf16       -- ALL taps, constant block (VMEM-resident)
    # b_ref  : (1, Cout)              f32
    # o_ref  : (1, 1, H*W, Cout)      out dtype
    # pad_ref: (Hp, Wp, Cin)          bf16 scratch -- spatially zero-padded frame
    # acc_ref: (H*W, Cout)            f32 scratch accumulator
    kt = pl.program_id(2)
    n_kt = pl.num_programs(2)
    cin = x_ref.shape[-1]
    Hp = H + 2 * hp

    @pl.when(kt == 0)
    def _init():
        # Border of pad_ref provides the spatial zero padding; it is re-zeroed at
        # the start of every (b, t) group and never overwritten below.
        pad_ref[...] = jnp.zeros_like(pad_ref)
        acc_ref[...] = jnp.zeros_like(acc_ref)

    # Place the frame in the interior of the zero-padded scratch, casting the HBM
    # dtype to the MXU compute dtype on the fly (no wrapper-side cast/pad passes).
    pad_ref[hp:hp + H, wp:wp + W, :] = x_ref[0, 0].astype(compute_dtype)
    padded = pad_ref[...]                                   # (Hp, Wp, Cin)

    # One W-offset relayout per kw; the kH row taps are aligned contiguous row
    # slices folded into the contraction dim -> one MXU dot per kw (K = kH*Cin),
    # accumulated straight into the f32 scratch (bounded live ranges).
    for kw in range(kW):
        slab = padded[:, kw:kw + W, :].reshape(Hp * W, cin)          # (Hp*W, Cin)
        lhs = jnp.concatenate(
            [slab[kh * W:kh * W + H * W, :] for kh in range(kH)], axis=-1)
        acc_ref[...] += jnp.dot(lhs, w_ref[kt * kW + kw],
                                preferred_element_type=jnp.float32)

    @pl.when(kt == n_kt - 1)
    def _finalize():
        o_ref[0, 0] = (acc_ref[...] + b_ref[...].astype(jnp.float32)
                       ).astype(o_ref.dtype)


# -----------------------------------------------------------------------------
# CogVideoXCausalConv3d.forward
# -----------------------------------------------------------------------------
def cogvideox_causal_conv3d(x_ncthw, weight_oidhw, bias, conv_cache=None,
                            stride=1, dilation=1, compute_dtype=jnp.bfloat16,
                            out_dtype=None):
    """x: (B, Cin, T, H, W); weight: PyTorch Conv3d layout (Cout, Cin, kT, kH, kW).

    Returns (output (B, Cout, T, H, W), conv_cache (B, Cin, kT-1, H, W) or None).
    """
    assert stride == 1 and dilation == 1, "only stride=1, dilation=1 supported"
    # TODO(synk): general temporal stride/dilation (time_pad = d*(kT-1)+(1-s)) not lowered.
    Cout, Cin, kT, kH, kW = weight_oidhw.shape
    assert kH % 2 == 1 and kW % 2 == 1, "odd spatial kernels only (CogVideoX uses 3x3x3)"
    B, Cin_x, T, H, W = x_ncthw.shape
    assert Cin_x == Cin
    if out_dtype is None:
        out_dtype = x_ncthw.dtype

    hp, wp = kH // 2, kW // 2
    Hp, Wp = H + 2 * hp, W + 2 * wp

    # ---- NCTHW -> NTHWC (the only wrapper-side data movement) ------------------
    x = jnp.transpose(x_ncthw, (0, 2, 3, 4, 1))              # (B, T, H, W, Cin)

    # ---- temporal causal padding (fake_context_parallel_forward) ---------------
    if kT > 1 and conv_cache is not None:
        cache_in = jnp.transpose(conv_cache, (0, 2, 3, 4, 1)).astype(x.dtype)
        x_in = jnp.concatenate([cache_in, x], axis=1)        # (B, T + kT - 1, H, W, Cin)

        def x_index_map(b, t, k):
            return (b, t + k, 0, 0, 0)
    else:
        # "replicate first frame" padding folded into the index map (no concat pass)
        x_in = x

        def x_index_map(b, t, k):
            return (b, jnp.maximum(t + k - (kT - 1), 0), 0, 0, 0)

    # conv_cache output = last (kT-1) frames of the time-padded sequence
    if kT > 1:
        if conv_cache is not None:
            cache_out = x_in[:, x_in.shape[1] - (kT - 1):]
        elif T >= kT - 1:
            cache_out = x[:, T - (kT - 1):]
        else:
            reps = (kT - 1) - T
            cache_out = jnp.concatenate([jnp.repeat(x[:, :1], reps, axis=1), x], axis=1)
        cache_ncthw = jnp.transpose(cache_out, (0, 4, 1, 2, 3))
    else:
        cache_ncthw = None

    # ---- weights: (Cout,Cin,kT,kH,kW) -> (kT*kW, kH*Cin, Cout), bf16 ------------
    w_folded = (jnp.transpose(weight_oidhw, (2, 4, 3, 1, 0))   # (kT, kW, kH, Cin, Cout)
                .astype(compute_dtype)
                .reshape(kT * kW, kH * Cin, Cout))
    b2 = bias.reshape(1, Cout).astype(jnp.float32)

    kernel = functools.partial(_causal_conv3d_kernel, kH=kH, kW=kW, H=H, W=W,
                               hp=hp, wp=wp, compute_dtype=compute_dtype)

    in_bytes = jnp.dtype(x.dtype).itemsize
    out_bytes = jnp.dtype(out_dtype).itemsize
    cost = pl.CostEstimate(
        flops=2 * B * T * kT * kH * kW * H * W * Cin * Cout,
        transcendentals=0,
        bytes_accessed=(B * T * kT * H * W * Cin * in_bytes          # input (re-read kT x)
                        + kT * kH * kW * Cin * Cout * 2              # weights (once)
                        + B * T * H * W * Cout * out_bytes),         # output
    )

    # TODO(synk): add an H-tile grid axis (with a 2-row halo) for very large
    # spatial shapes on v7x where acc + frame + output double-buffers exceed 64 MiB.
    out_flat = pl.pallas_call(
        kernel,
        out_shape=jax.ShapeDtypeStruct((B, T, H * W, Cout), out_dtype),
        grid=(B, T, kT),                                      # tap axis last
        in_specs=[
            # one un-padded input frame at the clamped padded-time index t + k
            pl.BlockSpec((1, 1, H, W, Cin), x_index_map),
            # the WHOLE weight slab, constant block index -> fetched once, VMEM-resident
            pl.BlockSpec((kT * kW, kH * Cin, Cout), lambda b, t, k: (0, 0, 0)),
            pl.BlockSpec((1, Cout), lambda b, t, k: (0, 0)),
        ],
        # same output block across the tap axis -> stays VMEM-resident (accumulator)
        out_specs=pl.BlockSpec((1, 1, H * W, Cout), lambda b, t, k: (b, t, 0, 0)),
        scratch_shapes=[
            pltpu.VMEM((Hp, Wp, Cin), compute_dtype),   # zero-padded frame
            pltpu.VMEM((H * W, Cout), jnp.float32),     # f32 accumulator
        ],
        compiler_params=pltpu.CompilerParams(
            dimension_semantics=("parallel", "parallel", "arbitrary"),
            vmem_limit_bytes=_vmem_limit_bytes(),
        ),
        cost_estimate=cost,
    )(x_in, w_folded, b2)

    out = out_flat.reshape(B, T, H, W, Cout)
    out_ncthw = jnp.transpose(out, (0, 4, 1, 2, 3))           # back to NCTHW
    # TODO(synk): the distributed VAEParallelState halo-exchange / chunked-memory
    # paths of CogVideoXSafeConv3d (multi-device W-dim patching) are not modeled.
    return out_ncthw, cache_ncthw


# -----------------------------------------------------------------------------
# Pure-JAX reference (same bf16-operand / f32-accumulate math) for verification
# -----------------------------------------------------------------------------
def _ref_causal_conv3d(x_ncthw, weight_oidhw, bias, conv_cache=None,
                       compute_dtype=jnp.bfloat16):
    Cout, Cin, kT, kH, kW = weight_oidhw.shape
    x = jnp.transpose(x_ncthw, (0, 2, 3, 4, 1))
    if kT > 1:
        pads = ([x[:, :1]] * (kT - 1) if conv_cache is None
                else [jnp.transpose(conv_cache, (0, 2, 3, 4, 1))])
        xt = jnp.concatenate(pads + [x], axis=1)
    else:
        xt = x
    cache = xt[:, xt.shape[1] - (kT - 1):]
    xp = jnp.pad(xt, ((0, 0), (0, 0), (kH // 2, kH // 2), (kW // 2, kW // 2), (0, 0)))
    w = jnp.transpose(weight_oidhw, (2, 3, 4, 1, 0)).astype(compute_dtype)
    out = jax.lax.conv_general_dilated(
        xp.astype(compute_dtype), w, window_strides=(1, 1, 1), padding="VALID",
        dimension_numbers=("NDHWC", "DHWIO", "NDHWC"),
        preferred_element_type=jnp.float32)
    out = out + bias.reshape(1, 1, 1, 1, Cout)
    return (jnp.transpose(out, (0, 4, 1, 2, 3)).astype(x_ncthw.dtype),
            jnp.transpose(cache, (0, 4, 1, 2, 3)))


if __name__ == "__main__":
    B, Cin, Cout, T, H, W = 2, 16, 32, 5, 16, 16
    f32 = jnp.float32
    k0, k1, k2 = jax.random.split(jax.random.PRNGKey(0), 3)

    # PyTorch Conv3d parameter layout: (Cout, Cin, kT, kH, kW)
    weight = 0.05 * jax.random.normal(k0, (Cout, Cin, 3, 3, 3), f32)
    bias = 0.02 * jax.random.normal(k1, (Cout,), f32)
    x = jax.random.normal(k2, (B, Cin, T, H, W), f32)          # NCTHW input

    fwd = jax.jit(cogvideox_causal_conv3d)

    # --- no cache (first chunk): "replicate first frame" causal padding ---------
    out, conv_cache = fwd(x, weight, bias)
    jax.block_until_ready(out)
    ref_out, ref_cache = _ref_causal_conv3d(x, weight, bias)
    assert out.shape == (B, Cout, T, H, W)
    assert conv_cache.shape == (B, Cin, 2, H, W)
    err = float(jnp.max(jnp.abs(out - ref_out)))
    cache_err = float(jnp.max(jnp.abs(conv_cache - ref_cache)))
    assert err < 2e-3, f"max abs error {err}"
    assert cache_err == 0.0, f"conv_cache mismatch {cache_err}"

    # --- with conv_cache (streaming chunk) ---------------------------------------
    out2, cache2 = fwd(x, weight, bias, conv_cache)
    jax.block_until_ready(out2)
    ref_out2, ref_cache2 = _ref_causal_conv3d(x, weight, bias, conv_cache)
    err2 = float(jnp.max(jnp.abs(out2 - ref_out2)))
    cache_err2 = float(jnp.max(jnp.abs(cache2 - ref_cache2)))
    assert err2 < 2e-3, f"max abs error (cache path) {err2}"
    assert cache_err2 == 0.0, f"conv_cache mismatch (cache path) {cache_err2}"

    print("KERNEL_OK")
</pallas_src>

<mosaic_0001>
module attributes {stable_mosaic.version = 11 : i64} {
  func.func @_causal_conv3d_kernel(%arg0: i32, %arg1: i32, %arg2: i32, %arg3: memref<1x1x16x16x16xf32, #tpu.memory_space<vmem>>, %arg4: memref<9x48x32xbf16, #tpu.memory_space<vmem>>, %arg5: memref<1x32xf32, #tpu.memory_space<vmem>>, %arg6: memref<1x1x256x32xf32, #tpu.memory_space<vmem>>, %arg7: memref<18x18x16xbf16, #tpu.memory_space<vmem>>, %arg8: memref<256x32xf32, #tpu.memory_space<vmem>>) attributes {dimension_semantics = [#tpu.dimension_semantics<parallel>, #tpu.dimension_semantics<parallel>, #tpu.dimension_semantics<arbitrary>], iteration_bounds = array<i64: 2, 5, 3>, scalar_prefetch = 0 : i64, scratch_operands = 2 : i64, tpu.core_type = #tpu.core_type<tc>, window_params = [{transform_indices = @transform_0, window_bounds = array<i64: 1, 1, 16, 16, 16>}, {pipeline_mode = #tpu.pipeline_mode<synchronous>, transform_indices = @transform_1, window_bounds = array<i64: 9, 48, 32>}, {pipeline_mode = #tpu.pipeline_mode<synchronous>, transform_indices = @transform_2, window_bounds = array<i64: 1, 32>}, {transform_indices = @transform_3, window_bounds = array<i64: 1, 1, 256, 32>}]} {
    %c0_i32 = arith.constant 0 : i32
    %0 = arith.cmpi eq, %arg2, %c0_i32 : i32
    %1 = arith.extui %0 : i1 to i32
    %c0_i32_0 = arith.constant 0 : i32
    %2 = arith.cmpi ne, %1, %c0_i32_0 : i32
    scf.if %2 {
      %cst_35 = arith.constant 0.000000e+00 : bf16
      %56 = vector.broadcast %cst_35 : bf16 to vector<18x18x16xbf16>
      %c0_36 = arith.constant 0 : index
      %c0_37 = arith.constant 0 : index
      %c0_38 = arith.constant 0 : index
      %57 = vector.load %arg7[%c0_36, %c0_37, %c0_38] : memref<18x18x16xbf16, #tpu.memory_space<vmem>>, vector<18x18x16xbf16>
      tpu.vector_store %arg7[%c0_36, %c0_37, %c0_38], %56 {strides = array<i32>} : memref<18x18x16xbf16, #tpu.memory_space<vmem>>, vector<18x18x16xbf16>,
      %cst_39 = arith.constant 0.000000e+00 : f32
      %58 = vector.broadcast %cst_39 : f32 to vector<256x32xf32>
      %c0_40 = arith.constant 0 : index
      %c0_41 = arith.constant 0 : index
      %59 = vector.load %arg8[%c0_40, %c0_41] : memref<256x32xf32, #tpu.memory_space<vmem>>, vector<256x32xf32>
      tpu.vector_store %arg8[%c0_40, %c0_41], %58 {strides = array<i32>} : memref<256x32xf32, #tpu.memory_space<vmem>>, vector<256x32xf32>,
    } else {
    }
    %c0 = arith.constant 0 : index
    %c0_1 = arith.constant 0 : index
    %c0_2 = arith.constant 0 : index
    %c0_3 = arith.constant 0 : index
    %c0_4 = arith.constant 0 : index
    %3 = vector.load %arg3[%c0, %c0_1, %c0_2, %c0_3, %c0_4] : memref<1x1x16x16x16xf32, #tpu.memory_space<vmem>>, vector<1x1x16x16x16xf32>
    %4 = vector.shape_cast %3 : vector<1x1x16x16x16xf32> to vector<16x16x16xf32>
    %5 = arith.truncf %4 : vector<16x16x16xf32> to vector<16x16x16xbf16>
    %c1 = arith.constant 1 : index
    %c1_5 = arith.constant 1 : index
    %c0_6 = arith.constant 0 : index
    %6 = vector.load %arg7[%c1, %c1_5, %c0_6] : memref<18x18x16xbf16, #tpu.memory_space<vmem>>, vector<16x16x16xbf16>
    tpu.vector_store %arg7[%c1, %c1_5, %c0_6], %5 {strides = array<i32>} : memref<18x18x16xbf16, #tpu.memory_space<vmem>>, vector<16x16x16xbf16>,
    %c0_7 = arith.constant 0 : index
    %c0_8 = arith.constant 0 : index
    %c0_9 = arith.constant 0 : index
    %7 = vector.load %arg7[%c0_7, %c0_8, %c0_9] : memref<18x18x16xbf16, #tpu.memory_space<vmem>>, vector<18x18x16xbf16>
    %8 = vector.extract_strided_slice %7 {offsets = [0, 0, 0], sizes = [18, 16, 16], strides = [1, 1, 1]} : vector<18x18x16xbf16> to vector<18x16x16xbf16>
    %9 = vector.shape_cast %8 : vector<18x16x16xbf16> to vector<288x16xbf16>
    %10 = vector.extract_strided_slice %9 {offsets = [0, 0], sizes = [256, 16], strides = [1, 1]} : vector<288x16xbf16> to vector<256x16xbf16>
    %11 = vector.extract_strided_slice %9 {offsets = [16, 0], sizes = [256, 16], strides = [1, 1]} : vector<288x16xbf16> to vector<256x16xbf16>
    %12 = vector.extract_strided_slice %9 {offsets = [32, 0], sizes = [256, 16], strides = [1, 1]} : vector<288x16xbf16> to vector<256x16xbf16>
    %13 = tpu.concatenate %10, %11, %12 in 1 : vector<256x16xbf16>, vector<256x16xbf16>, vector<256x16xbf16> -> vector<256x48xbf16>
    %c0_10 = arith.constant 0 : index
    %c0_11 = arith.constant 0 : index
    %14 = vector.load %arg8[%c0_10, %c0_11] : memref<256x32xf32, #tpu.memory_space<vmem>>, vector<256x32xf32>
    %c3_i32 = arith.constant 3 : i32
    %15 = arith.muli %arg2, %c3_i32 : i32
    %c0_i32_12 = arith.constant 0 : i32
    %16 = arith.addi %15, %c0_i32_12 : i32
    %17 = arith.index_cast %16 : i32 to index
    %c0_13 = arith.constant 0 : index
    %c0_14 = arith.constant 0 : index
    %18 = vector.load %arg4[%17, %c0_13, %c0_14] : memref<9x48x32xbf16, #tpu.memory_space<vmem>>, vector<1x48x32xbf16>
    %19 = vector.shape_cast %18 : vector<1x48x32xbf16> to vector<48x32xbf16>
    %cst = arith.constant dense<0.000000e+00> : vector<256x32xf32>
    %20 = tpu.matmul %13, %19, %cst {dimension_numbers = #tpu.dot_dimension_numbers<[1], [0], [0], [1], [0, 0, 1, 1], [], []>} : vector<256x48xbf16>, vector<48x32xbf16>, vector<256x32xf32> -> vector<256x32xf32>
    %21 = arith.addf %14, %20 : vector<256x32xf32>
    %c0_15 = arith.constant 0 : index
    %c0_16 = arith.constant 0 : index
    %22 = vector.load %arg8[%c0_15, %c0_16] : memref<256x32xf32, #tpu.memory_space<vmem>>, vector<256x32xf32>
    tpu.vector_store %arg8[%c0_15, %c0_16], %21 {strides = array<i32>} : memref<256x32xf32, #tpu.memory_space<vmem>>, vector<256x32xf32>,
    %23 = vector.extract_strided_slice %7 {offsets = [0, 1, 0], sizes = [18, 16, 16], strides = [1, 1, 1]} : vector<18x18x16xbf16> to vector<18x16x16xbf16>
    %24 = vector.shape_cast %23 : vector<18x16x16xbf16> to vector<288x16xbf16>
    %25 = vector.extract_strided_slice %24 {offsets = [0, 0], sizes = [256, 16], strides = [1, 1]} : vector<288x16xbf16> to vector<256x16xbf16>
    %26 = vector.extract_strided_slice %24 {offsets = [16, 0], sizes = [256, 16], strides = [1, 1]} : vector<288x16xbf16> to vector<256x16xbf16>
    %27 = vector.extract_strided_slice %24 {offsets = [32, 0], sizes = [256, 16], strides = [1, 1]} : vector<288x16xbf16> to vector<256x16xbf16>
    %28 = tpu.concatenate %25, %26, %27 in 1 : vector<256x16xbf16>, vector<256x16xbf16>, vector<256x16xbf16> -> vector<256x48xbf16>
    %c0_17 = arith.constant 0 : index
    %c0_18 = arith.constant 0 : index
    %29 = vector.load %arg8[%c0_17, %c0_18] : memref<256x32xf32, #tpu.memory_space<vmem>>, vector<256x32xf32>
    %c3_i32_19 = arith.constant 3 : i32
    %30 = arith.muli %arg2, %c3_i32_19 : i32
    %c1_i32 = arith.constant 1 : i32
    %31 = arith.addi %30, %c1_i32 : i32
    %32 = arith.index_cast %31 : i32 to index
    %c0_20 = arith.constant 0 : index
    %c0_21 = arith.constant 0 : index
    %33 = vector.load %arg4[%32, %c0_20, %c0_21] : memref<9x48x32xbf16, #tpu.memory_space<vmem>>, vector<1x48x32xbf16>
    %34 = vector.shape_cast %33 : vector<1x48x32xbf16> to vector<48x32xbf16>
    %cst_22 = arith.constant dense<0.000000e+00> : vector<256x32xf32>
    %35 = tpu.matmul %28, %34, %cst_22 {dimension_numbers = #tpu.dot_dimension_numbers<[1], [0], [0], [1], [0, 0, 1, 1], [], []>} : vector<256x48xbf16>, vector<48x32xbf16>, vector<256x32xf32> -> vector<256x32xf32>
    %36 = arith.addf %29, %35 : vector<256x32xf32>
    %c0_23 = arith.constant 0 : index
    %c0_24 = arith.constant 0 : index
    %37 = vector.load %arg8[%c0_23, %c0_24] : memref<256x32xf32, #tpu.memory_space<vmem>>, vector<256x32xf32>
    tpu.vector_store %arg8[%c0_23, %c0_24], %36 {strides = array<i32>} : memref<256x32xf32, #tpu.memory_space<vmem>>, vector<256x32xf32>,
    %38 = vector.extract_strided_slice %7 {offsets = [0, 2, 0], sizes = [18, 16, 16], strides = [1, 1, 1]} : vector<18x18x16xbf16> to vector<18x16x16xbf16>
    %39 = vector.shape_cast %38 : vector<18x16x16xbf16> to vector<288x16xbf16>
    %40 = vector.extract_strided_slice %39 {offsets = [0, 0], sizes = [256, 16], strides = [1, 1]} : vector<288x16xbf16> to vector<256x16xbf16>
    %41 = vector.extract_strided_slice %39 {offsets = [16, 0], sizes = [256, 16], strides = [1, 1]} : vector<288x16xbf16> to vector<256x16xbf16>
    %42 = vector.extract_strided_slice %39 {offsets = [32, 0], sizes = [256, 16], strides = [1, 1]} : vector<288x16xbf16> to vector<256x16xbf16>
    %43 = tpu.concatenate %40, %41, %42 in 1 : vector<256x16xbf16>, vector<256x16xbf16>, vector<256x16xbf16> -> vector<256x48xbf16>
    %c0_25 = arith.constant 0 : index
    %c0_26 = arith.constant 0 : index
    %44 = vector.load %arg8[%c0_25, %c0_26] : memref<256x32xf32, #tpu.memory_space<vmem>>, vector<256x32xf32>
    %c3_i32_27 = arith.constant 3 : i32
    %45 = arith.muli %arg2, %c3_i32_27 : i32
    %c2_i32 = arith.constant 2 : i32
    %46 = arith.addi %45, %c2_i32 : i32
    %47 = arith.index_cast %46 : i32 to index
    %c0_28 = arith.constant 0 : index
    %c0_29 = arith.constant 0 : index
    %48 = vector.load %arg4[%47, %c0_28, %c0_29] : memref<9x48x32xbf16, #tpu.memory_space<vmem>>, vector<1x48x32xbf16>
    %49 = vector.shape_cast %48 : vector<1x48x32xbf16> to vector<48x32xbf16>
    %cst_30 = arith.constant dense<0.000000e+00> : vector<256x32xf32>
    %50 = tpu.matmul %43, %49, %cst_30 {dimension_numbers = #tpu.dot_dimension_numbers<[1], [0], [0], [1], [0, 0, 1, 1], [], []>} : vector<256x48xbf16>, vector<48x32xbf16>, vector<256x32xf32> -> vector<256x32xf32>
    %51 = arith.addf %44, %50 : vector<256x32xf32>
    %c0_31 = arith.constant 0 : index
    %c0_32 = arith.constant 0 : index
    %52 = vector.load %arg8[%c0_31, %c0_32] : memref<256x32xf32, #tpu.memory_space<vmem>>, vector<256x32xf32>
    tpu.vector_store %arg8[%c0_31, %c0_32], %51 {strides = array<i32>} : memref<256x32xf32, #tpu.memory_space<vmem>>, vector<256x32xf32>,
    %c2_i32_33 = arith.constant 2 : i32
    %53 = arith.cmpi eq, %arg2, %c2_i32_33 : i32
    %54 = arith.extui %53 : i1 to i32
    %c0_i32_34 = arith.constant 0 : i32
    %55 = arith.cmpi ne, %54, %c0_i32_34 : i32
    scf.if %55 {
      %c0_35 = arith.constant 0 : index
      %c0_36 = arith.constant 0 : index
      %56 = vector.load %arg8[%c0_35, %c0_36] : memref<256x32xf32, #tpu.memory_space<vmem>>, vector<256x32xf32>
      %c0_37 = arith.constant 0 : index
      %c0_38 = arith.constant 0 : index
      %57 = vector.load %arg5[%c0_37, %c0_38] : memref<1x32xf32, #tpu.memory_space<vmem>>, vector<1x32xf32>
      %58 = vector.broadcast %57 : vector<1x32xf32> to vector<256x32xf32>
      %59 = arith.addf %56, %58 : vector<256x32xf32>
      %c0_39 = arith.constant 0 : index
      %c0_40 = arith.constant 0 : index
      %c0_41 = arith.constant 0 : index
      %c0_42 = arith.constant 0 : index
      %60 = vector.load %arg6[%c0_39, %c0_40, %c0_41, %c0_42] : memref<1x1x256x32xf32, #tpu.memory_space<vmem>>, vector<1x1x256x32xf32>
      %61 = vector.shape_cast %60 : vector<1x1x256x32xf32> to vector<256x32xf32>
      %62 = vector.shape_cast %59 : vector<256x32xf32> to vector<1x1x256x32xf32>
      tpu.vector_store %arg6[%c0_39, %c0_40, %c0_41, %c0_42], %62 {strides = array<i32>} : memref<1x1x256x32xf32, #tpu.memory_space<vmem>>, vector<1x1x256x32xf32>,
    } else {
    }
    return
  }
  func.func @transform_0(%arg0: i32, %arg1: i32, %arg2: i32) -> (i32, i32, i32, i32, i32) {
    %0 = arith.addi %arg1, %arg2 : i32
    %c2_i32 = arith.constant 2 : i32
    %1 = arith.subi %0, %c2_i32 : i32
    %c0_i32 = arith.constant 0 : i32
    %2 = arith.maxsi %1, %c0_i32 : i32
    %c0_i32_0 = arith.constant 0 : i32
    %c0_i32_1 = arith.constant 0 : i32
    %c0_i32_2 = arith.constant 0 : i32
    %c0_i32_3 = arith.constant 0 : i32
    return %arg0, %2, %c0_i32_0, %c0_i32_1, %c0_i32_2 : i32, i32, i32, i32, i32
  }
  func.func @transform_1(%arg0: i32, %arg1: i32, %arg2: i32) -> (i32, i32, i32) {
    %c0_i32 = arith.constant 0 : i32
    %c0_i32_0 = arith.constant 0 : i32
    %c0_i32_1 = arith.constant 0 : i32
    %c0_i32_2 = arith.constant 0 : i32
    return %c0_i32, %c0_i32_0, %c0_i32_1 : i32, i32, i32
  }
  func.func @transform_2(%arg0: i32, %arg1: i32, %arg2: i32) -> (i32, i32) {
    %c0_i32 = arith.constant 0 : i32
    %c0_i32_0 = arith.constant 0 : i32
    %c0_i32_1 = arith.constant 0 : i32
    return %c0_i32, %c0_i32_0 : i32, i32
  }
  func.func @transform_3(%arg0: i32, %arg1: i32, %arg2: i32) -> (i32, i32, i32, i32) {
    %c0_i32 = arith.constant 0 : i32
    %c0_i32_0 = arith.constant 0 : i32
    %c0_i32_1 = arith.constant 0 : i32
    return %arg0, %arg1, %c0_i32, %c0_i32_0 : i32, i32, i32, i32
  }
}

</mosaic_0001>

<llo_original>
// kernel: cogvideox_causal_conv3d.1
$region0: #{cogvideox_causal_conv3d.1}
  #allocation0 [shape = 'u32[]', space=smem, size = 0x4, offset = 0x4, fixed_abs, tag = 'smem constant byte address 0x4 - core index']
  #allocation1 [shape = 'u32[144,128]{1,0:T(1,128)}', space=vmem, size = 0x12000, scoped, tag = 'internal scratch']
  #allocation2 [shape = 'bf16[18,18,16]{2,1,0:T(8,128)(2,1)}', space=vmem, size = 0x1b000, scoped, tag = 'scratch operand']
  #allocation3 [shape = 'f32[256,32]{1,0:T(8,128)}', space=vmem, size = 0x20000, scoped, tag = 'scratch operand']
  %s0 = inlined_call_operand.vmem [shape: f32[2,5,16,16,16], index: 0, kind: input, shape index: {}]
  %s1 = inlined_call_operand.vmem [shape: bf16[9,48,32], index: 1, kind: input, shape index: {}]
  %s2 = inlined_call_operand.vmem [shape: f32[1,32], index: 2, kind: input, shape index: {}]
  %s3 = inlined_call_operand.hbm [shape: f32[2,5,256,32], index: 3, kind: output, shape index: {}]
  %s4 = sld [smem:[#allocation0]]
  $region53: #{cogvideox_causal_conv3d.1} parent=0
    _
  %s6 = ssub.s32 1, %s4
  %s7 = scalar_select 0, %s6, %s4
  $region1: #{cogvideox_causal_conv3d.1} parent=0
    #allocation4 [shape = 'u8[262144]{0}', space=vmem, size = 0x40000, scoped, tag = 'output window, operand 0']
    #allocation5 [shape = 's32[2]{0}', space=sflag, size = 0x8, scoped, tag = 'scoped memory for cogvideox_causal_conv3d.1']
    %8 = vsyncpa [#allocation5], 0
    %s9 = scalar_lea.sflag [#allocation5], 1
    %10 = vsyncpa %s9, 0
    loop: start=0, step=1, limit=32
    $region2: #{cogvideox_causal_conv3d.1} parent=1 // loop_pre_header
      _
    $region3: #{cogvideox_causal_conv3d.1} parent=1 // loop_header
      %s12 = sphi 0, %s16
      %p13 = scmp.ge.s32.totalorder %s12, 32
      %s19 = sphi 0, %s38
      %s20 = sphi 0, %s34
      %s21 = sphi 0, %s30
      %s22 = sphi 0, %s19
      %s23 = sphi 0, %s20
      %s24 = sphi 0, %s21
      %s25 = sphi 0, %s22
      %s26 = sphi 0, %s23
      %s27 = sphi 0, %s24
      %s51 = sphi 0, %s53
      %s54 = sphi 0, %s51
      %s55 = sphi 0, %s54
      %s71 = sphi 0, %s55
      %s75 = sphi 0, %s75
      %s77 = sphi 0, %s75
      %s78 = sphi 0, %s77
      %s92 = sphi 0, %s78
      %s96 = sphi 0, %s96
      %s98 = sphi 0, %s96
      %s99 = sphi 0, %s98
      %s113 = sphi 0, %s99
      %s121 = sphi 0, %s123
      %s124 = sphi 0, %s121
      %s125 = sphi 0, %s124
      %s141 = sphi 0, %s125
    $region4: #{cogvideox_causal_conv3d.1} parent=1 // loop_header_branch
      %15 = sbr.rel (%p13) target = $region8
    $region5: #{cogvideox_causal_conv3d.1} parent=1 // loop_body
      %s17 = ssub.s32 %s12, 1
      %s18 = ssub.s32 %s12, 2
      %s28 = sadd.s32 1, %s21
      %p29 = scmp.ge.s32.totalorder %s28, 3
      %s30 = scalar_select %p29, 0, %s28
      %s31 = sadd.s32 1, %s20
      %s32 = scalar_select %p29, %s31, %s20
      %p33 = scmp.ge.s32.totalorder %s32, 5
      %s34 = scalar_select %p33, 0, %s32
      %s35 = sadd.s32 1, %s19
      %s36 = scalar_select %p33, %s35, %s19
      %p37 = scmp.ge.s32.totalorder %s36, 2
      %s38 = scalar_select %p37, 0, %s36
      %s39 = sadd.s32 %s20, %s21
      %s40 = ssub.s32 %s39, 2
      %p41 = scmp.gt.s32.totalorder %s40, 0
      %s42 = scalar_select %p41, %s40, 0
      %s43 = sadd.s32 %s34, %s30
      %s44 = ssub.s32 %s43, 2
      %p45 = scmp.gt.s32.totalorder %s44, 0
      %s46 = scalar_select %p45, %s44, 0
      %s47 = ssub.s32 %s19, %s38
      %s48 = ssub.s32 %s42, %s46
      %s49 = sor.u32 %s47, %s48
      %p50 = scmp.eq.s32.totalorder %s49, 0
      %s52 = sadd.s32 %s51, 1
      %s53 = scalar_select %p50, %s51, %s52
      %p56 = pneg %p50
      %p57 = scmp.eq.s32.totalorder %s12, 29
      %p58 = por %p56, %p57
      %p59 = scmp.ne.s32.totalorder %s51, %s54
      %p60 = scmp.eq.s32.totalorder %s12, 0
      %p61 = por %p59, %p60
      %p62 = scmp.ne.s32.totalorder %s51, %s54
      %p63 = scmp.eq.s32.totalorder %s17, 29
      %p64 = por %p62, %p63
      %p65 = scmp.ne.s32.totalorder %s54, %s55
      %p66 = scmp.eq.s32.totalorder %s17, 0
      %p67 = por %p65, %p66
      %p68 = scmp.ne.s32.totalorder %s54, %s55
      %p69 = scmp.eq.s32.totalorder %s18, 29
      %p70 = por %p68, %p69
      %p72 = scmp.ne.s32.totalorder %s55, %s71
      %p73 = scmp.eq.s32.totalorder %s18, 0
      %p74 = por %p72, %p73
      %s76 = sadd.s32 %s75, 1
      %p79 = scmp.eq.s32.totalorder %s12, 29
      %p80 = scmp.ne.s32.totalorder %s75, %s77
      %p81 = scmp.eq.s32.totalorder %s12, 0
      %p82 = por %p80, %p81
      %p83 = scmp.ne.s32.totalorder %s75, %s77
      %p84 = scmp.eq.s32.totalorder %s17, 29
      %p85 = por %p83, %p84
      %p86 = scmp.ne.s32.totalorder %s77, %s78
      %p87 = scmp.eq.s32.totalorder %s17, 0
      %p88 = por %p86, %p87
      %p89 = scmp.ne.s32.totalorder %s77, %s78
      %p90 = scmp.eq.s32.totalorder %s18, 29
      %p91 = por %p89, %p90
      %p93 = scmp.ne.s32.totalorder %s78, %s92
      %p94 = scmp.eq.s32.totalorder %s18, 0
      %p95 = por %p93, %p94
      %s97 = sadd.s32 %s96, 1
      %p100 = scmp.eq.s32.totalorder %s12, 29
      %p101 = scmp.ne.s32.totalorder %s96, %s98
      %p102 = scmp.eq.s32.totalorder %s12, 0
      %p103 = por %p101, %p102
      %p104 = scmp.ne.s32.totalorder %s96, %s98
      %p105 = scmp.eq.s32.totalorder %s17, 29
      %p106 = por %p104, %p105
      %p107 = scmp.ne.s32.totalorder %s98, %s99
      %p108 = scmp.eq.s32.totalorder %s17, 0
      %p109 = por %p107, %p108
      %p110 = scmp.ne.s32.totalorder %s98, %s99
      %p111 = scmp.eq.s32.totalorder %s18, 29
      %p112 = por %p110, %p111
      %p114 = scmp.ne.s32.totalorder %s99, %s113
      %p115 = scmp.eq.s32.totalorder %s18, 0
      %p116 = por %p114, %p115
      %s117 = ssub.s32 %s19, %s38
      %s118 = ssub.s32 %s20, %s34
      %s119 = sor.u32 %s117, %s118
      %p120 = scmp.eq.s32.totalorder %s119, 0
      %s122 = sadd.s32 %s121, 1
      %s123 = scalar_select %p120, %s121, %s122
      %p126 = pneg %p120
      %p127 = scmp.eq.s32.totalorder %s12, 29
      %p128 = por %p126, %p127
      %p129 = scmp.ne.s32.totalorder %s121, %s124
      %p130 = scmp.eq.s32.totalorder %s12, 0
      %p131 = por %p129, %p130
      %p132 = scmp.ne.s32.totalorder %s121, %s124
      %p133 = scmp.eq.s32.totalorder %s17, 29
      %p134 = por %p132, %p133
      %p135 = scmp.ne.s32.totalorder %s124, %s125
      %p136 = scmp.eq.s32.totalorder %s17, 0
      %p137 = por %p135, %p136
      %p138 = scmp.ne.s32.totalorder %s124, %s125
      %p139 = scmp.eq.s32.totalorder %s18, 29
      %p140 = por %p138, %p139
      %p142 = scmp.ne.s32.totalorder %s125, %s141
      %p143 = scmp.eq.s32.totalorder %s18, 0
      %p144 = por %p142, %p143
      %p145 = scmp.le.s32.totalorder 1, %s12
      %p146 = scmp.lt.s32.totalorder %s12, 31
      %p147 = pnand %p145, %p146
      %p148 = pneg %p147
      // Predicated region
      $region9: #{cogvideox_causal_conv3d.1} parent=5 // pred_check
        _
      $region10: #{cogvideox_causal_conv3d.1} parent=5 // pred_check_branch
        %150 = sbr.rel (%p147) target = $region12
      $region11: #{cogvideox_causal_conv3d.1} parent=5 // pred_region
        %s151 = ssub.s32 %s12, 1
        // Predicated region
        $region13: #{cogvideox_causal_conv3d.1} parent=11 // pred_check
          %p152 = pneg %p88
        $region14: #{cogvideox_causal_conv3d.1} parent=11 // pred_check_branch
          %154 = sbr.rel (%p152) target = $region16
        $region15: #{cogvideox_causal_conv3d.1} parent=11 // pred_region
          _
        $region16: #{cogvideox_causal_conv3d.1} parent=11 // pred_fallthru
          _
        // Predicated region
        $region17: #{cogvideox_causal_conv3d.1} parent=11 // pred_check
          %p155 = pneg %p109
        $region18: #{cogvideox_causal_conv3d.1} parent=11 // pred_check_branch
          %157 = sbr.rel (%p155) target = $region20
        $region19: #{cogvideox_causal_conv3d.1} parent=11 // pred_region
          _
        $region20: #{cogvideox_causal_conv3d.1} parent=11 // pred_fallthru
          _
      $region12: #{cogvideox_causal_conv3d.1} parent=5 // pred_fallthru
        _
      %p158 = scmp.lt.s32.totalorder %s12, 30
      // Predicated region
      $region21: #{cogvideox_causal_conv3d.1} parent=5 // pred_check
        %p159 = pneg %p158
      $region22: #{cogvideox_causal_conv3d.1} parent=5 // pred_check_branch
        %161 = sbr.rel (%p159) target = $region24
      $region23: #{cogvideox_causal_conv3d.1} parent=5 // pred_region
        // Predicated region
        $region25: #{cogvideox_causal_conv3d.1} parent=23 // pred_check
          %p162 = pneg %p61
        $region26: #{cogvideox_causal_conv3d.1} parent=23 // pred_check_branch
          %164 = sbr.rel (%p162) target = $region28
        $region27: #{cogvideox_causal_conv3d.1} parent=23 // pred_region
          %s165 = sadd.s32 %s20, %s21
          %s166 = ssub.s32 %s165, 2
          %p167 = scmp.gt.s32.totalorder %s166, 0
          %s168 = scalar_select %p167, %s166, 0
          %p169 = scmp.lt.s32.totalorder %s19, 1
          %s170 = scalar_select %p169, %s19, 1
          %p171 = scmp.lt.s32.totalorder %s168, 4
          %s172 = scalar_select %p171, %s168, 4
          %s173 = smul.addr %s172, 32
          %s174 = smul.addr %s170, 160
          %s175 = sadd.s32 %s173, %s174
          %s176 = smul.addr %s175, 8
          %s177 = scalar_lea.vmem %s0, %s176
          %s178 = sadd.s32 %s20, %s21
          %s179 = ssub.s32 %s178, 2
          %p180 = scmp.gt.s32.totalorder %s179, 0
          %s181 = scalar_select %p180, %s179, 0
        $region28: #{cogvideox_causal_conv3d.1} parent=23 // pred_fallthru
          _
      $region24: #{cogvideox_causal_conv3d.1} parent=5 // pred_fallthru
        _
      %p182 = scmp.le.s32.totalorder 1, %s12
      %p183 = scmp.lt.s32.totalorder %s12, 31
      %p184 = pnand %p182, %p183
      %p185 = pneg %p184
      // Predicated region
      $region29: #{cogvideox_causal_conv3d.1} parent=5 // pred_check
        _
      $region30: #{cogvideox_causal_conv3d.1} parent=5 // pred_check_branch
        %187 = sbr.rel (%p184) target = $region32
      $region31: #{cogvideox_causal_conv3d.1} parent=5 // pred_region
        %s188 = ssub.s32 %s12, 1
        %s189 = sadd.s32 %s23, %s24
        %s190 = ssub.s32 %s189, 2
        %p191 = scmp.gt.s32.totalorder %s190, 0
        %s192 = scalar_select %p191, %s190, 0
        %p193 = scmp.lt.s32.totalorder %s22, 1
        %s194 = scalar_select %p193, %s22, 1
        %p195 = scmp.lt.s32.totalorder %s192, 4
        %s196 = scalar_select %p195, %s192, 4
        %s197 = smul.addr %s196, 32
        %s198 = smul.addr %s194, 160
        %s199 = sadd.s32 %s197, %s198
        %s200 = smul.addr %s199, 8
        %s201 = scalar_lea.vmem %s0, %s200
        %p202 = pneg %p67
        %p203 = pneg %p64
        %p204 = pneg %p88
        %p205 = pneg %p85
        %p206 = pneg %p109
        %p207 = pneg %p106
        %p208 = pneg %p137
        %p209 = pneg %p134
        %s210 = sand.u32 %s124, 1
        %s211 = scalar_lea.sflag [#allocation5], %s210
        %s212 = sand.u32 %s124, 1
        %s213 = smul.addr %s212, 256
        %s214 = scalar_lea.vmem [#allocation4], %s213
        %s215 = sadd.s32 %s23, %s24
        %s216 = ssub.s32 %s215, 2
        %p217 = scmp.gt.s32.totalorder %s216, 0
        %s218 = scalar_select %p217, %s216, 0
        %p219 = scmp.lt.s32.totalorder %s22, 1
        %s220 = scalar_select %p219, %s22, 1
        %p221 = scmp.lt.s32.totalorder %s218, 4
        %s222 = scalar_select %p221, %s218, 4
        %s223 = smul.addr %s222, 32
        %s224 = smul.addr %s220, 160
        %s225 = sadd.s32 %s223, %s224
        %s226 = smul.addr %s225, 8
        %s227 = scalar_lea.vmem %s0, %s226
        %s228 = sadd.s32 %s23, %s24
        %s229 = ssub.s32 %s228, 2
        %p230 = scmp.gt.s32.totalorder %s229, 0
        %s231 = scalar_select %p230, %s229, 0
        %p233 = scmp.eq.s32.totalorder %s24, 0
        // Predicated region
        $region33: #{cogvideox_causal_conv3d.1} parent=31 // pred_check
          %p234 = pneg %p233
        $region34: #{cogvideox_causal_conv3d.1} parent=31 // pred_check_branch
          %236 = sbr.rel (%p234) target = $region36
        $region35: #{cogvideox_causal_conv3d.1} parent=31 // pred_region
          %vm237 = vcmask 125952
          %238 = vst.msk [vmem:[#allocation2] sm:$0xf] %vm237, 0
          %239 = vst.msk [vmem:[#allocation2 + $0x4] sm:$0xf] %vm237, 0
          %vm240 = vcmask 122880
          %241 = vst.msk [vmem:[#allocation2 + $0x8] sm:$0x1] %vm240, 0
          %242 = vst.msk [vmem:[#allocation2 + $0xc] sm:$0xf] %vm237, 0
          %243 = vst.msk [vmem:[#allocation2 + $0x10] sm:$0xf] %vm237, 0
          %244 = vst.msk [vmem:[#allocation2 + $0x14] sm:$0x1] %vm240, 0
          %245 = vst.msk [vmem:[#allocation2 + $0x18] sm:$0xf] %vm237, 0
          %246 = vst.msk [vmem:[#allocation2 + $0x1c] sm:$0xf] %vm237, 0
          %247 = vst.msk [vmem:[#allocation2 + $0x20] sm:$0x1] %vm240, 0
          %248 = vst.msk [vmem:[#allocation2 + $0x24] sm:$0xf] %vm237, 0
          %249 = vst.msk [vmem:[#allocation2 + $0x28] sm:$0xf] %vm237, 0
          %250 = vst.msk [vmem:[#allocation2 + $0x2c] sm:$0x1] %vm240, 0
          %251 = vst.msk [vmem:[#allocation2 + $0x30] sm:$0xf] %vm237, 0
          %252 = vst.msk [vmem:[#allocation2 + $0x34] sm:$0xf] %vm237, 0
          %253 = vst.msk [vmem:[#allocation2 + $0x38] sm:$0x1] %vm240, 0
          %254 = vst.msk [vmem:[#allocation2 + $0x3c] sm:$0xf] %vm237, 0
          %255 = vst.msk [vmem:[#allocation2 + $0x40] sm:$0xf] %vm237, 0
          %256 = vst.msk [vmem:[#allocation2 + $0x44] sm:$0x1] %vm240, 0
          %257 = vst.msk [vmem:[#allocation2 + $0x48] sm:$0xf] %vm237, 0
          %258 = vst.msk [vmem:[#allocation2 + $0x4c] sm:$0xf] %vm237, 0
          %259 = vst.msk [vmem:[#allocation2 + $0x50] sm:$0x1] %vm240, 0
          %260 = vst.msk [vmem:[#allocation2 + $0x54] sm:$0xf] %vm237, 0
          %261 = vst.msk [vmem:[#allocation2 + $0x58] sm:$0xf] %vm237, 0
          %262 = vst.msk [vmem:[#allocation2 + $0x5c] sm:$0x1] %vm240, 0
          %263 = vst.msk [vmem:[#allocation2 + $0x60] sm:$0xf] %vm237, 0
          %264 = vst.msk [vmem:[#allocation2 + $0x64] sm:$0xf] %vm237, 0
          %265 = vst.msk [vmem:[#allocation2 + $0x68] sm:$0x1] %vm240, 0
          %266 = vst.msk [vmem:[#allocation2 + $0x6c] sm:$0xf] %vm237, 0
          %267 = vst.msk [vmem:[#allocation2 + $0x70] sm:$0xf] %vm237, 0
          %268 = vst.msk [vmem:[#allocation2 + $0x74] sm:$0x1] %vm240, 0
          %269 = vst.msk [vmem:[#allocation2 + $0x78] sm:$0xf] %vm237, 0
          %270 = vst.msk [vmem:[#allocation2 + $0x7c] sm:$0xf] %vm237, 0
          %271 = vst.msk [vmem:[#allocation2 + $0x80] sm:$0x1] %vm240, 0
          %272 = vst.msk [vmem:[#allocation2 + $0x84] sm:$0xf] %vm237, 0
          %273 = vst.msk [vmem:[#allocation2 + $0x88] sm:$0xf] %vm237, 0
          %274 = vst.msk [vmem:[#allocation2 + $0x8c] sm:$0x1] %vm240, 0
          %275 = vst.msk [vmem:[#allocation2 + $0x90] sm:$0xf] %vm237, 0
          %276 = vst.msk [vmem:[#allocation2 + $0x94] sm:$0xf] %vm237, 0
          %277 = vst.msk [vmem:[#allocation2 + $0x98] sm:$0x1] %vm240, 0
          %278 = vst.msk [vmem:[#allocation2 + $0x9c] sm:$0xf] %vm237, 0
          %279 = vst.msk [vmem:[#allocation2 + $0xa0] sm:$0xf] %vm237, 0
          %280 = vst.msk [vmem:[#allocation2 + $0xa4] sm:$0x1] %vm240, 0
          %281 = vst.msk [vmem:[#allocation2 + $0xa8] sm:$0xf] %vm237, 0
          %282 = vst.msk [vmem:[#allocation2 + $0xac] sm:$0xf] %vm237, 0
          %283 = vst.msk [vmem:[#allocation2 + $0xb0] sm:$0x1] %vm240, 0
          %284 = vst.msk [vmem:[#allocation2 + $0xb4] sm:$0xf] %vm237, 0
          %285 = vst.msk [vmem:[#allocation2 + $0xb8] sm:$0xf] %vm237, 0
          %286 = vst.msk [vmem:[#allocation2 + $0xbc] sm:$0x1] %vm240, 0
          %287 = vst.msk [vmem:[#allocation2 + $0xc0] sm:$0xf] %vm237, 0
          %288 = vst.msk [vmem:[#allocation2 + $0xc4] sm:$0xf] %vm237, 0
          %289 = vst.msk [vmem:[#allocation2 + $0xc8] sm:$0x1] %vm240, 0
          %290 = vst.msk [vmem:[#allocation2 + $0xcc] sm:$0xf] %vm237, 0
          %291 = vst.msk [vmem:[#allocation2 + $0xd0] sm:$0xf] %vm237, 0
          %292 = vst.msk [vmem:[#allocation2 + $0xd4] sm:$0x1] %vm240, 0
          %vm293 = vcmask 261120
          %294 = vst.msk [vmem:[#allocation3] sm:$0xff] %vm293, 0.0
          %295 = vst.msk [vmem:[#allocation3 + $0x8] sm:$0xff] %vm293, 0.0
          %296 = vst.msk [vmem:[#allocation3 + $0x10] sm:$0xff] %vm293, 0.0
          %297 = vst.msk [vmem:[#allocation3 + $0x18] sm:$0xff] %vm293, 0.0
          %298 = vst.msk [vmem:[#allocation3 + $0x20] sm:$0xff] %vm293, 0.0
          %299 = vst.msk [vmem:[#allocation3 + $0x28] sm:$0xff] %vm293, 0.0
          %300 = vst.msk [vmem:[#allocation3 + $0x30] sm:$0xff] %vm293, 0.0
          %301 = vst.msk [vmem:[#allocation3 + $0x38] sm:$0xff] %vm293, 0.0
          %302 = vst.msk [vmem:[#allocation3 + $0x40] sm:$0xff] %vm293, 0.0
          %303 = vst.msk [vmem:[#allocation3 + $0x48] sm:$0xff] %vm293, 0.0
          %304 = vst.msk [vmem:[#allocation3 + $0x50] sm:$0xff] %vm293, 0.0
          %305 = vst.msk [vmem:[#allocation3 + $0x58] sm:$0xff] %vm293, 0.0
          %306 = vst.msk [vmem:[#allocation3 + $0x60] sm:$0xff] %vm293, 0.0
          %307 = vst.msk [vmem:[#allocation3 + $0x68] sm:$0xff] %vm293, 0.0
          %308 = vst.msk [vmem:[#allocation3 + $0x70] sm:$0xff] %vm293, 0.0
          %309 = vst.msk [vmem:[#allocation3 + $0x78] sm:$0xff] %vm293, 0.0
          %310 = vst.msk [vmem:[#allocation3 + $0x80] sm:$0xff] %vm293, 0.0
          %311 = vst.msk [vmem:[#allocation3 + $0x88] sm:$0xff] %vm293, 0.0
          %312 = vst.msk [vmem:[#allocation3 + $0x90] sm:$0xff] %vm293, 0.0
          %313 = vst.msk [vmem:[#allocation3 + $0x98] sm:$0xff] %vm293, 0.0
          %314 = vst.msk [vmem:[#allocation3 + $0xa0] sm:$0xff] %vm293, 0.0
          %315 = vst.msk [vmem:[#allocation3 + $0xa8] sm:$0xff] %vm293, 0.0
          %316 = vst.msk [vmem:[#allocation3 + $0xb0] sm:$0xff] %vm293, 0.0
          %317 = vst.msk [vmem:[#allocation3 + $0xb8] sm:$0xff] %vm293, 0.0
          %318 = vst.msk [vmem:[#allocation3 + $0xc0] sm:$0xff] %vm293, 0.0
          %319 = vst.msk [vmem:[#allocation3 + $0xc8] sm:$0xff] %vm293, 0.0
          %320 = vst.msk [vmem:[#allocation3 + $0xd0] sm:$0xff] %vm293, 0.0
          %321 = vst.msk [vmem:[#allocation3 + $0xd8] sm:$0xff] %vm293, 0.0
          %322 = vst.msk [vmem:[#allocation3 + $0xe0] sm:$0xff] %vm293, 0.0
          %323 = vst.msk [vmem:[#allocation3 + $0xe8] sm:$0xff] %vm293, 0.0
          %324 = vst.msk [vmem:[#allocation3 + $0xf0] sm:$0xff] %vm293, 0.0
          %325 = vst.msk [vmem:[#allocation3 + $0xf8] sm:$0xff] %vm293, 0.0
        $region36: #{cogvideox_causal_conv3d.1} parent=31 // pred_fallthru
          _
        %v326 = vld [vmem:[%s227] sm:$0xff]
        %v327 = vld [vmem:[%s227 + $0x8] sm:$0xff]
        %v328 = vld [vmem:[%s227 + $0x10] sm:$0xff]
        %v329 = vld [vmem:[%s227 + $0x18] sm:$0xff]
        %v330 = vld [vmem:[%s227 + $0x20] sm:$0xff]
        %v331 = vld [vmem:[%s227 + $0x28] sm:$0xff]
        %v332 = vld [vmem:[%s227 + $0x30] sm:$0xff]
        %v333 = vld [vmem:[%s227 + $0x38] sm:$0xff]
        %v334 = vld [vmem:[%s227 + $0x40] sm:$0xff]
        %v335 = vld [vmem:[%s227 + $0x48] sm:$0xff]
        %v336 = vld [vmem:[%s227 + $0x50] sm:$0xff]
        %v337 = vld [vmem:[%s227 + $0x58] sm:$0xff]
        %v338 = vld [vmem:[%s227 + $0x60] sm:$0xff]
        %v339 = vld [vmem:[%s227 + $0x68] sm:$0xff]
        %v340 = vld [vmem:[%s227 + $0x70] sm:$0xff]
        %v341 = vld [vmem:[%s227 + $0x78] sm:$0xff]
        %v342 = vld [vmem:[%s227 + $0x80] sm:$0xff]
        %v343 = vld [vmem:[%s227 + $0x88] sm:$0xff]
        %v344 = vld [vmem:[%s227 + $0x90] sm:$0xff]
        %v345 = vld [vmem:[%s227 + $0x98] sm:$0xff]
        %v346 = vld [vmem:[%s227 + $0xa0] sm:$0xff]
        %v347 = vld [vmem:[%s227 + $0xa8] sm:$0xff]
        %v348 = vld [vmem:[%s227 + $0xb0] sm:$0xff]
        %v349 = vld [vmem:[%s227 + $0xb8] sm:$0xff]
        %v350 = vld [vmem:[%s227 + $0xc0] sm:$0xff]
        %v351 = vld [vmem:[%s227 + $0xc8] sm:$0xff]
        %v352 = vld [vmem:[%s227 + $0xd0] sm:$0xff]
        %v353 = vld [vmem:[%s227 + $0xd8] sm:$0xff]
        %v354 = vld [vmem:[%s227 + $0xe0] sm:$0xff]
        %v355 = vld [vmem:[%s227 + $0xe8] sm:$0xff]
        %v356 = vld [vmem:[%s227 + $0xf0] sm:$0xff]
        %v357 = vld [vmem:[%s227 + $0xf8] sm:$0xff]
        %v358 = vpack.c.bf16 %v327, %v326
        %v359 = vpack.c.bf16 %v329, %v328
        %v360 = vpack.c.bf16 %v331, %v330
        %v361 = vpack.c.bf16 %v333, %v332
        %v362 = vpack.c.bf16 %v335, %v334
        %v363 = vpack.c.bf16 %v337, %v336
        %v364 = vpack.c.bf16 %v339, %v338
        %v365 = vpack.c.bf16 %v341, %v340
        %v366 = vpack.c.bf16 %v343, %v342
        %v367 = vpack.c.bf16 %v345, %v344
        %v368 = vpack.c.bf16 %v347, %v346
        %v369 = vpack.c.bf16 %v349, %v348
        %v370 = vpack.c.bf16 %v351, %v350
        %v371 = vpack.c.bf16 %v353, %v352
        %v372 = vpack.c.bf16 %v355, %v354
        %v373 = vpack.c.bf16 %v357, %v356
        %v390 = vunpack.c.l.b16 %v358
        %v391 = vunpack.c.h.b16 %v358
        %v392 = vunpack.c.l.b16 %v359
        %v393 = vunpack.c.h.b16 %v359
        %v394 = vunpack.c.l.b16 %v360
        %v395 = vunpack.c.h.b16 %v360
        %v396 = vunpack.c.l.b16 %v361
        %v397 = vunpack.c.h.b16 %v361
        %v398 = vunpack.c.l.b16 %v362
        %v399 = vunpack.c.h.b16 %v362
        %v400 = vunpack.c.l.b16 %v363
        %v401 = vunpack.c.h.b16 %v363
        %v402 = vunpack.c.l.b16 %v364
        %v403 = vunpack.c.h.b16 %v364
        %v404 = vunpack.c.l.b16 %v365
        %v405 = vunpack.c.h.b16 %v365
        %v406 = vunpack.c.l.b16 %v366
        %v407 = vunpack.c.h.b16 %v366
        %v408 = vunpack.c.l.b16 %v367
        %v409 = vunpack.c.h.b16 %v367
        %v410 = vunpack.c.l.b16 %v368
        %v411 = vunpack.c.h.b16 %v368
        %v412 = vunpack.c.l.b16 %v369
        %v413 = vunpack.c.h.b16 %v369
        %v414 = vunpack.c.l.b16 %v370
        %v415 = vunpack.c.h.b16 %v370
        %v416 = vunpack.c.l.b16 %v371
        %v417 = vunpack.c.h.b16 %v371
        %v418 = vunpack.c.l.b16 %v372
        %v419 = vunpack.c.h.b16 %v372
        %v420 = vunpack.c.l.b16 %v373
        %v421 = vunpack.c.h.b16 %v373
        %v422 = vpack.c.b16 %v390, %v390
        %v423 = vpack.c.b16 %v391, %v391
        %v424 = vpack.c.b16 %v392, %v392
        %v425 = vpack.c.b16 %v393, %v393
        %v426 = vpack.c.b16 %v394, %v394
        %v427 = vpack.c.b16 %v395, %v395
        %v428 = vpack.c.b16 %v396, %v396
        %v429 = vpack.c.b16 %v397, %v397
        %v430 = vpack.c.b16 %v398, %v398
        %v431 = vpack.c.b16 %v399, %v399
        %v432 = vpack.c.b16 %v400, %v400
        %v433 = vpack.c.b16 %v401, %v401
        %v434 = vpack.c.b16 %v402, %v402
        %v435 = vpack.c.b16 %v403, %v403
        %v436 = vpack.c.b16 %v404, %v404
        %v437 = vpack.c.b16 %v405, %v405
        %v438 = vpack.c.b16 %v406, %v406
        %v439 = vpack.c.b16 %v407, %v407
        %v440 = vpack.c.b16 %v408, %v408
        %v441 = vpack.c.b16 %v409, %v409
        %v442 = vpack.c.b16 %v410, %v410
        %v443 = vpack.c.b16 %v411, %v411
        %v444 = vpack.c.b16 %v412, %v412
        %v445 = vpack.c.b16 %v413, %v413
        %v446 = vpack.c.b16 %v414, %v414
        %v447 = vpack.c.b16 %v415, %v415
        %v448 = vpack.c.b16 %v416, %v416
        %v449 = vpack.c.b16 %v417, %v417
        %v450 = vpack.c.b16 %v418, %v418
        %v451 = vpack.c.b16 %v419, %v419
        %v452 = vpack.c.b16 %v420, %v420
        %v453 = vpack.c.b16 %v421, %v421
        %vm454 = vsmask.f32 256
        %vm455 = vsmask.f32 4368
        %vm456 = vmor %vm454, %vm455
        %v458 = vshrl.u32 %v422, 16
        %v460 = vrot.slane %v458, 7
        %v461 = vshll.u32 %v422, 16
        %v463 = vor.u32 %v460, %v461
        %v464 = vrot.slane %v460, 4
        %v466 = vshrl.u32 %v423, 16
        %v468 = vrot.slane %v466, 7
        %v469 = vshll.u32 %v423, 16
        %v471 = vor.u32 %v468, %v469
        %v472 = vsel %vm456, %v464, %v471
        %v473 = vrot.slane %v468, 4
        %v475 = vshrl.u32 %v424, 16
        %v477 = vrot.slane %v475, 7
        %v478 = vshll.u32 %v424, 16
        %v480 = vor.u32 %v477, %v478
        %v481 = vrot.slane %v477, 4
        %v483 = vshrl.u32 %v425, 16
        %v485 = vrot.slane %v483, 7
        %v486 = vshll.u32 %v425, 16
        %v488 = vor.u32 %v485, %v486
        %v489 = vsel %vm456, %v481, %v488
        %v490 = vrot.slane %v485, 4
        %v492 = vshrl.u32 %v426, 16
        %v494 = vrot.slane %v492, 7
        %v495 = vshll.u32 %v426, 16
        %v497 = vor.u32 %v494, %v495
        %v498 = vrot.slane %v494, 4
        %v500 = vshrl.u32 %v427, 16
        %v502 = vrot.slane %v500, 7
        %v503 = vshll.u32 %v427, 16
        %v505 = vor.u32 %v502, %v503
        %v506 = vsel %vm456, %v498, %v505
        %v507 = vrot.slane %v502, 4
        %v509 = vshrl.u32 %v428, 16
        %v511 = vrot.slane %v509, 7
        %v512 = vshll.u32 %v428, 16
        %v514 = vor.u32 %v511, %v512
        %v515 = vrot.slane %v511, 4
        %v517 = vshrl.u32 %v429, 16
        %v519 = vrot.slane %v517, 7
        %v520 = vshll.u32 %v429, 16
        %v522 = vor.u32 %v519, %v520
        %v523 = vsel %vm456, %v515, %v522
        %v524 = vrot.slane %v519, 4
        %v526 = vshrl.u32 %v430, 16
        %v528 = vrot.slane %v526, 7
        %v529 = vshll.u32 %v430, 16
        %v531 = vor.u32 %v528, %v529
        %v532 = vrot.slane %v528, 4
        %v534 = vshrl.u32 %v431, 16
        %v536 = vrot.slane %v534, 7
        %v537 = vshll.u32 %v431, 16
        %v539 = vor.u32 %v536, %v537
        %v540 = vsel %vm456, %v532, %v539
        %v541 = vrot.slane %v536, 4
        %v543 = vshrl.u32 %v432, 16
        %v545 = vrot.slane %v543, 7
        %v546 = vshll.u32 %v432, 16
        %v548 = vor.u32 %v545, %v546
        %v549 = vrot.slane %v545, 4
        %v551 = vshrl.u32 %v433, 16
        %v553 = vrot.slane %v551, 7
        %v554 = vshll.u32 %v433, 16
        %v556 = vor.u32 %v553, %v554
        %v557 = vsel %vm456, %v549, %v556
        %v558 = vrot.slane %v553, 4
        %v560 = vshrl.u32 %v434, 16
        %v562 = vrot.slane %v560, 7
        %v563 = vshll.u32 %v434, 16
        %v565 = vor.u32 %v562, %v563
        %v566 = vrot.slane %v562, 4
        %v568 = vshrl.u32 %v435, 16
        %v570 = vrot.slane %v568, 7
        %v571 = vshll.u32 %v435, 16
        %v573 = vor.u32 %v570, %v571
        %v574 = vsel %vm456, %v566, %v573
        %v575 = vrot.slane %v570, 4
        %v577 = vshrl.u32 %v436, 16
        %v579 = vrot.slane %v577, 7
        %v580 = vshll.u32 %v436, 16
        %v582 = vor.u32 %v579, %v580
        %v583 = vrot.slane %v579, 4
        %v585 = vshrl.u32 %v437, 16
        %v587 = vrot.slane %v585, 7
        %v588 = vshll.u32 %v437, 16
        %v590 = vor.u32 %v587, %v588
        %v591 = vsel %vm456, %v583, %v590
        %v592 = vrot.slane %v587, 4
        %v594 = vshrl.u32 %v438, 16
        %v596 = vrot.slane %v594, 7
        %v597 = vshll.u32 %v438, 16
        %v599 = vor.u32 %v596, %v597
        %v600 = vrot.slane %v596, 4
        %v602 = vshrl.u32 %v439, 16
        %v604 = vrot.slane %v602, 7
        %v605 = vshll.u32 %v439, 16
        %v607 = vor.u32 %v604, %v605
        %v608 = vsel %vm456, %v600, %v607
        %v609 = vrot.slane %v604, 4
        %v611 = vshrl.u32 %v440, 16
        %v613 = vrot.slane %v611, 7
        %v614 = vshll.u32 %v440, 16
        %v616 = vor.u32 %v613, %v614
        %v617 = vrot.slane %v613, 4
        %v619 = vshrl.u32 %v441, 16
        %v621 = vrot.slane %v619, 7
        %v622 = vshll.u32 %v441, 16
        %v624 = vor.u32 %v621, %v622
        %v625 = vsel %vm456, %v617, %v624
        %v626 = vrot.slane %v621, 4
        %v628 = vshrl.u32 %v442, 16
        %v630 = vrot.slane %v628, 7
        %v631 = vshll.u32 %v442, 16
        %v633 = vor.u32 %v630, %v631
        %v634 = vrot.slane %v630, 4
        %v636 = vshrl.u32 %v443, 16
        %v638 = vrot.slane %v636, 7
        %v639 = vshll.u32 %v443, 16
        %v641 = vor.u32 %v638, %v639
        %v642 = vsel %vm456, %v634, %v641
        %v643 = vrot.slane %v638, 4
        %v645 = vshrl.u32 %v444, 16
        %v647 = vrot.slane %v645, 7
        %v648 = vshll.u32 %v444, 16
        %v650 = vor.u32 %v647, %v648
        %v651 = vrot.slane %v647, 4
        %v653 = vshrl.u32 %v445, 16
        %v655 = vrot.slane %v653, 7
        %v656 = vshll.u32 %v445, 16
        %v658 = vor.u32 %v655, %v656
        %v659 = vsel %vm456, %v651, %v658
        %v660 = vrot.slane %v655, 4
        %v662 = vshrl.u32 %v446, 16
        %v664 = vrot.slane %v662, 7
        %v665 = vshll.u32 %v446, 16
        %v667 = vor.u32 %v664, %v665
        %v668 = vrot.slane %v664, 4
        %v670 = vshrl.u32 %v447, 16
        %v672 = vrot.slane %v670, 7
        %v673 = vshll.u32 %v447, 16
        %v675 = vor.u32 %v672, %v673
        %v676 = vsel %vm456, %v668, %v675
        %v677 = vrot.slane %v672, 4
        %v679 = vshrl.u32 %v448, 16
        %v681 = vrot.slane %v679, 7
        %v682 = vshll.u32 %v448, 16
        %v684 = vor.u32 %v681, %v682
        %v685 = vrot.slane %v681, 4
        %v687 = vshrl.u32 %v449, 16
        %v689 = vrot.slane %v687, 7
        %v690 = vshll.u32 %v449, 16
        %v692 = vor.u32 %v689, %v690
        %v693 = vsel %vm456, %v685, %v692
        %v694 = vrot.slane %v689, 4
        %v696 = vshrl.u32 %v450, 16
        %v698 = vrot.slane %v696, 7
        %v699 = vshll.u32 %v450, 16
        %v701 = vor.u32 %v698, %v699
        %v702 = vrot.slane %v698, 4
        %v704 = vshrl.u32 %v451, 16
        %v706 = vrot.slane %v704, 7
        %v707 = vshll.u32 %v451, 16
        %v709 = vor.u32 %v706, %v707
        %v710 = vsel %vm456, %v702, %v709
        %v711 = vrot.slane %v706, 4
        %v713 = vshrl.u32 %v452, 16
        %v715 = vrot.slane %v713, 7
        %v716 = vshll.u32 %v452, 16
        %v718 = vor.u32 %v715, %v716
        %v719 = vrot.slane %v715, 4
        %v721 = vshrl.u32 %v453, 16
        %v723 = vrot.slane %v721, 7
        %v724 = vshll.u32 %v453, 16
        %v726 = vor.u32 %v723, %v724
        %v727 = vsel %vm456, %v719, %v726
        %v728 = vrot.slane %v723, 4
        %s777 = scalar_lea.vmem [#allocation2], 12
        %vm778 = vcmask 125952
        %vm779 = vsmask.f32 7938
        %vm780 = vmand %vm778, %vm779
        %v781 = vld [vmem:[%s777] sm:$0xf]
        %v782 = vsel %vm780, %v463, %v781
        %783 = vst [vmem:[%s777] sm:$0xf] %v782
        %vm784 = vcmask 125952
        %785 = vst.msk [vmem:[%s777 + $0x4] sm:$0xf] %vm784, %v472
        %vm786 = vcmask 122880
        %vm787 = vmand %vm786, %vm454
        %v788 = vld [vmem:[%s777 + $0x8] sm:$0x1]
        %v789 = vsel %vm787, %v473, %v788
        %790 = vst [vmem:[%s777 + $0x8] sm:$0x1] %v789
        %v791 = vld [vmem:[%s777 + $0xc] sm:$0xf]
        %v792 = vsel %vm780, %v480, %v791
        %793 = vst [vmem:[%s777 + $0xc] sm:$0xf] %v792
        %794 = vst.msk [vmem:[%s777 + $0x10] sm:$0xf] %vm784, %v489
        %v795 = vld [vmem:[%s777 + $0x14] sm:$0x1]
        %v796 = vsel %vm787, %v490, %v795
        %797 = vst [vmem:[%s777 + $0x14] sm:$0x1] %v796
        %v798 = vld [vmem:[%s777 + $0x18] sm:$0xf]
        %v799 = vsel %vm780, %v497, %v798
        %800 = vst [vmem:[%s777 + $0x18] sm:$0xf] %v799
        %801 = vst.msk [vmem:[%s777 + $0x1c] sm:$0xf] %vm784, %v506
        %v802 = vld [vmem:[%s777 + $0x20] sm:$0x1]
        %v803 = vsel %vm787, %v507, %v802
        %804 = vst [vmem:[%s777 + $0x20] sm:$0x1] %v803
        %v805 = vld [vmem:[%s777 + $0x24] sm:$0xf]
        %v806 = vsel %vm780, %v514, %v805
        %807 = vst [vmem:[%s777 + $0x24] sm:$0xf] %v806
        %808 = vst.msk [vmem:[%s777 + $0x28] sm:$0xf] %vm784, %v523
        %v809 = vld [vmem:[%s777 + $0x2c] sm:$0x1]
        %v810 = vsel %vm787, %v524, %v809
        %811 = vst [vmem:[%s777 + $0x2c] sm:$0x1] %v810
        %v812 = vld [vmem:[%s777 + $0x30] sm:$0xf]
        %v813 = vsel %vm780, %v531, %v812
        %814 = vst [vmem:[%s777 + $0x30] sm:$0xf] %v813
        %815 = vst.msk [vmem:[%s777 + $0x34] sm:$0xf] %vm784, %v540
        %v816 = vld [vmem:[%s777 + $0x38] sm:$0x1]
        %v817 = vsel %vm787, %v541, %v816
        %818 = vst [vmem:[%s777 + $0x38] sm:$0x1] %v817
        %v819 = vld [vmem:[%s777 + $0x3c] sm:$0xf]
        %v820 = vsel %vm780, %v548, %v819
        %821 = vst [vmem:[%s777 + $0x3c] sm:$0xf] %v820
        %822 = vst.msk [vmem:[%s777 + $0x40] sm:$0xf] %vm784, %v557
        %v823 = vld [vmem:[%s777 + $0x44] sm:$0x1]
        %v824 = vsel %vm787, %v558, %v823
        %825 = vst [vmem:[%s777 + $0x44] sm:$0x1] %v824
        %v826 = vld [vmem:[%s777 + $0x48] sm:$0xf]
        %v827 = vsel %vm780, %v565, %v826
        %828 = vst [vmem:[%s777 + $0x48] sm:$0xf] %v827
        %829 = vst.msk [vmem:[%s777 + $0x4c] sm:$0xf] %vm784, %v574
        %v830 = vld [vmem:[%s777 + $0x50] sm:$0x1]
        %v831 = vsel %vm787, %v575, %v830
        %832 = vst [vmem:[%s777 + $0x50] sm:$0x1] %v831
        %v833 = vld [vmem:[%s777 + $0x54] sm:$0xf]
        %v834 = vsel %vm780, %v582, %v833
        %835 = vst [vmem:[%s777 + $0x54] sm:$0xf] %v834
        %836 = vst.msk [vmem:[%s777 + $0x58] sm:$0xf] %vm784, %v591
        %v837 = vld [vmem:[%s777 + $0x5c] sm:$0x1]
        %v838 = vsel %vm787, %v592, %v837
        %839 = vst [vmem:[%s777 + $0x5c] sm:$0x1] %v838
        %v840 = vld [vmem:[%s777 + $0x60] sm:$0xf]
        %v841 = vsel %vm780, %v599, %v840
        %842 = vst [vmem:[%s777 + $0x60] sm:$0xf] %v841
        %843 = vst.msk [vmem:[%s777 + $0x64] sm:$0xf] %vm784, %v608
        %v844 = vld [vmem:[%s777 + $0x68] sm:$0x1]
        %v845 = vsel %vm787, %v609, %v844
        %846 = vst [vmem:[%s777 + $0x68] sm:$0x1] %v845
        %v847 = vld [vmem:[%s777 + $0x6c] sm:$0xf]
        %v848 = vsel %vm780, %v616, %v847
        %849 = vst [vmem:[%s777 + $0x6c] sm:$0xf] %v848
        %850 = vst.msk [vmem:[%s777 + $0x70] sm:$0xf] %vm784, %v625
        %v851 = vld [vmem:[%s777 + $0x74] sm:$0x1]
        %v852 = vsel %vm787, %v626, %v851
        %853 = vst [vmem:[%s777 + $0x74] sm:$0x1] %v852
        %v854 = vld [vmem:[%s777 + $0x78] sm:$0xf]
        %v855 = vsel %vm780, %v633, %v854
        %856 = vst [vmem:[%s777 + $0x78] sm:$0xf] %v855
        %857 = vst.msk [vmem:[%s777 + $0x7c] sm:$0xf] %vm784, %v642
        %v858 = vld [vmem:[%s777 + $0x80] sm:$0x1]
        %v859 = vsel %vm787, %v643, %v858
        %860 = vst [vmem:[%s777 + $0x80] sm:$0x1] %v859
        %v861 = vld [vmem:[%s777 + $0x84] sm:$0xf]
        %v862 = vsel %vm780, %v650, %v861
        %863 = vst [vmem:[%s777 + $0x84] sm:$0xf] %v862
        %864 = vst.msk [vmem:[%s777 + $0x88] sm:$0xf] %vm784, %v659
        %v865 = vld [vmem:[%s777 + $0x8c] sm:$0x1]
        %v866 = vsel %vm787, %v660, %v865
        %867 = vst [vmem:[%s777 + $0x8c] sm:$0x1] %v866
        %v868 = vld [vmem:[%s777 + $0x90] sm:$0xf]
        %v869 = vsel %vm780, %v667, %v868
        %870 = vst [vmem:[%s777 + $0x90] sm:$0xf] %v869
        %871 = vst.msk [vmem:[%s777 + $0x94] sm:$0xf] %vm784, %v676
        %v872 = vld [vmem:[%s777 + $0x98] sm:$0x1]
        %v873 = vsel %vm787, %v677, %v872
        %874 = vst [vmem:[%s777 + $0x98] sm:$0x1] %v873
        %v875 = vld [vmem:[%s777 + $0x9c] sm:$0xf]
        %v876 = vsel %vm780, %v684, %v875
        %877 = vst [vmem:[%s777 + $0x9c] sm:$0xf] %v876
        %878 = vst.msk [vmem:[%s777 + $0xa0] sm:$0xf] %vm784, %v693
        %v879 = vld [vmem:[%s777 + $0xa4] sm:$0x1]
        %v880 = vsel %vm787, %v694, %v879
        %881 = vst [vmem:[%s777 + $0xa4] sm:$0x1] %v880
        %v882 = vld [vmem:[%s777 + $0xa8] sm:$0xf]
        %v883 = vsel %vm780, %v701, %v882
        %884 = vst [vmem:[%s777 + $0xa8] sm:$0xf] %v883
        %885 = vst.msk [vmem:[%s777 + $0xac] sm:$0xf] %vm784, %v710
        %v886 = vld [vmem:[%s777 + $0xb0] sm:$0x1]
        %v887 = vsel %vm787, %v711, %v886
        %888 = vst [vmem:[%s777 + $0xb0] sm:$0x1] %v887
        %v889 = vld [vmem:[%s777 + $0xb4] sm:$0xf]
        %v890 = vsel %vm780, %v718, %v889
        %891 = vst [vmem:[%s777 + $0xb4] sm:$0xf] %v890
        %892 = vst.msk [vmem:[%s777 + $0xb8] sm:$0xf] %vm784, %v727
        %v893 = vld [vmem:[%s777 + $0xbc] sm:$0x1]
        %v894 = vsel %vm787, %v728, %v893
        %895 = vst [vmem:[%s777 + $0xbc] sm:$0x1] %v894
        %v896 = vld [vmem:[#allocation2] sm:$0xf]
        %v897 = vld [vmem:[#allocation2 + $0x4] sm:$0xf]
        %v898 = vld [vmem:[#allocation2 + $0x8] sm:$0x1]
        %v899 = vld [vmem:[#allocation2 + $0xc] sm:$0xf]
        %v900 = vld [vmem:[#allocation2 + $0x10] sm:$0xf]
        %v901 = vld [vmem:[#allocation2 + $0x14] sm:$0x1]
        %v902 = vld [vmem:[#allocation2 + $0x18] sm:$0xf]
        %v903 = vld [vmem:[#allocation2 + $0x1c] sm:$0xf]
        %v904 = vld [vmem:[#allocation2 + $0x20] sm:$0x1]
        %v905 = vld [vmem:[#allocation2 + $0x24] sm:$0xf]
        %v906 = vld [vmem:[#allocation2 + $0x28] sm:$0xf]
        %v907 = vld [vmem:[#allocation2 + $0x2c] sm:$0x1]
        %v908 = vld [vmem:[#allocation2 + $0x30] sm:$0xf]
        %v909 = vld [vmem:[#allocation2 + $0x34] sm:$0xf]
        %v910 = vld [vmem:[#allocation2 + $0x38] sm:$0x1]
        %v911 = vld [vmem:[#allocation2 + $0x3c] sm:$0xf]
        %v912 = vld [vmem:[#allocation2 + $0x40] sm:$0xf]
        %v913 = vld [vmem:[#allocation2 + $0x44] sm:$0x1]
        %v914 = vld [vmem:[#allocation2 + $0x48] sm:$0xf]
        %v915 = vld [vmem:[#allocation2 + $0x4c] sm:$0xf]
        %v916 = vld [vmem:[#allocation2 + $0x50] sm:$0x1]
        %v917 = vld [vmem:[#allocation2 + $0x54] sm:$0xf]
        %v918 = vld [vmem:[#allocation2 + $0x58] sm:$0xf]
        %v919 = vld [vmem:[#allocation2 + $0x5c] sm:$0x1]
        %v920 = vld [vmem:[#allocation2 + $0x60] sm:$0xf]
        %v921 = vld [vmem:[#allocation2 + $0x64] sm:$0xf]
        %v922 = vld [vmem:[#allocation2 + $0x68] sm:$0x1]
        %v923 = vld [vmem:[#allocation2 + $0x6c] sm:$0xf]
        %v924 = vld [vmem:[#allocation2 + $0x70] sm:$0xf]
        %v925 = vld [vmem:[#allocation2 + $0x74] sm:$0x1]
        %v926 = vld [vmem:[#allocation2 + $0x78] sm:$0xf]
        %v927 = vld [vmem:[#allocation2 + $0x7c] sm:$0xf]
        %v928 = vld [vmem:[#allocation2 + $0x80] sm:$0x1]
        %v929 = vld [vmem:[#allocation2 + $0x84] sm:$0xf]
        %v930 = vld [vmem:[#allocation2 + $0x88] sm:$0xf]
        %v931 = vld [vmem:[#allocation2 + $0x8c] sm:$0x1]
        %v932 = vld [vmem:[#allocation2 + $0x90] sm:$0xf]
        %v933 = vld [vmem:[#allocation2 + $0x94] sm:$0xf]
        %v934 = vld [vmem:[#allocation2 + $0x98] sm:$0x1]
        %v935 = vld [vmem:[#allocation2 + $0x9c] sm:$0xf]
        %v936 = vld [vmem:[#allocation2 + $0xa0] sm:$0xf]
        %v937 = vld [vmem:[#allocation2 + $0xa4] sm:$0x1]
        %v938 = vld [vmem:[#allocation2 + $0xa8] sm:$0xf]
        %v939 = vld [vmem:[#allocation2 + $0xac] sm:$0xf]
        %v940 = vld [vmem:[#allocation2 + $0xb0] sm:$0x1]
        %v941 = vld [vmem:[#allocation2 + $0xb4] sm:$0xf]
        %v942 = vld [vmem:[#allocation2 + $0xb8] sm:$0xf]
        %v943 = vld [vmem:[#allocation2 + $0xbc] sm:$0x1]
        %v944 = vld [vmem:[#allocation2 + $0xc0] sm:$0xf]
        %v945 = vld [vmem:[#allocation2 + $0xc4] sm:$0xf]
        %v946 = vld [vmem:[#allocation2 + $0xc8] sm:$0x1]
        %v947 = vld [vmem:[#allocation2 + $0xcc] sm:$0xf]
        %v948 = vld [vmem:[#allocation2 + $0xd0] sm:$0xf]
        %v949 = vld [vmem:[#allocation2 + $0xd4] sm:$0x1]
        %v982 = vunpack.c.l.b16 %v896
        %v983 = vunpack.c.l.b16 %v897
        %v984 = vunpack.c.l.b16 %v899
        %v985 = vunpack.c.l.b16 %v900
        %v986 = vunpack.c.l.b16 %v902
        %v987 = vunpack.c.l.b16 %v903
        %v988 = vunpack.c.l.b16 %v905
        %v989 = vunpack.c.l.b16 %v906
        %v990 = vunpack.c.l.b16 %v908
        %v991 = vunpack.c.l.b16 %v909
        %v992 = vunpack.c.l.b16 %v911
        %v993 = vunpack.c.l.b16 %v912
        %v994 = vunpack.c.l.b16 %v914
        %v995 = vunpack.c.l.b16 %v915
        %v996 = vunpack.c.l.b16 %v917
        %v997 = vunpack.c.l.b16 %v918
        %v998 = vunpack.c.l.b16 %v920
        %v999 = vunpack.c.l.b16 %v921
        %v1000 = vunpack.c.l.b16 %v923
        %v1001 = vunpack.c.l.b16 %v924
        %v1002 = vunpack.c.l.b16 %v926
        %v1003 = vunpack.c.l.b16 %v927
        %v1004 = vunpack.c.l.b16 %v929
        %v1005 = vunpack.c.l.b16 %v930
        %v1006 = vunpack.c.l.b16 %v932
        %v1007 = vunpack.c.l.b16 %v933
        %v1008 = vunpack.c.l.b16 %v935
        %v1009 = vunpack.c.l.b16 %v936
        %v1010 = vunpack.c.l.b16 %v938
        %v1011 = vunpack.c.l.b16 %v939
        %v1012 = vunpack.c.l.b16 %v941
        %v1013 = vunpack.c.l.b16 %v942
        %v1014 = vpack.c.b16 %v983, %v982
        %v1015 = vpack.c.b16 %v985, %v984
        %v1016 = vpack.c.b16 %v987, %v986
        %v1017 = vpack.c.b16 %v989, %v988
        %v1018 = vpack.c.b16 %v991, %v990
        %v1019 = vpack.c.b16 %v993, %v992
        %v1020 = vpack.c.b16 %v995, %v994
        %v1021 = vpack.c.b16 %v997, %v996
        %v1022 = vpack.c.b16 %v999, %v998
        %v1023 = vpack.c.b16 %v1001, %v1000
        %v1024 = vpack.c.b16 %v1003, %v1002
        %v1025 = vpack.c.b16 %v1005, %v1004
        %v1026 = vpack.c.b16 %v1007, %v1006
        %v1027 = vpack.c.b16 %v1009, %v1008
        %v1028 = vpack.c.b16 %v1011, %v1010
        %v1029 = vpack.c.b16 %v1013, %v1012
        %v1032 = vunpack.c.l.b16 %v944
        %v1033 = vunpack.c.l.b16 %v945
        %v1034 = vpack.c.b16 %v1033, %v1032
        %1035 = vrot.lane.b32.xlu0 %v1015, 16
        %v1036 = vpop.permute.xlu0 %1035
        %1037 = vrot.lane.b32.xlu0 %v1016, 16
        %v1038 = vpop.permute.xlu0 %1037
        %1039 = vrot.lane.b32.xlu0 %v1017, 16
        %v1040 = vpop.permute.xlu0 %1039
        %1041 = vrot.lane.b32.xlu0 %v1018, 16
        %v1042 = vpop.permute.xlu0 %1041
        %1043 = vrot.lane.b32.xlu0 %v1019, 16
        %v1044 = vpop.permute.xlu0 %1043
        %1045 = vrot.lane.b32.xlu0 %v1020, 16
        %v1046 = vpop.permute.xlu0 %1045
        %1047 = vrot.lane.b32.xlu0 %v1021, 16
        %v1048 = vpop.permute.xlu0 %1047
        %1049 = vrot.lane.b32.xlu0 %v1022, 16
        %v1050 = vpop.permute.xlu0 %1049
        %1051 = vrot.lane.b32.xlu0 %v1023, 16
        %v1052 = vpop.permute.xlu0 %1051
        %1053 = vrot.lane.b32.xlu0 %v1024, 16
        %v1054 = vpop.permute.xlu0 %1053
        %1055 = vrot.lane.b32.xlu0 %v1025, 16
        %v1056 = vpop.permute.xlu0 %1055
        %1057 = vrot.lane.b32.xlu0 %v1026, 16
        %v1058 = vpop.permute.xlu0 %1057
        %1059 = vrot.lane.b32.xlu0 %v1027, 16
        %v1060 = vpop.permute.xlu0 %1059
        %1061 = vrot.lane.b32.xlu0 %v1028, 16
        %v1062 = vpop.permute.xlu0 %1061
        %1063 = vrot.lane.b32.xlu0 %v1029, 16
        %v1064 = vpop.permute.xlu0 %1063
        %1065 = vrot.lane.b32.xlu0 %v1034, 16
        %v1066 = vpop.permute.xlu0 %1065
        %v1069 = vunpack.c.l.b16 %v947
        %v1070 = vunpack.c.l.b16 %v948
        %v1071 = vpack.c.b16 %v1070, %v1069
        %1072 = vrot.lane.b32.xlu0 %v1016, 32
        %v1073 = vpop.permute.xlu0 %1072
        %1074 = vrot.lane.b32.xlu0 %v1017, 32
        %v1075 = vpop.permute.xlu0 %1074
        %1076 = vrot.lane.b32.xlu0 %v1018, 32
        %v1077 = vpop.permute.xlu0 %1076
        %1078 = vrot.lane.b32.xlu0 %v1019, 32
        %v1079 = vpop.permute.xlu0 %1078
        %1080 = vrot.lane.b32.xlu0 %v1020, 32
        %v1081 = vpop.permute.xlu0 %1080
        %1082 = vrot.lane.b32.xlu0 %v1021, 32
        %v1083 = vpop.permute.xlu0 %1082
        %1084 = vrot.lane.b32.xlu0 %v1022, 32
        %v1085 = vpop.permute.xlu0 %1084
        %1086 = vrot.lane.b32.xlu0 %v1023, 32
        %v1087 = vpop.permute.xlu0 %1086
        %1088 = vrot.lane.b32.xlu0 %v1024, 32
        %v1089 = vpop.permute.xlu0 %1088
        %1090 = vrot.lane.b32.xlu0 %v1025, 32
        %v1091 = vpop.permute.xlu0 %1090
        %1092 = vrot.lane.b32.xlu0 %v1026, 32
        %v1093 = vpop.permute.xlu0 %1092
        %1094 = vrot.lane.b32.xlu0 %v1027, 32
        %v1095 = vpop.permute.xlu0 %1094
        %1096 = vrot.lane.b32.xlu0 %v1028, 32
        %v1097 = vpop.permute.xlu0 %1096
        %1098 = vrot.lane.b32.xlu0 %v1029, 32
        %v1099 = vpop.permute.xlu0 %1098
        %1100 = vrot.lane.b32.xlu0 %v1034, 32
        %v1101 = vpop.permute.xlu0 %1100
        %1102 = vrot.lane.b32.xlu0 %v1071, 32
        %v1103 = vpop.permute.xlu0 %1102
        %vm1104 = vcmask 130048
        %v1107 = vsel %vm1104, %v1014, %v1036
        %v1110 = vsel %vm1104, %v1015, %v1038
        %v1113 = vsel %vm1104, %v1016, %v1040
        %v1116 = vsel %vm1104, %v1017, %v1042
        %v1119 = vsel %vm1104, %v1018, %v1044
        %v1122 = vsel %vm1104, %v1019, %v1046
        %v1125 = vsel %vm1104, %v1020, %v1048
        %v1128 = vsel %vm1104, %v1021, %v1050
        %v1131 = vsel %vm1104, %v1022, %v1052
        %v1134 = vsel %vm1104, %v1023, %v1054
        %v1137 = vsel %vm1104, %v1024, %v1056
        %v1140 = vsel %vm1104, %v1025, %v1058
        %v1143 = vsel %vm1104, %v1026, %v1060
        %v1146 = vsel %vm1104, %v1027, %v1062
        %v1149 = vsel %vm1104, %v1028, %v1064
        %v1152 = vsel %vm1104, %v1029, %v1066
        %vm1153 = vcmask 261120
        %v1155 = vsel %vm1153, %v1107, %v1073
        %v1157 = vsel %vm1153, %v1110, %v1075
        %v1159 = vsel %vm1153, %v1113, %v1077
        %v1161 = vsel %vm1153, %v1116, %v1079
        %v1163 = vsel %vm1153, %v1119, %v1081
        %v1165 = vsel %vm1153, %v1122, %v1083
        %v1167 = vsel %vm1153, %v1125, %v1085
        %v1169 = vsel %vm1153, %v1128, %v1087
        %v1171 = vsel %vm1153, %v1131, %v1089
        %v1173 = vsel %vm1153, %v1134, %v1091
        %v1175 = vsel %vm1153, %v1137, %v1093
        %v1177 = vsel %vm1153, %v1140, %v1095
        %v1179 = vsel %vm1153, %v1143, %v1097
        %v1181 = vsel %vm1153, %v1146, %v1099
        %v1183 = vsel %vm1153, %v1149, %v1101
        %v1185 = vsel %vm1153, %v1152, %v1103
        %v1186 = vld [vmem:[#allocation3] sm:$0xff]
        %v1187 = vld [vmem:[#allocation3 + $0x8] sm:$0xff]
        %v1188 = vld [vmem:[#allocation3 + $0x10] sm:$0xff]
        %v1189 = vld [vmem:[#allocation3 + $0x18] sm:$0xff]
        %v1190 = vld [vmem:[#allocation3 + $0x20] sm:$0xff]
        %v1191 = vld [vmem:[#allocation3 + $0x28] sm:$0xff]
        %v1192 = vld [vmem:[#allocation3 + $0x30] sm:$0xff]
        %v1193 = vld [vmem:[#allocation3 + $0x38] sm:$0xff]
        %v1194 = vld [vmem:[#allocation3 + $0x40] sm:$0xff]
        %v1195 = vld [vmem:[#allocation3 + $0x48] sm:$0xff]
        %v1196 = vld [vmem:[#allocation3 + $0x50] sm:$0xff]
        %v1197 = vld [vmem:[#allocation3 + $0x58] sm:$0xff]
        %v1198 = vld [vmem:[#allocation3 + $0x60] sm:$0xff]
        %v1199 = vld [vmem:[#allocation3 + $0x68] sm:$0xff]
        %v1200 = vld [vmem:[#allocation3 + $0x70] sm:$0xff]
        %v1201 = vld [vmem:[#allocation3 + $0x78] sm:$0xff]
        %v1202 = vld [vmem:[#allocation3 + $0x80] sm:$0xff]
        %v1203 = vld [vmem:[#allocation3 + $0x88] sm:$0xff]
        %v1204 = vld [vmem:[#allocation3 + $0x90] sm:$0xff]
        %v1205 = vld [vmem:[#allocation3 + $0x98] sm:$0xff]
        %v1206 = vld [vmem:[#allocation3 + $0xa0] sm:$0xff]
        %v1207 = vld [vmem:[#allocation3 + $0xa8] sm:$0xff]
        %v1208 = vld [vmem:[#allocation3 + $0xb0] sm:$0xff]
        %v1209 = vld [vmem:[#allocation3 + $0xb8] sm:$0xff]
        %v1210 = vld [vmem:[#allocation3 + $0xc0] sm:$0xff]
        %v1211 = vld [vmem:[#allocation3 + $0xc8] sm:$0xff]
        %v1212 = vld [vmem:[#allocation3 + $0xd0] sm:$0xff]
        %v1213 = vld [vmem:[#allocation3 + $0xd8] sm:$0xff]
        %v1214 = vld [vmem:[#allocation3 + $0xe0] sm:$0xff]
        %v1215 = vld [vmem:[#allocation3 + $0xe8] sm:$0xff]
        %v1216 = vld [vmem:[#allocation3 + $0xf0] sm:$0xff]
        %v1217 = vld [vmem:[#allocation3 + $0xf8] sm:$0xff]
        %s1218 = smul.u32 %s24, 3
        %s1219 = smul.u32 %s1218, 6
        %s1220 = smul.addr %s1219, 4
        %s1221 = scalar_lea.vmem %s1, %s1220
        %v1222 = vld [vmem:[%s1221] sm:$0xf]
        %v1223 = vld [vmem:[%s1221 + $0x4] sm:$0xf]
        %v1224 = vld [vmem:[%s1221 + $0x8] sm:$0xf]
        %v1225 = vld [vmem:[%s1221 + $0xc] sm:$0xf]
        %v1226 = vld [vmem:[%s1221 + $0x10] sm:$0xf]
        %v1227 = vld [vmem:[%s1221 + $0x14] sm:$0xf]
        %v1234 = vunpack.c.l.b16 %v1222
        %v1235 = vunpack.c.l.b16 %v1223
        %v1236 = vunpack.c.l.b16 %v1224
        %v1237 = vunpack.c.l.b16 %v1225
        %v1238 = vunpack.c.l.b16 %v1226
        %v1239 = vunpack.c.l.b16 %v1227
        %v1240 = vpack.c.b16 %v1235, %v1234
        %v1241 = vpack.c.b16 %v1237, %v1236
        %v1242 = vpack.c.b16 %v1239, %v1238
        %vm1246 = vcmask 392192
        %v1247 = vsel %vm1246, %v1155, 0
        %v1249 = vsel %vm1246, %v1157, 0
        %v1251 = vsel %vm1246, %v1159, 0
        %v1253 = vsel %vm1246, %v1161, 0
        %v1255 = vsel %vm1246, %v1163, 0
        %v1257 = vsel %vm1246, %v1165, 0
        %v1259 = vsel %vm1246, %v1167, 0
        %v1261 = vsel %vm1246, %v1169, 0
        %v1263 = vsel %vm1246, %v1171, 0
        %v1265 = vsel %vm1246, %v1173, 0
        %v1267 = vsel %vm1246, %v1175, 0
        %v1269 = vsel %vm1246, %v1177, 0
        %v1271 = vsel %vm1246, %v1179, 0
        %v1273 = vsel %vm1246, %v1181, 0
        %v1275 = vsel %vm1246, %v1183, 0
        %v1277 = vsel %vm1246, %v1185, 0
        %1279 = vmatprep.subr.bf16.mxu0 0
        %1280 = vmatpush1.bf16.msra.mxu0 %v1240
        %1281 = vmatprep.subr.bf16.mxu0 0
        %1282 = vmatpush1.bf16.msra.mxu0 %v1241
        %1283 = vmatprep.subr.bf16.mxu0 0
        %1284 = vmatpush1.bf16.msra.mxu0 %v1242
        %1285 = vmatprep.subr.bf16.mxu0 0
        %1286 = vmatpush1.bf16.msra.mxu0 0
        %1287 = vmatprep.subr.bf16.mxu0 0
        %1288 = vmatpush1.bf16.msra.mxu0 0
        %1289 = vmatprep.subr.bf16.mxu0 0
        %1290 = vmatpush1.bf16.msra.mxu0 0
        %1291 = vmatprep.subr.bf16.mxu0 0
        %1292 = vmatpush1.bf16.msra.mxu0 0
        %1293 = vmatprep.subr.bf16.mxu0 0
        %1294 = vmatpush1.bf16.msra.mxu0 0
        %1295 = vmatprep.subr.bf16.mxu0 0
        %1296 = vmatpush1.bf16.msra.mxu0 0
        %1297 = vmatprep.subr.bf16.mxu0 0
        %1298 = vmatpush1.bf16.msra.mxu0 0
        %1299 = vmatprep.subr.bf16.mxu0 0
        %1300 = vmatpush1.bf16.msra.mxu0 0
        %1301 = vmatprep.subr.bf16.mxu0 0
        %1302 = vmatpush1.bf16.msra.mxu0 0
        %1303 = vmatprep.subr.bf16.mxu0 0
        %1304 = vmatpush1.bf16.msra.mxu0 0
        %1305 = vmatprep.subr.bf16.mxu0 0
        %1306 = vmatpush1.bf16.msra.mxu0 0
        %1307 = vmatprep.subr.bf16.mxu0 0
        %1308 = vmatpush1.bf16.msra.mxu0 0
        %1309 = vmatprep.subr.bf16.mxu0 0
        %1310 = vmatpush1.bf16.msra.mxu0 0
        %1311 = vmatprep.mubr.bf16.mxu0 0
        %1312 = vmatmul.mubr.bf16.gmra.mrb[0].mxu0 %v1247
        %v1313 = vpop.f32.mrb[0].mxu0
        %v1314 = vadd.f32 0.0, %v1313
        %v1315 = vpop.f32.mrb[0].mxu0
        %v1316 = vpop.f32.mrb[0].mxu0
        %v1317 = vadd.f32 0.0, %v1316
        %v1318 = vpop.f32.mrb[0].mxu0
        %1319 = vmatprep.mubr.bf16.mxu0 0
        %1320 = vmatmul.mubr.bf16.gmra.mrb[0].mxu0 %v1249
        %v1321 = vpop.f32.mrb[0].mxu0
        %v1322 = vadd.f32 0.0, %v1321
        %v1323 = vpop.f32.mrb[0].mxu0
        %v1324 = vpop.f32.mrb[0].mxu0
        %v1325 = vadd.f32 0.0, %v1324
        %v1326 = vpop.f32.mrb[0].mxu0
        %1327 = vmatprep.mubr.bf16.mxu0 0
        %1328 = vmatmul.mubr.bf16.gmra.mrb[0].mxu0 %v1251
        %v1329 = vpop.f32.mrb[0].mxu0
        %v1330 = vadd.f32 0.0, %v1329
        %v1331 = vpop.f32.mrb[0].mxu0
        %v1332 = vpop.f32.mrb[0].mxu0
        %v1333 = vadd.f32 0.0, %v1332
        %v1334 = vpop.f32.mrb[0].mxu0
        %1335 = vmatprep.mubr.bf16.mxu0 0
        %1336 = vmatmul.mubr.bf16.gmra.mrb[0].mxu0 %v1253
        %v1337 = vpop.f32.mrb[0].mxu0
        %v1338 = vadd.f32 0.0, %v1337
        %v1339 = vpop.f32.mrb[0].mxu0
        %v1340 = vpop.f32.mrb[0].mxu0
        %v1341 = vadd.f32 0.0, %v1340
        %v1342 = vpop.f32.mrb[0].mxu0
        %1343 = vmatprep.mubr.bf16.mxu0 0
        %1344 = vmatmul.mubr.bf16.gmra.mrb[0].mxu0 %v1255
        %v1345 = vpop.f32.mrb[0].mxu0
        %v1346 = vadd.f32 0.0, %v1345
        %v1347 = vpop.f32.mrb[0].mxu0
        %v1348 = vpop.f32.mrb[0].mxu0
        %v1349 = vadd.f32 0.0, %v1348
        %v1350 = vpop.f32.mrb[0].mxu0
        %1351 = vmatprep.mubr.bf16.mxu0 0
        %1352 = vmatmul.mubr.bf16.gmra.mrb[0].mxu0 %v1257
        %v1353 = vpop.f32.mrb[0].mxu0
        %v1354 = vadd.f32 0.0, %v1353
        %v1355 = vpop.f32.mrb[0].mxu0
        %v1356 = vpop.f32.mrb[0].mxu0
        %v1357 = vadd.f32 0.0, %v1356
        %v1358 = vpop.f32.mrb[0].mxu0
        %1359 = vmatprep.mubr.bf16.mxu0 0
        %1360 = vmatmul.mubr.bf16.gmra.mrb[0].mxu0 %v1259
        %v1361 = vpop.f32.mrb[0].mxu0
        %v1362 = vadd.f32 0.0, %v1361
        %v1363 = vpop.f32.mrb[0].mxu0
        %v1364 = vpop.f32.mrb[0].mxu0
        %v1365 = vadd.f32 0.0, %v1364
        %v1366 = vpop.f32.mrb[0].mxu0
        %1367 = vmatprep.mubr.bf16.mxu0 0
        %1368 = vmatmul.mubr.bf16.gmra.mrb[0].mxu0 %v1261
        %v1369 = vpop.f32.mrb[0].mxu0
        %v1370 = vadd.f32 0.0, %v1369
        %v1371 = vpop.f32.mrb[0].mxu0
        %v1372 = vpop.f32.mrb[0].mxu0
        %v1373 = vadd.f32 0.0, %v1372
        %v1374 = vpop.f32.mrb[0].mxu0
        %1375 = vmatprep.mubr.bf16.mxu0 0
        %1376 = vmatmul.mubr.bf16.gmra.mrb[0].mxu0 %v1263
        %v1377 = vpop.f32.mrb[0].mxu0
        %v1378 = vadd.f32 0.0, %v1377
        %v1379 = vpop.f32.mrb[0].mxu0
        %v1380 = vpop.f32.mrb[0].mxu0
        %v1381 = vadd.f32 0.0, %v1380
        %v1382 = vpop.f32.mrb[0].mxu0
        %1383 = vmatprep.mubr.bf16.mxu0 0
        %1384 = vmatmul.mubr.bf16.gmra.mrb[0].mxu0 %v1265
        %v1385 = vpop.f32.mrb[0].mxu0
        %v1386 = vadd.f32 0.0, %v1385
        %v1387 = vpop.f32.mrb[0].mxu0
        %v1388 = vpop.f32.mrb[0].mxu0
        %v1389 = vadd.f32 0.0, %v1388
        %v1390 = vpop.f32.mrb[0].mxu0
        %1391 = vmatprep.mubr.bf16.mxu0 0
        %1392 = vmatmul.mubr.bf16.gmra.mrb[0].mxu0 %v1267
        %v1393 = vpop.f32.mrb[0].mxu0
        %v1394 = vadd.f32 0.0, %v1393
        %v1395 = vpop.f32.mrb[0].mxu0
        %v1396 = vpop.f32.mrb[0].mxu0
        %v1397 = vadd.f32 0.0, %v1396
        %v1398 = vpop.f32.mrb[0].mxu0
        %1399 = vmatprep.mubr.bf16.mxu0 0
        %1400 = vmatmul.mubr.bf16.gmra.mrb[0].mxu0 %v1269
        %v1401 = vpop.f32.mrb[0].mxu0
        %v1402 = vadd.f32 0.0, %v1401
        %v1403 = vpop.f32.mrb[0].mxu0
        %v1404 = vpop.f32.mrb[0].mxu0
        %v1405 = vadd.f32 0.0, %v1404
        %v1406 = vpop.f32.mrb[0].mxu0
        %1407 = vmatprep.mubr.bf16.mxu0 0
        %1408 = vmatmul.mubr.bf16.gmra.mrb[0].mxu0 %v1271
        %v1409 = vpop.f32.mrb[0].mxu0
        %v1410 = vadd.f32 0.0, %v1409
        %v1411 = vpop.f32.mrb[0].mxu0
        %v1412 = vpop.f32.mrb[0].mxu0
        %v1413 = vadd.f32 0.0, %v1412
        %v1414 = vpop.f32.mrb[0].mxu0
        %1415 = vmatprep.mubr.bf16.mxu0 0
        %1416 = vmatmul.mubr.bf16.gmra.mrb[0].mxu0 %v1273
        %v1417 = vpop.f32.mrb[0].mxu0
        %v1418 = vadd.f32 0.0, %v1417
        %v1419 = vpop.f32.mrb[0].mxu0
        %v1420 = vpop.f32.mrb[0].mxu0
        %v1421 = vadd.f32 0.0, %v1420
        %v1422 = vpop.f32.mrb[0].mxu0
        %1423 = vmatprep.mubr.bf16.mxu0 0
        %1424 = vmatmul.mubr.bf16.gmra.mrb[0].mxu0 %v1275
        %v1425 = vpop.f32.mrb[0].mxu0
        %v1426 = vadd.f32 0.0, %v1425
        %v1427 = vpop.f32.mrb[0].mxu0
        %v1428 = vpop.f32.mrb[0].mxu0
        %v1429 = vadd.f32 0.0, %v1428
        %v1430 = vpop.f32.mrb[0].mxu0
        %1431 = vmatprep.mubr.bf16.mxu0 0
        %1432 = vmatmul.mubr.bf16.gmra.mrb[0].mxu0 %v1277
        %v1433 = vpop.f32.mrb[0].mxu0
        %v1434 = vadd.f32 0.0, %v1433
        %v1435 = vpop.f32.mrb[0].mxu0
        %v1436 = vpop.f32.mrb[0].mxu0
        %v1437 = vadd.f32 0.0, %v1436
        %v1438 = vpop.f32.mrb[0].mxu0
        %1439 = vdwg.mxu0
        %v1440 = vadd.f32 %v1186, %v1314
        %v1441 = vadd.f32 %v1187, %v1317
        %v1442 = vadd.f32 %v1188, %v1322
        %v1443 = vadd.f32 %v1189, %v1325
        %v1444 = vadd.f32 %v1190, %v1330
        %v1445 = vadd.f32 %v1191, %v1333
        %v1446 = vadd.f32 %v1192, %v1338
        %v1447 = vadd.f32 %v1193, %v1341
        %v1448 = vadd.f32 %v1194, %v1346
        %v1449 = vadd.f32 %v1195, %v1349
        %v1450 = vadd.f32 %v1196, %v1354
        %v1451 = vadd.f32 %v1197, %v1357
        %v1452 = vadd.f32 %v1198, %v1362
        %v1453 = vadd.f32 %v1199, %v1365
        %v1454 = vadd.f32 %v1200, %v1370
        %v1455 = vadd.f32 %v1201, %v1373
        %v1456 = vadd.f32 %v1202, %v1378
        %v1457 = vadd.f32 %v1203, %v1381
        %v1458 = vadd.f32 %v1204, %v1386
        %v1459 = vadd.f32 %v1205, %v1389
        %v1460 = vadd.f32 %v1206, %v1394
        %v1461 = vadd.f32 %v1207, %v1397
        %v1462 = vadd.f32 %v1208, %v1402
        %v1463 = vadd.f32 %v1209, %v1405
        %v1464 = vadd.f32 %v1210, %v1410
        %v1465 = vadd.f32 %v1211, %v1413
        %v1466 = vadd.f32 %v1212, %v1418
        %v1467 = vadd.f32 %v1213, %v1421
        %v1468 = vadd.f32 %v1214, %v1426
        %v1469 = vadd.f32 %v1215, %v1429
        %v1470 = vadd.f32 %v1216, %v1434
        %v1471 = vadd.f32 %v1217, %v1437
        %1472 = vst.msk [vmem:[#allocation3] sm:$0xff] %vm1153, %v1440
        %1473 = vst.msk [vmem:[#allocation3 + $0x8] sm:$0xff] %vm1153, %v1441
        %1474 = vst.msk [vmem:[#allocation3 + $0x10] sm:$0xff] %vm1153, %v1442
        %1475 = vst.msk [vmem:[#allocation3 + $0x18] sm:$0xff] %vm1153, %v1443
        %1476 = vst.msk [vmem:[#allocation3 + $0x20] sm:$0xff] %vm1153, %v1444
        %1477 = vst.msk [vmem:[#allocation3 + $0x28] sm:$0xff] %vm1153, %v1445
        %1478 = vst.msk [vmem:[#allocation3 + $0x30] sm:$0xff] %vm1153, %v1446
        %1479 = vst.msk [vmem:[#allocation3 + $0x38] sm:$0xff] %vm1153, %v1447
        %1480 = vst.msk [vmem:[#allocation3 + $0x40] sm:$0xff] %vm1153, %v1448
        %1481 = vst.msk [vmem:[#allocation3 + $0x48] sm:$0xff] %vm1153, %v1449
        %1482 = vst.msk [vmem:[#allocation3 + $0x50] sm:$0xff] %vm1153, %v1450
        %1483 = vst.msk [vmem:[#allocation3 + $0x58] sm:$0xff] %vm1153, %v1451
        %1484 = vst.msk [vmem:[#allocation3 + $0x60] sm:$0xff] %vm1153, %v1452
        %1485 = vst.msk [vmem:[#allocation3 + $0x68] sm:$0xff] %vm1153, %v1453
        %1486 = vst.msk [vmem:[#allocation3 + $0x70] sm:$0xff] %vm1153, %v1454
        %1487 = vst.msk [vmem:[#allocation3 + $0x78] sm:$0xff] %vm1153, %v1455
        %1488 = vst.msk [vmem:[#allocation3 + $0x80] sm:$0xff] %vm1153, %v1456
        %1489 = vst.msk [vmem:[#allocation3 + $0x88] sm:$0xff] %vm1153, %v1457
        %1490 = vst.msk [vmem:[#allocation3 + $0x90] sm:$0xff] %vm1153, %v1458
        %1491 = vst.msk [vmem:[#allocation3 + $0x98] sm:$0xff] %vm1153, %v1459
        %1492 = vst.msk [vmem:[#allocation3 + $0xa0] sm:$0xff] %vm1153, %v1460
        %1493 = vst.msk [vmem:[#allocation3 + $0xa8] sm:$0xff] %vm1153, %v1461
        %1494 = vst.msk [vmem:[#allocation3 + $0xb0] sm:$0xff] %vm1153, %v1462
        %1495 = vst.msk [vmem:[#allocation3 + $0xb8] sm:$0xff] %vm1153, %v1463
        %1496 = vst.msk [vmem:[#allocation3 + $0xc0] sm:$0xff] %vm1153, %v1464
        %1497 = vst.msk [vmem:[#allocation3 + $0xc8] sm:$0xff] %vm1153, %v1465
        %1498 = vst.msk [vmem:[#allocation3 + $0xd0] sm:$0xff] %vm1153, %v1466
        %1499 = vst.msk [vmem:[#allocation3 + $0xd8] sm:$0xff] %vm1153, %v1467
        %1500 = vst.msk [vmem:[#allocation3 + $0xe0] sm:$0xff] %vm1153, %v1468
        %1501 = vst.msk [vmem:[#allocation3 + $0xe8] sm:$0xff] %vm1153, %v1469
        %1502 = vst.msk [vmem:[#allocation3 + $0xf0] sm:$0xff] %vm1153, %v1470
        %1503 = vst.msk [vmem:[#allocation3 + $0xf8] sm:$0xff] %vm1153, %v1471
        %vm1504 = vsmask.f32 3328
        %vm1505 = vsmask.f32 7440
        %vm1506 = vmor %vm1504, %vm1505
        %v1508 = vshrl.u32 %v896, 16
        %v1510 = vrot.slane %v1508, 4
        %v1511 = vshll.u32 %v896, 16
        %v1513 = vrot.slane %v1511, 5
        %v1514 = vor.u32 %v1510, %v1513
        %v1515 = vrot.slane %v1514, 4
        %v1517 = vshll.u32 %v897, 16
        %v1519 = vrot.slane %v1517, 5
        %v1520 = vsel %vm1506, %v1515, %v1519
        %v1521 = vshrl.u32 %v897, 16
        %v1523 = vrot.slane %v1521, 4
        %v1524 = vor.u32 %v1523, %v1519
        %v1525 = vrot.slane %v1524, 4
        %v1527 = vshll.u32 %v898, 16
        %v1529 = vrot.slane %v1527, 5
        %v1530 = vsel %vm1506, %v1525, %v1529
        %v1532 = vshrl.u32 %v899, 16
        %v1534 = vrot.slane %v1532, 4
        %v1535 = vshll.u32 %v899, 16
        %v1537 = vrot.slane %v1535, 5
        %v1538 = vor.u32 %v1534, %v1537
        %v1539 = vrot.slane %v1538, 4
        %v1541 = vshll.u32 %v900, 16
        %v1543 = vrot.slane %v1541, 5
        %v1544 = vsel %vm1506, %v1539, %v1543
        %v1545 = vshrl.u32 %v900, 16
        %v1547 = vrot.slane %v1545, 4
        %v1548 = vor.u32 %v1547, %v1543
        %v1549 = vrot.slane %v1548, 4
        %v1551 = vshll.u32 %v901, 16
        %v1553 = vrot.slane %v1551, 5
        %v1554 = vsel %vm1506, %v1549, %v1553
        %v1556 = vshrl.u32 %v902, 16
        %v1558 = vrot.slane %v1556, 4
        %v1559 = vshll.u32 %v902, 16
        %v1561 = vrot.slane %v1559, 5
        %v1562 = vor.u32 %v1558, %v1561
        %v1563 = vrot.slane %v1562, 4
        %v1565 = vshll.u32 %v903, 16
        %v1567 = vrot.slane %v1565, 5
        %v1568 = vsel %vm1506, %v1563, %v1567
        %v1569 = vshrl.u32 %v903, 16
        %v1571 = vrot.slane %v1569, 4
        %v1572 = vor.u32 %v1571, %v1567
        %v1573 = vrot.slane %v1572, 4
        %v1575 = vshll.u32 %v904, 16
        %v1577 = vrot.slane %v1575, 5
        %v1578 = vsel %vm1506, %v1573, %v1577
        %v1580 = vshrl.u32 %v905, 16
        %v1582 = vrot.slane %v1580, 4
        %v1583 = vshll.u32 %v905, 16
        %v1585 = vrot.slane %v1583, 5
        %v1586 = vor.u32 %v1582, %v1585
        %v1587 = vrot.slane %v1586, 4
        %v1589 = vshll.u32 %v906, 16
        %v1591 = vrot.slane %v1589, 5
        %v1592 = vsel %vm1506, %v1587, %v1591
        %v1593 = vshrl.u32 %v906, 16
        %v1595 = vrot.slane %v1593, 4
        %v1596 = vor.u32 %v1595, %v1591
        %v1597 = vrot.slane %v1596, 4
        %v1599 = vshll.u32 %v907, 16
        %v1601 = vrot.slane %v1599, 5
        %v1602 = vsel %vm1506, %v1597, %v1601
        %v1604 = vshrl.u32 %v908, 16
        %v1606 = vrot.slane %v1604, 4
        %v1607 = vshll.u32 %v908, 16
        %v1609 = vrot.slane %v1607, 5
        %v1610 = vor.u32 %v1606, %v1609
        %v1611 = vrot.slane %v1610, 4
        %v1613 = vshll.u32 %v909, 16
        %v1615 = vrot.slane %v1613, 5
        %v1616 = vsel %vm1506, %v1611, %v1615
        %v1617 = vshrl.u32 %v909, 16
        %v1619 = vrot.slane %v1617, 4
        %v1620 = vor.u32 %v1619, %v1615
        %v1621 = vrot.slane %v1620, 4
        %v1623 = vshll.u32 %v910, 16
        %v1625 = vrot.slane %v1623, 5
        %v1626 = vsel %vm1506, %v1621, %v1625
        %v1628 = vshrl.u32 %v911, 16
        %v1630 = vrot.slane %v1628, 4
        %v1631 = vshll.u32 %v911, 16
        %v1633 = vrot.slane %v1631, 5
        %v1634 = vor.u32 %v1630, %v1633
        %v1635 = vrot.slane %v1634, 4
        %v1637 = vshll.u32 %v912, 16
        %v1639 = vrot.slane %v1637, 5
        %v1640 = vsel %vm1506, %v1635, %v1639
        %v1641 = vshrl.u32 %v912, 16
        %v1643 = vrot.slane %v1641, 4
        %v1644 = vor.u32 %v1643, %v1639
        %v1645 = vrot.slane %v1644, 4
        %v1647 = vshll.u32 %v913, 16
        %v1649 = vrot.slane %v1647, 5
        %v1650 = vsel %vm1506, %v1645, %v1649
        %v1652 = vshrl.u32 %v914, 16
        %v1654 = vrot.slane %v1652, 4
        %v1655 = vshll.u32 %v914, 16
        %v1657 = vrot.slane %v1655, 5
        %v1658 = vor.u32 %v1654, %v1657
        %v1659 = vrot.slane %v1658, 4
        %v1661 = vshll.u32 %v915, 16
        %v1663 = vrot.slane %v1661, 5
        %v1664 = vsel %vm1506, %v1659, %v1663
        %v1665 = vshrl.u32 %v915, 16
        %v1667 = vrot.slane %v1665, 4
        %v1668 = vor.u32 %v1667, %v1663
        %v1669 = vrot.slane %v1668, 4
        %v1671 = vshll.u32 %v916, 16
        %v1673 = vrot.slane %v1671, 5
        %v1674 = vsel %vm1506, %v1669, %v1673
        %v1676 = vshrl.u32 %v917, 16
        %v1678 = vrot.slane %v1676, 4
        %v1679 = vshll.u32 %v917, 16
        %v1681 = vrot.slane %v1679, 5
        %v1682 = vor.u32 %v1678, %v1681
        %v1683 = vrot.slane %v1682, 4
        %v1685 = vshll.u32 %v918, 16
        %v1687 = vrot.slane %v1685, 5
        %v1688 = vsel %vm1506, %v1683, %v1687
        %v1689 = vshrl.u32 %v918, 16
        %v1691 = vrot.slane %v1689, 4
        %v1692 = vor.u32 %v1691, %v1687
        %v1693 = vrot.slane %v1692, 4
        %v1695 = vshll.u32 %v919, 16
        %v1697 = vrot.slane %v1695, 5
        %v1698 = vsel %vm1506, %v1693, %v1697
        %v1700 = vshrl.u32 %v920, 16
        %v1702 = vrot.slane %v1700, 4
        %v1703 = vshll.u32 %v920, 16
        %v1705 = vrot.slane %v1703, 5
        %v1706 = vor.u32 %v1702, %v1705
        %v1707 = vrot.slane %v1706, 4
        %v1709 = vshll.u32 %v921, 16
        %v1711 = vrot.slane %v1709, 5
        %v1712 = vsel %vm1506, %v1707, %v1711
        %v1713 = vshrl.u32 %v921, 16
        %v1715 = vrot.slane %v1713, 4
        %v1716 = vor.u32 %v1715, %v1711
        %v1717 = vrot.slane %v1716, 4
        %v1719 = vshll.u32 %v922, 16
        %v1721 = vrot.slane %v1719, 5
        %v1722 = vsel %vm1506, %v1717, %v1721
        %v1724 = vshrl.u32 %v923, 16
        %v1726 = vrot.slane %v1724, 4
        %v1727 = vshll.u32 %v923, 16
        %v1729 = vrot.slane %v1727, 5
        %v1730 = vor.u32 %v1726, %v1729
        %v1731 = vrot.slane %v1730, 4
        %v1733 = vshll.u32 %v924, 16
        %v1735 = vrot.slane %v1733, 5
        %v1736 = vsel %vm1506, %v1731, %v1735
        %v1737 = vshrl.u32 %v924, 16
        %v1739 = vrot.slane %v1737, 4
        %v1740 = vor.u32 %v1739, %v1735
        %v1741 = vrot.slane %v1740, 4
        %v1743 = vshll.u32 %v925, 16
        %v1745 = vrot.slane %v1743, 5
        %v1746 = vsel %vm1506, %v1741, %v1745
        %v1748 = vshrl.u32 %v926, 16
        %v1750 = vrot.slane %v1748, 4
        %v1751 = vshll.u32 %v926, 16
        %v1753 = vrot.slane %v1751, 5
        %v1754 = vor.u32 %v1750, %v1753
        %v1755 = vrot.slane %v1754, 4
        %v1757 = vshll.u32 %v927, 16
        %v1759 = vrot.slane %v1757, 5
        %v1760 = vsel %vm1506, %v1755, %v1759
        %v1761 = vshrl.u32 %v927, 16
        %v1763 = vrot.slane %v1761, 4
        %v1764 = vor.u32 %v1763, %v1759
        %v1765 = vrot.slane %v1764, 4
        %v1767 = vshll.u32 %v928, 16
        %v1769 = vrot.slane %v1767, 5
        %v1770 = vsel %vm1506, %v1765, %v1769
        %v1772 = vshrl.u32 %v929, 16
        %v1774 = vrot.slane %v1772, 4
        %v1775 = vshll.u32 %v929, 16
        %v1777 = vrot.slane %v1775, 5
        %v1778 = vor.u32 %v1774, %v1777
        %v1779 = vrot.slane %v1778, 4
        %v1781 = vshll.u32 %v930, 16
        %v1783 = vrot.slane %v1781, 5
        %v1784 = vsel %vm1506, %v1779, %v1783
        %v1785 = vshrl.u32 %v930, 16
        %v1787 = vrot.slane %v1785, 4
        %v1788 = vor.u32 %v1787, %v1783
        %v1789 = vrot.slane %v1788, 4
        %v1791 = vshll.u32 %v931, 16
        %v1793 = vrot.slane %v1791, 5
        %v1794 = vsel %vm1506, %v1789, %v1793
        %v1796 = vshrl.u32 %v932, 16
        %v1798 = vrot.slane %v1796, 4
        %v1799 = vshll.u32 %v932, 16
        %v1801 = vrot.slane %v1799, 5
        %v1802 = vor.u32 %v1798, %v1801
        %v1803 = vrot.slane %v1802, 4
        %v1805 = vshll.u32 %v933, 16
        %v1807 = vrot.slane %v1805, 5
        %v1808 = vsel %vm1506, %v1803, %v1807
        %v1809 = vshrl.u32 %v933, 16
        %v1811 = vrot.slane %v1809, 4
        %v1812 = vor.u32 %v1811, %v1807
        %v1813 = vrot.slane %v1812, 4
        %v1815 = vshll.u32 %v934, 16
        %v1817 = vrot.slane %v1815, 5
        %v1818 = vsel %vm1506, %v1813, %v1817
        %v1820 = vshrl.u32 %v935, 16
        %v1822 = vrot.slane %v1820, 4
        %v1823 = vshll.u32 %v935, 16
        %v1825 = vrot.slane %v1823, 5
        %v1826 = vor.u32 %v1822, %v1825
        %v1827 = vrot.slane %v1826, 4
        %v1829 = vshll.u32 %v936, 16
        %v1831 = vrot.slane %v1829, 5
        %v1832 = vsel %vm1506, %v1827, %v1831
        %v1833 = vshrl.u32 %v936, 16
        %v1835 = vrot.slane %v1833, 4
        %v1836 = vor.u32 %v1835, %v1831
        %v1837 = vrot.slane %v1836, 4
        %v1839 = vshll.u32 %v937, 16
        %v1841 = vrot.slane %v1839, 5
        %v1842 = vsel %vm1506, %v1837, %v1841
        %v1844 = vshrl.u32 %v938, 16
        %v1846 = vrot.slane %v1844, 4
        %v1847 = vshll.u32 %v938, 16
        %v1849 = vrot.slane %v1847, 5
        %v1850 = vor.u32 %v1846, %v1849
        %v1851 = vrot.slane %v1850, 4
        %v1853 = vshll.u32 %v939, 16
        %v1855 = vrot.slane %v1853, 5
        %v1856 = vsel %vm1506, %v1851, %v1855
        %v1857 = vshrl.u32 %v939, 16
        %v1859 = vrot.slane %v1857, 4
        %v1860 = vor.u32 %v1859, %v1855
        %v1861 = vrot.slane %v1860, 4
        %v1863 = vshll.u32 %v940, 16
        %v1865 = vrot.slane %v1863, 5
        %v1866 = vsel %vm1506, %v1861, %v1865
        %v1868 = vshrl.u32 %v941, 16
        %v1870 = vrot.slane %v1868, 4
        %v1871 = vshll.u32 %v941, 16
        %v1873 = vrot.slane %v1871, 5
        %v1874 = vor.u32 %v1870, %v1873
        %v1875 = vrot.slane %v1874, 4
        %v1877 = vshll.u32 %v942, 16
        %v1879 = vrot.slane %v1877, 5
        %v1880 = vsel %vm1506, %v1875, %v1879
        %v1881 = vshrl.u32 %v942, 16
        %v1883 = vrot.slane %v1881, 4
        %v1884 = vor.u32 %v1883, %v1879
        %v1885 = vrot.slane %v1884, 4
        %v1887 = vshll.u32 %v943, 16
        %v1889 = vrot.slane %v1887, 5
        %v1890 = vsel %vm1506, %v1885, %v1889
        %v1892 = vshrl.u32 %v944, 16
        %v1894 = vrot.slane %v1892, 4
        %v1895 = vshll.u32 %v944, 16
        %v1897 = vrot.slane %v1895, 5
        %v1898 = vor.u32 %v1894, %v1897
        %v1899 = vrot.slane %v1898, 4
        %v1901 = vshll.u32 %v945, 16
        %v1903 = vrot.slane %v1901, 5
        %v1904 = vsel %vm1506, %v1899, %v1903
        %v1905 = vshrl.u32 %v945, 16
        %v1907 = vrot.slane %v1905, 4
        %v1908 = vor.u32 %v1907, %v1903
        %v1909 = vrot.slane %v1908, 4
        %v1911 = vshll.u32 %v946, 16
        %v1913 = vrot.slane %v1911, 5
        %v1914 = vsel %vm1506, %v1909, %v1913
        %v1916 = vshrl.u32 %v947, 16
        %v1918 = vrot.slane %v1916, 4
        %v1919 = vshll.u32 %v947, 16
        %v1921 = vrot.slane %v1919, 5
        %v1922 = vor.u32 %v1918, %v1921
        %v1923 = vrot.slane %v1922, 4
        %v1925 = vshll.u32 %v948, 16
        %v1927 = vrot.slane %v1925, 5
        %v1928 = vsel %vm1506, %v1923, %v1927
        %v1929 = vshrl.u32 %v948, 16
        %v1931 = vrot.slane %v1929, 4
        %v1932 = vor.u32 %v1931, %v1927
        %v1933 = vrot.slane %v1932, 4
        %v1935 = vshll.u32 %v949, 16
        %v1937 = vrot.slane %v1935, 5
        %v1938 = vsel %vm1506, %v1933, %v1937
        %v1939 = vunpack.c.l.b16 %v1520
        %v1940 = vunpack.c.l.b16 %v1530
        %v1941 = vunpack.c.l.b16 %v1544
        %v1942 = vunpack.c.l.b16 %v1554
        %v1943 = vunpack.c.l.b16 %v1568
        %v1944 = vunpack.c.l.b16 %v1578
        %v1945 = vunpack.c.l.b16 %v1592
        %v1946 = vunpack.c.l.b16 %v1602
        %v1947 = vunpack.c.l.b16 %v1616
        %v1948 = vunpack.c.l.b16 %v1626
        %v1949 = vunpack.c.l.b16 %v1640
        %v1950 = vunpack.c.l.b16 %v1650
        %v1951 = vunpack.c.l.b16 %v1664
        %v1952 = vunpack.c.l.b16 %v1674
        %v1953 = vunpack.c.l.b16 %v1688
        %v1954 = vunpack.c.l.b16 %v1698
        %v1955 = vunpack.c.l.b16 %v1712
        %v1956 = vunpack.c.l.b16 %v1722
        %v1957 = vunpack.c.l.b16 %v1736
        %v1958 = vunpack.c.l.b16 %v1746
        %v1959 = vunpack.c.l.b16 %v1760
        %v1960 = vunpack.c.l.b16 %v1770
        %v1961 = vunpack.c.l.b16 %v1784
        %v1962 = vunpack.c.l.b16 %v1794
        %v1963 = vunpack.c.l.b16 %v1808
        %v1964 = vunpack.c.l.b16 %v1818
        %v1965 = vunpack.c.l.b16 %v1832
        %v1966 = vunpack.c.l.b16 %v1842
        %v1967 = vunpack.c.l.b16 %v1856
        %v1968 = vunpack.c.l.b16 %v1866
        %v1969 = vunpack.c.l.b16 %v1880
        %v1970 = vunpack.c.l.b16 %v1890
        %v1971 = vpack.c.b16 %v1940, %v1939
        %v1972 = vpack.c.b16 %v1942, %v1941
        %v1973 = vpack.c.b16 %v1944, %v1943
        %v1974 = vpack.c.b16 %v1946, %v1945
        %v1975 = vpack.c.b16 %v1948, %v1947
        %v1976 = vpack.c.b16 %v1950, %v1949
        %v1977 = vpack.c.b16 %v1952, %v1951
        %v1978 = vpack.c.b16 %v1954, %v1953
        %v1979 = vpack.c.b16 %v1956, %v1955
        %v1980 = vpack.c.b16 %v1958, %v1957
        %v1981 = vpack.c.b16 %v1960, %v1959
        %v1982 = vpack.c.b16 %v1962, %v1961
        %v1983 = vpack.c.b16 %v1964, %v1963
        %v1984 = vpack.c.b16 %v1966, %v1965
        %v1985 = vpack.c.b16 %v1968, %v1967
        %v1986 = vpack.c.b16 %v1970, %v1969
        %v1987 = vunpack.c.l.b16 %v1904
        %v1988 = vunpack.c.l.b16 %v1914
        %v1989 = vpack.c.b16 %v1988, %v1987
        %1990 = vrot.lane.b32.xlu0 %v1972, 16
        %v1991 = vpop.permute.xlu0 %1990
        %1992 = vrot.lane.b32.xlu0 %v1973, 16
        %v1993 = vpop.permute.xlu0 %1992
        %1994 = vrot.lane.b32.xlu0 %v1974, 16
        %v1995 = vpop.permute.xlu0 %1994
        %1996 = vrot.lane.b32.xlu0 %v1975, 16
        %v1997 = vpop.permute.xlu0 %1996
        %1998 = vrot.lane.b32.xlu0 %v1976, 16
        %v1999 = vpop.permute.xlu0 %1998
        %2000 = vrot.lane.b32.xlu0 %v1977, 16
        %v2001 = vpop.permute.xlu0 %2000
        %2002 = vrot.lane.b32.xlu0 %v1978, 16
        %v2003 = vpop.permute.xlu0 %2002
        %2004 = vrot.lane.b32.xlu0 %v1979, 16
        %v2005 = vpop.permute.xlu0 %2004
        %2006 = vrot.lane.b32.xlu0 %v1980, 16
        %v2007 = vpop.permute.xlu0 %2006
        %2008 = vrot.lane.b32.xlu0 %v1981, 16
        %v2009 = vpop.permute.xlu0 %2008
        %2010 = vrot.lane.b32.xlu0 %v1982, 16
        %v2011 = vpop.permute.xlu0 %2010
        %2012 = vrot.lane.b32.xlu0 %v1983, 16
        %v2013 = vpop.permute.xlu0 %2012
        %2014 = vrot.lane.b32.xlu0 %v1984, 16
        %v2015 = vpop.permute.xlu0 %2014
        %2016 = vrot.lane.b32.xlu0 %v1985, 16
        %v2017 = vpop.permute.xlu0 %2016
        %2018 = vrot.lane.b32.xlu0 %v1986, 16
        %v2019 = vpop.permute.xlu0 %2018
        %2020 = vrot.lane.b32.xlu0 %v1989, 16
        %v2021 = vpop.permute.xlu0 %2020
        %v2022 = vunpack.c.l.b16 %v1928
        %v2023 = vunpack.c.l.b16 %v1938
        %v2024 = vpack.c.b16 %v2023, %v2022
        %2025 = vrot.lane.b32.xlu0 %v1973, 32
        %v2026 = vpop.permute.xlu0 %2025
        %2027 = vrot.lane.b32.xlu0 %v1974, 32
        %v2028 = vpop.permute.xlu0 %2027
        %2029 = vrot.lane.b32.xlu0 %v1975, 32
        %v2030 = vpop.permute.xlu0 %2029
        %2031 = vrot.lane.b32.xlu0 %v1976, 32
        %v2032 = vpop.permute.xlu0 %2031
        %2033 = vrot.lane.b32.xlu0 %v1977, 32
        %v2034 = vpop.permute.xlu0 %2033
        %2035 = vrot.lane.b32.xlu0 %v1978, 32
        %v2036 = vpop.permute.xlu0 %2035
        %2037 = vrot.lane.b32.xlu0 %v1979, 32
        %v2038 = vpop.permute.xlu0 %2037
        %2039 = vrot.lane.b32.xlu0 %v1980, 32
        %v2040 = vpop.permute.xlu0 %2039
        %2041 = vrot.lane.b32.xlu0 %v1981, 32
        %v2042 = vpop.permute.xlu0 %2041
        %2043 = vrot.lane.b32.xlu0 %v1982, 32
        %v2044 = vpop.permute.xlu0 %2043
        %2045 = vrot.lane.b32.xlu0 %v1983, 32
        %v2046 = vpop.permute.xlu0 %2045
        %2047 = vrot.lane.b32.xlu0 %v1984, 32
        %v2048 = vpop.permute.xlu0 %2047
        %2049 = vrot.lane.b32.xlu0 %v1985, 32
        %v2050 = vpop.permute.xlu0 %2049
        %2051 = vrot.lane.b32.xlu0 %v1986, 32
        %v2052 = vpop.permute.xlu0 %2051
        %2053 = vrot.lane.b32.xlu0 %v1989, 32
        %v2054 = vpop.permute.xlu0 %2053
        %2055 = vrot.lane.b32.xlu0 %v2024, 32
        %v2056 = vpop.permute.xlu0 %2055
        %v2059 = vsel %vm1104, %v1971, %v1991
        %v2062 = vsel %vm1104, %v1972, %v1993
        %v2065 = vsel %vm1104, %v1973, %v1995
        %v2068 = vsel %vm1104, %v1974, %v1997
        %v2071 = vsel %vm1104, %v1975, %v1999
        %v2074 = vsel %vm1104, %v1976, %v2001
        %v2077 = vsel %vm1104, %v1977, %v2003
        %v2080 = vsel %vm1104, %v1978, %v2005
        %v2083 = vsel %vm1104, %v1979, %v2007
        %v2086 = vsel %vm1104, %v1980, %v2009
        %v2089 = vsel %vm1104, %v1981, %v2011
        %v2092 = vsel %vm1104, %v1982, %v2013
        %v2095 = vsel %vm1104, %v1983, %v2015
        %v2098 = vsel %vm1104, %v1984, %v2017
        %v2101 = vsel %vm1104, %v1985, %v2019
        %v2104 = vsel %vm1104, %v1986, %v2021
        %v2106 = vsel %vm1153, %v2059, %v2026
        %v2108 = vsel %vm1153, %v2062, %v2028
        %v2110 = vsel %vm1153, %v2065, %v2030
        %v2112 = vsel %vm1153, %v2068, %v2032
        %v2114 = vsel %vm1153, %v2071, %v2034
        %v2116 = vsel %vm1153, %v2074, %v2036
        %v2118 = vsel %vm1153, %v2077, %v2038
        %v2120 = vsel %vm1153, %v2080, %v2040
        %v2122 = vsel %vm1153, %v2083, %v2042
        %v2124 = vsel %vm1153, %v2086, %v2044
        %v2126 = vsel %vm1153, %v2089, %v2046
        %v2128 = vsel %vm1153, %v2092, %v2048
        %v2130 = vsel %vm1153, %v2095, %v2050
        %v2132 = vsel %vm1153, %v2098, %v2052
        %v2134 = vsel %vm1153, %v2101, %v2054
        %v2136 = vsel %vm1153, %v2104, %v2056
        %v2137 = vld [vmem:[#allocation3] sm:$0xff]
        %v2138 = vld [vmem:[#allocation3 + $0x8] sm:$0xff]
        %v2139 = vld [vmem:[#allocation3 + $0x10] sm:$0xff]
        %v2140 = vld [vmem:[#allocation3 + $0x18] sm:$0xff]
        %v2141 = vld [vmem:[#allocation3 + $0x20] sm:$0xff]
        %v2142 = vld [vmem:[#allocation3 + $0x28] sm:$0xff]
        %v2143 = vld [vmem:[#allocation3 + $0x30] sm:$0xff]
        %v2144 = vld [vmem:[#allocation3 + $0x38] sm:$0xff]
        %v2145 = vld [vmem:[#allocation3 + $0x40] sm:$0xff]
        %v2146 = vld [vmem:[#allocation3 + $0x48] sm:$0xff]
        %v2147 = vld [vmem:[#allocation3 + $0x50] sm:$0xff]
        %v2148 = vld [vmem:[#allocation3 + $0x58] sm:$0xff]
        %v2149 = vld [vmem:[#allocation3 + $0x60] sm:$0xff]
        %v2150 = vld [vmem:[#allocation3 + $0x68] sm:$0xff]
        %v2151 = vld [vmem:[#allocation3 + $0x70] sm:$0xff]
        %v2152 = vld [vmem:[#allocation3 + $0x78] sm:$0xff]
        %v2153 = vld [vmem:[#allocation3 + $0x80] sm:$0xff]
        %v2154 = vld [vmem:[#allocation3 + $0x88] sm:$0xff]
        %v2155 = vld [vmem:[#allocation3 + $0x90] sm:$0xff]
        %v2156 = vld [vmem:[#allocation3 + $0x98] sm:$0xff]
        %v2157 = vld [vmem:[#allocation3 + $0xa0] sm:$0xff]
        %v2158 = vld [vmem:[#allocation3 + $0xa8] sm:$0xff]
        %v2159 = vld [vmem:[#allocation3 + $0xb0] sm:$0xff]
        %v2160 = vld [vmem:[#allocation3 + $0xb8] sm:$0xff]
        %v2161 = vld [vmem:[#allocation3 + $0xc0] sm:$0xff]
        %v2162 = vld [vmem:[#allocation3 + $0xc8] sm:$0xff]
        %v2163 = vld [vmem:[#allocation3 + $0xd0] sm:$0xff]
        %v2164 = vld [vmem:[#allocation3 + $0xd8] sm:$0xff]
        %v2165 = vld [vmem:[#allocation3 + $0xe0] sm:$0xff]
        %v2166 = vld [vmem:[#allocation3 + $0xe8] sm:$0xff]
        %v2167 = vld [vmem:[#allocation3 + $0xf0] sm:$0xff]
        %v2168 = vld [vmem:[#allocation3 + $0xf8] sm:$0xff]
        %s2169 = sadd.s32 %s1218, 1
        %s2170 = smul.u32 %s2169, 6
        %s2171 = smul.addr %s2170, 4
        %s2172 = scalar_lea.vmem %s1, %s2171
        %v2173 = vld [vmem:[%s2172] sm:$0xf]
        %v2174 = vld [vmem:[%s2172 + $0x4] sm:$0xf]
        %v2175 = vld [vmem:[%s2172 + $0x8] sm:$0xf]
        %v2176 = vld [vmem:[%s2172 + $0xc] sm:$0xf]
        %v2177 = vld [vmem:[%s2172 + $0x10] sm:$0xf]
        %v2178 = vld [vmem:[%s2172 + $0x14] sm:$0xf]
        %v2185 = vunpack.c.l.b16 %v2173
        %v2186 = vunpack.c.l.b16 %v2174
        %v2187 = vunpack.c.l.b16 %v2175
        %v2188 = vunpack.c.l.b16 %v2176
        %v2189 = vunpack.c.l.b16 %v2177
        %v2190 = vunpack.c.l.b16 %v2178
        %v2191 = vpack.c.b16 %v2186, %v2185
        %v2192 = vpack.c.b16 %v2188, %v2187
        %v2193 = vpack.c.b16 %v2190, %v2189
        %v2197 = vsel %vm1246, %v2106, 0
        %v2199 = vsel %vm1246, %v2108, 0
        %v2201 = vsel %vm1246, %v2110, 0
        %v2203 = vsel %vm1246, %v2112, 0
        %v2205 = vsel %vm1246, %v2114, 0
        %v2207 = vsel %vm1246, %v2116, 0
        %v2209 = vsel %vm1246, %v2118, 0
        %v2211 = vsel %vm1246, %v2120, 0
        %v2213 = vsel %vm1246, %v2122, 0
        %v2215 = vsel %vm1246, %v2124, 0
        %v2217 = vsel %vm1246, %v2126, 0
        %v2219 = vsel %vm1246, %v2128, 0
        %v2221 = vsel %vm1246, %v2130, 0
        %v2223 = vsel %vm1246, %v2132, 0
        %v2225 = vsel %vm1246, %v2134, 0
        %v2227 = vsel %vm1246, %v2136, 0
        %2229 = vmatprep.subr.bf16.mxu0 0
        %2230 = vmatpush1.bf16.msra.mxu0 %v2191
        %2231 = vmatprep.subr.bf16.mxu0 0
        %2232 = vmatpush1.bf16.msra.mxu0 %v2192
        %2233 = vmatprep.subr.bf16.mxu0 0
        %2234 = vmatpush1.bf16.msra.mxu0 %v2193
        %2235 = vmatprep.subr.bf16.mxu0 0
        %2236 = vmatpush1.bf16.msra.mxu0 0
        %2237 = vmatprep.subr.bf16.mxu0 0
        %2238 = vmatpush1.bf16.msra.mxu0 0
        %2239 = vmatprep.subr.bf16.mxu0 0
        %2240 = vmatpush1.bf16.msra.mxu0 0
        %2241 = vmatprep.subr.bf16.mxu0 0
        %2242 = vmatpush1.bf16.msra.mxu0 0
        %2243 = vmatprep.subr.bf16.mxu0 0
        %2244 = vmatpush1.bf16.msra.mxu0 0
        %2245 = vmatprep.subr.bf16.mxu0 0
        %2246 = vmatpush1.bf16.msra.mxu0 0
        %2247 = vmatprep.subr.bf16.mxu0 0
        %2248 = vmatpush1.bf16.msra.mxu0 0
        %2249 = vmatprep.subr.bf16.mxu0 0
        %2250 = vmatpush1.bf16.msra.mxu0 0
        %2251 = vmatprep.subr.bf16.mxu0 0
        %2252 = vmatpush1.bf16.msra.mxu0 0
        %2253 = vmatprep.subr.bf16.mxu0 0
        %2254 = vmatpush1.bf16.msra.mxu0 0
        %2255 = vmatprep.subr.bf16.mxu0 0
        %2256 = vmatpush1.bf16.msra.mxu0 0
        %2257 = vmatprep.subr.bf16.mxu0 0
        %2258 = vmatpush1.bf16.msra.mxu0 0
        %2259 = vmatprep.subr.bf16.mxu0 0
        %2260 = vmatpush1.bf16.msra.mxu0 0
        %2261 = vmatprep.mubr.bf16.mxu0 0
        %2262 = vmatmul.mubr.bf16.gmra.mrb[0].mxu0 %v2197
        %v2263 = vpop.f32.mrb[0].mxu0
        %v2264 = vadd.f32 0.0, %v2263
        %v2265 = vpop.f32.mrb[0].mxu0
        %v2266 = vpop.f32.mrb[0].mxu0
        %v2267 = vadd.f32 0.0, %v2266
        %v2268 = vpop.f32.mrb[0].mxu0
        %2269 = vmatprep.mubr.bf16.mxu0 0
        %2270 = vmatmul.mubr.bf16.gmra.mrb[0].mxu0 %v2199
        %v2271 = vpop.f32.mrb[0].mxu0
        %v2272 = vadd.f32 0.0, %v2271
        %v2273 = vpop.f32.mrb[0].mxu0
        %v2274 = vpop.f32.mrb[0].mxu0
        %v2275 = vadd.f32 0.0, %v2274
        %v2276 = vpop.f32.mrb[0].mxu0
        %2277 = vmatprep.mubr.bf16.mxu0 0
        %2278 = vmatmul.mubr.bf16.gmra.mrb[0].mxu0 %v2201
        %v2279 = vpop.f32.mrb[0].mxu0
        %v2280 = vadd.f32 0.0, %v2279
        %v2281 = vpop.f32.mrb[0].mxu0
        %v2282 = vpop.f32.mrb[0].mxu0
        %v2283 = vadd.f32 0.0, %v2282
        %v2284 = vpop.f32.mrb[0].mxu0
        %2285 = vmatprep.mubr.bf16.mxu0 0
        %2286 = vmatmul.mubr.bf16.gmra.mrb[0].mxu0 %v2203
        %v2287 = vpop.f32.mrb[0].mxu0
        %v2288 = vadd.f32 0.0, %v2287
        %v2289 = vpop.f32.mrb[0].mxu0
        %v2290 = vpop.f32.mrb[0].mxu0
        %v2291 = vadd.f32 0.0, %v2290
        %v2292 = vpop.f32.mrb[0].mxu0
        %2293 = vmatprep.mubr.bf16.mxu0 0
        %2294 = vmatmul.mubr.bf16.gmra.mrb[0].mxu0 %v2205
        %v2295 = vpop.f32.mrb[0].mxu0
        %v2296 = vadd.f32 0.0, %v2295
        %v2297 = vpop.f32.mrb[0].mxu0
        %v2298 = vpop.f32.mrb[0].mxu0
        %v2299 = vadd.f32 0.0, %v2298
        %v2300 = vpop.f32.mrb[0].mxu0
        %2301 = vmatprep.mubr.bf16.mxu0 0
        %2302 = vmatmul.mubr.bf16.gmra.mrb[0].mxu0 %v2207
        %v2303 = vpop.f32.mrb[0].mxu0
        %v2304 = vadd.f32 0.0, %v2303
        %v2305 = vpop.f32.mrb[0].mxu0
        %v2306 = vpop.f32.mrb[0].mxu0
        %v2307 = vadd.f32 0.0, %v2306
        %v2308 = vpop.f32.mrb[0].mxu0
        %2309 = vmatprep.mubr.bf16.mxu0 0
        %2310 = vmatmul.mubr.bf16.gmra.mrb[0].mxu0 %v2209
        %v2311 = vpop.f32.mrb[0].mxu0
        %v2312 = vadd.f32 0.0, %v2311
        %v2313 = vpop.f32.mrb[0].mxu0
        %v2314 = vpop.f32.mrb[0].mxu0
        %v2315 = vadd.f32 0.0, %v2314
        %v2316 = vpop.f32.mrb[0].mxu0
        %2317 = vmatprep.mubr.bf16.mxu0 0
        %2318 = vmatmul.mubr.bf16.gmra.mrb[0].mxu0 %v2211
        %v2319 = vpop.f32.mrb[0].mxu0
        %v2320 = vadd.f32 0.0, %v2319
        %v2321 = vpop.f32.mrb[0].mxu0
        %v2322 = vpop.f32.mrb[0].mxu0
        %v2323 = vadd.f32 0.0, %v2322
        %v2324 = vpop.f32.mrb[0].mxu0
        %2325 = vmatprep.mubr.bf16.mxu0 0
        %2326 = vmatmul.mubr.bf16.gmra.mrb[0].mxu0 %v2213
        %v2327 = vpop.f32.mrb[0].mxu0
        %v2328 = vadd.f32 0.0, %v2327
        %v2329 = vpop.f32.mrb[0].mxu0
        %v2330 = vpop.f32.mrb[0].mxu0
        %v2331 = vadd.f32 0.0, %v2330
        %v2332 = vpop.f32.mrb[0].mxu0
        %2333 = vmatprep.mubr.bf16.mxu0 0
        %2334 = vmatmul.mubr.bf16.gmra.mrb[0].mxu0 %v2215
        %v2335 = vpop.f32.mrb[0].mxu0
        %v2336 = vadd.f32 0.0, %v2335
        %v2337 = vpop.f32.mrb[0].mxu0
        %v2338 = vpop.f32.mrb[0].mxu0
        %v2339 = vadd.f32 0.0, %v2338
        %v2340 = vpop.f32.mrb[0].mxu0
        %2341 = vmatprep.mubr.bf16.mxu0 0
        %2342 = vmatmul.mubr.bf16.gmra.mrb[0].mxu0 %v2217
        %v2343 = vpop.f32.mrb[0].mxu0
        %v2344 = vadd.f32 0.0, %v2343
        %v2345 = vpop.f32.mrb[0].mxu0
        %v2346 = vpop.f32.mrb[0].mxu0
        %v2347 = vadd.f32 0.0, %v2346
        %v2348 = vpop.f32.mrb[0].mxu0
        %2349 = vmatprep.mubr.bf16.mxu0 0
        %2350 = vmatmul.mubr.bf16.gmra.mrb[0].mxu0 %v2219
        %v2351 = vpop.f32.mrb[0].mxu0
        %v2352 = vadd.f32 0.0, %v2351
        %v2353 = vpop.f32.mrb[0].mxu0
        %v2354 = vpop.f32.mrb[0].mxu0
        %v2355 = vadd.f32 0.0, %v2354
        %v2356 = vpop.f32.mrb[0].mxu0
        %2357 = vmatprep.mubr.bf16.mxu0 0
        %2358 = vmatmul.mubr.bf16.gmra.mrb[0].mxu0 %v2221
        %v2359 = vpop.f32.mrb[0].mxu0
        %v2360 = vadd.f32 0.0, %v2359
        %v2361 = vpop.f32.mrb[0].mxu0
        %v2362 = vpop.f32.mrb[0].mxu0
        %v2363 = vadd.f32 0.0, %v2362
        %v2364 = vpop.f32.mrb[0].mxu0
        %2365 = vmatprep.mubr.bf16.mxu0 0
        %2366 = vmatmul.mubr.bf16.gmra.mrb[0].mxu0 %v2223
        %v2367 = vpop.f32.mrb[0].mxu0
        %v2368 = vadd.f32 0.0, %v2367
        %v2369 = vpop.f32.mrb[0].mxu0
        %v2370 = vpop.f32.mrb[0].mxu0
        %v2371 = vadd.f32 0.0, %v2370
        %v2372 = vpop.f32.mrb[0].mxu0
        %2373 = vmatprep.mubr.bf16.mxu0 0
        %2374 = vmatmul.mubr.bf16.gmra.mrb[0].mxu0 %v2225
        %v2375 = vpop.f32.mrb[0].mxu0
        %v2376 = vadd.f32 0.0, %v2375
        %v2377 = vpop.f32.mrb[0].mxu0
        %v2378 = vpop.f32.mrb[0].mxu0
        %v2379 = vadd.f32 0.0, %v2378
        %v2380 = vpop.f32.mrb[0].mxu0
        %2381 = vmatprep.mubr.bf16.mxu0 0
        %2382 = vmatmul.mubr.bf16.gmra.mrb[0].mxu0 %v2227
        %v2383 = vpop.f32.mrb[0].mxu0
        %v2384 = vadd.f32 0.0, %v2383
        %v2385 = vpop.f32.mrb[0].mxu0
        %v2386 = vpop.f32.mrb[0].mxu0
        %v2387 = vadd.f32 0.0, %v2386
        %v2388 = vpop.f32.mrb[0].mxu0
        %2389 = vdwg.mxu0
        %v2390 = vadd.f32 %v2137, %v2264
        %v2391 = vadd.f32 %v2138, %v2267
        %v2392 = vadd.f32 %v2139, %v2272
        %v2393 = vadd.f32 %v2140, %v2275
        %v2394 = vadd.f32 %v2141, %v2280
        %v2395 = vadd.f32 %v2142, %v2283
        %v2396 = vadd.f32 %v2143, %v2288
        %v2397 = vadd.f32 %v2144, %v2291
        %v2398 = vadd.f32 %v2145, %v2296
        %v2399 = vadd.f32 %v2146, %v2299
        %v2400 = vadd.f32 %v2147, %v2304
        %v2401 = vadd.f32 %v2148, %v2307
        %v2402 = vadd.f32 %v2149, %v2312
        %v2403 = vadd.f32 %v2150, %v2315
        %v2404 = vadd.f32 %v2151, %v2320
        %v2405 = vadd.f32 %v2152, %v2323
        %v2406 = vadd.f32 %v2153, %v2328
        %v2407 = vadd.f32 %v2154, %v2331
        %v2408 = vadd.f32 %v2155, %v2336
        %v2409 = vadd.f32 %v2156, %v2339
        %v2410 = vadd.f32 %v2157, %v2344
        %v2411 = vadd.f32 %v2158, %v2347
        %v2412 = vadd.f32 %v2159, %v2352
        %v2413 = vadd.f32 %v2160, %v2355
        %v2414 = vadd.f32 %v2161, %v2360
        %v2415 = vadd.f32 %v2162, %v2363
        %v2416 = vadd.f32 %v2163, %v2368
        %v2417 = vadd.f32 %v2164, %v2371
        %v2418 = vadd.f32 %v2165, %v2376
        %v2419 = vadd.f32 %v2166, %v2379
        %v2420 = vadd.f32 %v2167, %v2384
        %v2421 = vadd.f32 %v2168, %v2387
        %2422 = vst.msk [vmem:[#allocation3] sm:$0xff] %vm1153, %v2390
        %2423 = vst.msk [vmem:[#allocation3 + $0x8] sm:$0xff] %vm1153, %v2391
        %2424 = vst.msk [vmem:[#allocation3 + $0x10] sm:$0xff] %vm1153, %v2392
        %2425 = vst.msk [vmem:[#allocation3 + $0x18] sm:$0xff] %vm1153, %v2393
        %2426 = vst.msk [vmem:[#allocation3 + $0x20] sm:$0xff] %vm1153, %v2394
        %2427 = vst.msk [vmem:[#allocation3 + $0x28] sm:$0xff] %vm1153, %v2395
        %2428 = vst.msk [vmem:[#allocation3 + $0x30] sm:$0xff] %vm1153, %v2396
        %2429 = vst.msk [vmem:[#allocation3 + $0x38] sm:$0xff] %vm1153, %v2397
        %2430 = vst.msk [vmem:[#allocation3 + $0x40] sm:$0xff] %vm1153, %v2398
        %2431 = vst.msk [vmem:[#allocation3 + $0x48] sm:$0xff] %vm1153, %v2399
        %2432 = vst.msk [vmem:[#allocation3 + $0x50] sm:$0xff] %vm1153, %v2400
        %2433 = vst.msk [vmem:[#allocation3 + $0x58] sm:$0xff] %vm1153, %v2401
        %2434 = vst.msk [vmem:[#allocation3 + $0x60] sm:$0xff] %vm1153, %v2402
        %2435 = vst.msk [vmem:[#allocation3 + $0x68] sm:$0xff] %vm1153, %v2403
        %2436 = vst.msk [vmem:[#allocation3 + $0x70] sm:$0xff] %vm1153, %v2404
        %2437 = vst.msk [vmem:[#allocation3 + $0x78] sm:$0xff] %vm1153, %v2405
        %2438 = vst.msk [vmem:[#allocation3 + $0x80] sm:$0xff] %vm1153, %v2406
        %2439 = vst.msk [vmem:[#allocation3 + $0x88] sm:$0xff] %vm1153, %v2407
        %2440 = vst.msk [vmem:[#allocation3 + $0x90] sm:$0xff] %vm1153, %v2408
        %2441 = vst.msk [vmem:[#allocation3 + $0x98] sm:$0xff] %vm1153, %v2409
        %2442 = vst.msk [vmem:[#allocation3 + $0xa0] sm:$0xff] %vm1153, %v2410
        %2443 = vst.msk [vmem:[#allocation3 + $0xa8] sm:$0xff] %vm1153, %v2411
        %2444 = vst.msk [vmem:[#allocation3 + $0xb0] sm:$0xff] %vm1153, %v2412
        %2445 = vst.msk [vmem:[#allocation3 + $0xb8] sm:$0xff] %vm1153, %v2413
        %2446 = vst.msk [vmem:[#allocation3 + $0xc0] sm:$0xff] %vm1153, %v2414
        %2447 = vst.msk [vmem:[#allocation3 + $0xc8] sm:$0xff] %vm1153, %v2415
        %2448 = vst.msk [vmem:[#allocation3 + $0xd0] sm:$0xff] %vm1153, %v2416
        %2449 = vst.msk [vmem:[#allocation3 + $0xd8] sm:$0xff] %vm1153, %v2417
        %2450 = vst.msk [vmem:[#allocation3 + $0xe0] sm:$0xff] %vm1153, %v2418
        %2451 = vst.msk [vmem:[#allocation3 + $0xe8] sm:$0xff] %vm1153, %v2419
        %2452 = vst.msk [vmem:[#allocation3 + $0xf0] sm:$0xff] %vm1153, %v2420
        %2453 = vst.msk [vmem:[#allocation3 + $0xf8] sm:$0xff] %vm1153, %v2421
        %vm2472 = vcmask 1042432
        %vm2473 = vcmask 1046532
        %vm2474 = vmor %vm2472, %vm2473
        %v2475 = vrot.slane %v896, 5
        %v2476 = vrot.slane %v2475, 4
        %v2477 = vrot.slane %v897, 5
        %v2478 = vsel %vm2474, %v2476, %v2477
        %v2479 = vrot.slane %v2477, 4
        %v2480 = vrot.slane %v898, 5
        %v2481 = vsel %vm2474, %v2479, %v2480
        %v2482 = vrot.slane %v899, 5
        %v2483 = vrot.slane %v2482, 4
        %v2484 = vrot.slane %v900, 5
        %v2485 = vsel %vm2474, %v2483, %v2484
        %v2486 = vrot.slane %v2484, 4
        %v2487 = vrot.slane %v901, 5
        %v2488 = vsel %vm2474, %v2486, %v2487
        %v2489 = vrot.slane %v902, 5
        %v2490 = vrot.slane %v2489, 4
        %v2491 = vrot.slane %v903, 5
        %v2492 = vsel %vm2474, %v2490, %v2491
        %v2493 = vrot.slane %v2491, 4
        %v2494 = vrot.slane %v904, 5
        %v2495 = vsel %vm2474, %v2493, %v2494
        %v2496 = vrot.slane %v905, 5
        %v2497 = vrot.slane %v2496, 4
        %v2498 = vrot.slane %v906, 5
        %v2499 = vsel %vm2474, %v2497, %v2498
        %v2500 = vrot.slane %v2498, 4
        %v2501 = vrot.slane %v907, 5
        %v2502 = vsel %vm2474, %v2500, %v2501
        %v2503 = vrot.slane %v908, 5
        %v2504 = vrot.slane %v2503, 4
        %v2505 = vrot.slane %v909, 5
        %v2506 = vsel %vm2474, %v2504, %v2505
        %v2507 = vrot.slane %v2505, 4
        %v2508 = vrot.slane %v910, 5
        %v2509 = vsel %vm2474, %v2507, %v2508
        %v2510 = vrot.slane %v911, 5
        %v2511 = vrot.slane %v2510, 4
        %v2512 = vrot.slane %v912, 5
        %v2513 = vsel %vm2474, %v2511, %v2512
        %v2514 = vrot.slane %v2512, 4
        %v2515 = vrot.slane %v913, 5
        %v2516 = vsel %vm2474, %v2514, %v2515
        %v2517 = vrot.slane %v914, 5
        %v2518 = vrot.slane %v2517, 4
        %v2519 = vrot.slane %v915, 5
        %v2520 = vsel %vm2474, %v2518, %v2519
        %v2521 = vrot.slane %v2519, 4
        %v2522 = vrot.slane %v916, 5
        %v2523 = vsel %vm2474, %v2521, %v2522
        %v2524 = vrot.slane %v917, 5
        %v2525 = vrot.slane %v2524, 4
        %v2526 = vrot.slane %v918, 5
        %v2527 = vsel %vm2474, %v2525, %v2526
        %v2528 = vrot.slane %v2526, 4
        %v2529 = vrot.slane %v919, 5
        %v2530 = vsel %vm2474, %v2528, %v2529
        %v2531 = vrot.slane %v920, 5
        %v2532 = vrot.slane %v2531, 4
        %v2533 = vrot.slane %v921, 5
        %v2534 = vsel %vm2474, %v2532, %v2533
        %v2535 = vrot.slane %v2533, 4
        %v2536 = vrot.slane %v922, 5
        %v2537 = vsel %vm2474, %v2535, %v2536
        %v2538 = vrot.slane %v923, 5
        %v2539 = vrot.slane %v2538, 4
        %v2540 = vrot.slane %v924, 5
        %v2541 = vsel %vm2474, %v2539, %v2540
        %v2542 = vrot.slane %v2540, 4
        %v2543 = vrot.slane %v925, 5
        %v2544 = vsel %vm2474, %v2542, %v2543
        %v2545 = vrot.slane %v926, 5
        %v2546 = vrot.slane %v2545, 4
        %v2547 = vrot.slane %v927, 5
        %v2548 = vsel %vm2474, %v2546, %v2547
        %v2549 = vrot.slane %v2547, 4
        %v2550 = vrot.slane %v928, 5
        %v2551 = vsel %vm2474, %v2549, %v2550
        %v2552 = vrot.slane %v929, 5
        %v2553 = vrot.slane %v2552, 4
        %v2554 = vrot.slane %v930, 5
        %v2555 = vsel %vm2474, %v2553, %v2554
        %v2556 = vrot.slane %v2554, 4
        %v2557 = vrot.slane %v931, 5
        %v2558 = vsel %vm2474, %v2556, %v2557
        %v2559 = vrot.slane %v932, 5
        %v2560 = vrot.slane %v2559, 4
        %v2561 = vrot.slane %v933, 5
        %v2562 = vsel %vm2474, %v2560, %v2561
        %v2563 = vrot.slane %v2561, 4
        %v2564 = vrot.slane %v934, 5
        %v2565 = vsel %vm2474, %v2563, %v2564
        %v2566 = vrot.slane %v935, 5
        %v2567 = vrot.slane %v2566, 4
        %v2568 = vrot.slane %v936, 5
        %v2569 = vsel %vm2474, %v2567, %v2568
        %v2570 = vrot.slane %v2568, 4
        %v2571 = vrot.slane %v937, 5
        %v2572 = vsel %vm2474, %v2570, %v2571
        %v2573 = vrot.slane %v938, 5
        %v2574 = vrot.slane %v2573, 4
        %v2575 = vrot.slane %v939, 5
        %v2576 = vsel %vm2474, %v2574, %v2575
        %v2577 = vrot.slane %v2575, 4
        %v2578 = vrot.slane %v940, 5
        %v2579 = vsel %vm2474, %v2577, %v2578
        %v2580 = vrot.slane %v941, 5
        %v2581 = vrot.slane %v2580, 4
        %v2582 = vrot.slane %v942, 5
        %v2583 = vsel %vm2474, %v2581, %v2582
        %v2584 = vrot.slane %v2582, 4
        %v2585 = vrot.slane %v943, 5
        %v2586 = vsel %vm2474, %v2584, %v2585
        %v2587 = vrot.slane %v944, 5
        %v2588 = vrot.slane %v2587, 4
        %v2589 = vrot.slane %v945, 5
        %v2590 = vsel %vm2474, %v2588, %v2589
        %v2591 = vrot.slane %v2589, 4
        %v2592 = vrot.slane %v946, 5
        %v2593 = vsel %vm2474, %v2591, %v2592
        %v2594 = vrot.slane %v947, 5
        %v2595 = vrot.slane %v2594, 4
        %v2596 = vrot.slane %v948, 5
        %v2597 = vsel %vm2474, %v2595, %v2596
        %v2598 = vrot.slane %v2596, 4
        %v2599 = vrot.slane %v949, 5
        %v2600 = vsel %vm2474, %v2598, %v2599
        %v2601 = vunpack.c.l.b16 %v2478
        %v2602 = vunpack.c.l.b16 %v2481
        %v2603 = vunpack.c.l.b16 %v2485
        %v2604 = vunpack.c.l.b16 %v2488
        %v2605 = vunpack.c.l.b16 %v2492
        %v2606 = vunpack.c.l.b16 %v2495
        %v2607 = vunpack.c.l.b16 %v2499
        %v2608 = vunpack.c.l.b16 %v2502
        %v2609 = vunpack.c.l.b16 %v2506
        %v2610 = vunpack.c.l.b16 %v2509
        %v2611 = vunpack.c.l.b16 %v2513
        %v2612 = vunpack.c.l.b16 %v2516
        %v2613 = vunpack.c.l.b16 %v2520
        %v2614 = vunpack.c.l.b16 %v2523
        %v2615 = vunpack.c.l.b16 %v2527
        %v2616 = vunpack.c.l.b16 %v2530
        %v2617 = vunpack.c.l.b16 %v2534
        %v2618 = vunpack.c.l.b16 %v2537
        %v2619 = vunpack.c.l.b16 %v2541
        %v2620 = vunpack.c.l.b16 %v2544
        %v2621 = vunpack.c.l.b16 %v2548
        %v2622 = vunpack.c.l.b16 %v2551
        %v2623 = vunpack.c.l.b16 %v2555
        %v2624 = vunpack.c.l.b16 %v2558
        %v2625 = vunpack.c.l.b16 %v2562
        %v2626 = vunpack.c.l.b16 %v2565
        %v2627 = vunpack.c.l.b16 %v2569
        %v2628 = vunpack.c.l.b16 %v2572
        %v2629 = vunpack.c.l.b16 %v2576
        %v2630 = vunpack.c.l.b16 %v2579
        %v2631 = vunpack.c.l.b16 %v2583
        %v2632 = vunpack.c.l.b16 %v2586
        %v2633 = vpack.c.b16 %v2602, %v2601
        %v2634 = vpack.c.b16 %v2604, %v2603
        %v2635 = vpack.c.b16 %v2606, %v2605
        %v2636 = vpack.c.b16 %v2608, %v2607
        %v2637 = vpack.c.b16 %v2610, %v2609
        %v2638 = vpack.c.b16 %v2612, %v2611
        %v2639 = vpack.c.b16 %v2614, %v2613
        %v2640 = vpack.c.b16 %v2616, %v2615
        %v2641 = vpack.c.b16 %v2618, %v2617
        %v2642 = vpack.c.b16 %v2620, %v2619
        %v2643 = vpack.c.b16 %v2622, %v2621
        %v2644 = vpack.c.b16 %v2624, %v2623
        %v2645 = vpack.c.b16 %v2626, %v2625
        %v2646 = vpack.c.b16 %v2628, %v2627
        %v2647 = vpack.c.b16 %v2630, %v2629
        %v2648 = vpack.c.b16 %v2632, %v2631
        %v2649 = vunpack.c.l.b16 %v2590
        %v2650 = vunpack.c.l.b16 %v2593
        %v2651 = vpack.c.b16 %v2650, %v2649
        %2652 = vrot.lane.b32.xlu0 %v2634, 16
        %v2653 = vpop.permute.xlu0 %2652
        %2654 = vrot.lane.b32.xlu0 %v2635, 16
        %v2655 = vpop.permute.xlu0 %2654
        %2656 = vrot.lane.b32.xlu0 %v2636, 16
        %v2657 = vpop.permute.xlu0 %2656
        %2658 = vrot.lane.b32.xlu0 %v2637, 16
        %v2659 = vpop.permute.xlu0 %2658
        %2660 = vrot.lane.b32.xlu0 %v2638, 16
        %v2661 = vpop.permute.xlu0 %2660
        %2662 = vrot.lane.b32.xlu0 %v2639, 16
        %v2663 = vpop.permute.xlu0 %2662
        %2664 = vrot.lane.b32.xlu0 %v2640, 16
        %v2665 = vpop.permute.xlu0 %2664
        %2666 = vrot.lane.b32.xlu0 %v2641, 16
        %v2667 = vpop.permute.xlu0 %2666
        %2668 = vrot.lane.b32.xlu0 %v2642, 16
        %v2669 = vpop.permute.xlu0 %2668
        %2670 = vrot.lane.b32.xlu0 %v2643, 16
        %v2671 = vpop.permute.xlu0 %2670
        %2672 = vrot.lane.b32.xlu0 %v2644, 16
        %v2673 = vpop.permute.xlu0 %2672
        %2674 = vrot.lane.b32.xlu0 %v2645, 16
        %v2675 = vpop.permute.xlu0 %2674
        %2676 = vrot.lane.b32.xlu0 %v2646, 16
        %v2677 = vpop.permute.xlu0 %2676
        %2678 = vrot.lane.b32.xlu0 %v2647, 16
        %v2679 = vpop.permute.xlu0 %2678
        %2680 = vrot.lane.b32.xlu0 %v2648, 16
        %v2681 = vpop.permute.xlu0 %2680
        %2682 = vrot.lane.b32.xlu0 %v2651, 16
        %v2683 = vpop.permute.xlu0 %2682
        %v2684 = vunpack.c.l.b16 %v2597
        %v2685 = vunpack.c.l.b16 %v2600
        %v2686 = vpack.c.b16 %v2685, %v2684
        %2687 = vrot.lane.b32.xlu0 %v2635, 32
        %v2688 = vpop.permute.xlu0 %2687
        %2689 = vrot.lane.b32.xlu0 %v2636, 32
        %v2690 = vpop.permute.xlu0 %2689
        %2691 = vrot.lane.b32.xlu0 %v2637, 32
        %v2692 = vpop.permute.xlu0 %2691
        %2693 = vrot.lane.b32.xlu0 %v2638, 32
        %v2694 = vpop.permute.xlu0 %2693
        %2695 = vrot.lane.b32.xlu0 %v2639, 32
        %v2696 = vpop.permute.xlu0 %2695
        %2697 = vrot.lane.b32.xlu0 %v2640, 32
        %v2698 = vpop.permute.xlu0 %2697
        %2699 = vrot.lane.b32.xlu0 %v2641, 32
        %v2700 = vpop.permute.xlu0 %2699
        %2701 = vrot.lane.b32.xlu0 %v2642, 32
        %v2702 = vpop.permute.xlu0 %2701
        %2703 = vrot.lane.b32.xlu0 %v2643, 32
        %v2704 = vpop.permute.xlu0 %2703
        %2705 = vrot.lane.b32.xlu0 %v2644, 32
        %v2706 = vpop.permute.xlu0 %2705
        %2707 = vrot.lane.b32.xlu0 %v2645, 32
        %v2708 = vpop.permute.xlu0 %2707
        %2709 = vrot.lane.b32.xlu0 %v2646, 32
        %v2710 = vpop.permute.xlu0 %2709
        %2711 = vrot.lane.b32.xlu0 %v2647, 32
        %v2712 = vpop.permute.xlu0 %2711
        %2713 = vrot.lane.b32.xlu0 %v2648, 32
        %v2714 = vpop.permute.xlu0 %2713
        %2715 = vrot.lane.b32.xlu0 %v2651, 32
        %v2716 = vpop.permute.xlu0 %2715
        %2717 = vrot.lane.b32.xlu0 %v2686, 32
        %v2718 = vpop.permute.xlu0 %2717
        %v2721 = vsel %vm1104, %v2633, %v2653
        %v2724 = vsel %vm1104, %v2634, %v2655
        %v2727 = vsel %vm1104, %v2635, %v2657
        %v2730 = vsel %vm1104, %v2636, %v2659
        %v2733 = vsel %vm1104, %v2637, %v2661
        %v2736 = vsel %vm1104, %v2638, %v2663
        %v2739 = vsel %vm1104, %v2639, %v2665
        %v2742 = vsel %vm1104, %v2640, %v2667
        %v2745 = vsel %vm1104, %v2641, %v2669
        %v2748 = vsel %vm1104, %v2642, %v2671
        %v2751 = vsel %vm1104, %v2643, %v2673
        %v2754 = vsel %vm1104, %v2644, %v2675
        %v2757 = vsel %vm1104, %v2645, %v2677
        %v2760 = vsel %vm1104, %v2646, %v2679
        %v2763 = vsel %vm1104, %v2647, %v2681
        %v2766 = vsel %vm1104, %v2648, %v2683
        %v2768 = vsel %vm1153, %v2721, %v2688
        %v2770 = vsel %vm1153, %v2724, %v2690
        %v2772 = vsel %vm1153, %v2727, %v2692
        %v2774 = vsel %vm1153, %v2730, %v2694
        %v2776 = vsel %vm1153, %v2733, %v2696
        %v2778 = vsel %vm1153, %v2736, %v2698
        %v2780 = vsel %vm1153, %v2739, %v2700
        %v2782 = vsel %vm1153, %v2742, %v2702
        %v2784 = vsel %vm1153, %v2745, %v2704
        %v2786 = vsel %vm1153, %v2748, %v2706
        %v2788 = vsel %vm1153, %v2751, %v2708
        %v2790 = vsel %vm1153, %v2754, %v2710
        %v2792 = vsel %vm1153, %v2757, %v2712
        %v2794 = vsel %vm1153, %v2760, %v2714
        %v2796 = vsel %vm1153, %v2763, %v2716
        %v2798 = vsel %vm1153, %v2766, %v2718
        %v2799 = vld [vmem:[#allocation3] sm:$0xff]
        %v2800 = vld [vmem:[#allocation3 + $0x8] sm:$0xff]
        %v2801 = vld [vmem:[#allocation3 + $0x10] sm:$0xff]
        %v2802 = vld [vmem:[#allocation3 + $0x18] sm:$0xff]
        %v2803 = vld [vmem:[#allocation3 + $0x20] sm:$0xff]
        %v2804 = vld [vmem:[#allocation3 + $0x28] sm:$0xff]
        %v2805 = vld [vmem:[#allocation3 + $0x30] sm:$0xff]
        %v2806 = vld [vmem:[#allocation3 + $0x38] sm:$0xff]
        %v2807 = vld [vmem:[#allocation3 + $0x40] sm:$0xff]
        %v2808 = vld [vmem:[#allocation3 + $0x48] sm:$0xff]
        %v2809 = vld [vmem:[#allocation3 + $0x50] sm:$0xff]
        %v2810 = vld [vmem:[#allocation3 + $0x58] sm:$0xff]
        %v2811 = vld [vmem:[#allocation3 + $0x60] sm:$0xff]
        %v2812 = vld [vmem:[#allocation3 + $0x68] sm:$0xff]
        %v2813 = vld [vmem:[#allocation3 + $0x70] sm:$0xff]
        %v2814 = vld [vmem:[#allocation3 + $0x78] sm:$0xff]
        %v2815 = vld [vmem:[#allocation3 + $0x80] sm:$0xff]
        %v2816 = vld [vmem:[#allocation3 + $0x88] sm:$0xff]
        %v2817 = vld [vmem:[#allocation3 + $0x90] sm:$0xff]
        %v2818 = vld [vmem:[#allocation3 + $0x98] sm:$0xff]
        %v2819 = vld [vmem:[#allocation3 + $0xa0] sm:$0xff]
        %v2820 = vld [vmem:[#allocation3 + $0xa8] sm:$0xff]
        %v2821 = vld [vmem:[#allocation3 + $0xb0] sm:$0xff]
        %v2822 = vld [vmem:[#allocation3 + $0xb8] sm:$0xff]
        %v2823 = vld [vmem:[#allocation3 + $0xc0] sm:$0xff]
        %v2824 = vld [vmem:[#allocation3 + $0xc8] sm:$0xff]
        %v2825 = vld [vmem:[#allocation3 + $0xd0] sm:$0xff]
        %v2826 = vld [vmem:[#allocation3 + $0xd8] sm:$0xff]
        %v2827 = vld [vmem:[#allocation3 + $0xe0] sm:$0xff]
        %v2828 = vld [vmem:[#allocation3 + $0xe8] sm:$0xff]
        %v2829 = vld [vmem:[#allocation3 + $0xf0] sm:$0xff]
        %v2830 = vld [vmem:[#allocation3 + $0xf8] sm:$0xff]
        %s2831 = sadd.s32 %s1218, 2
        %s2832 = smul.u32 %s2831, 6
        %s2833 = smul.addr %s2832, 4
        %s2834 = scalar_lea.vmem %s1, %s2833
        %v2835 = vld [vmem:[%s2834] sm:$0xf]
        %v2836 = vld [vmem:[%s2834 + $0x4] sm:$0xf]
        %v2837 = vld [vmem:[%s2834 + $0x8] sm:$0xf]
        %v2838 = vld [vmem:[%s2834 + $0xc] sm:$0xf]
        %v2839 = vld [vmem:[%s2834 + $0x10] sm:$0xf]
        %v2840 = vld [vmem:[%s2834 + $0x14] sm:$0xf]
        %v2847 = vunpack.c.l.b16 %v2835
        %v2848 = vunpack.c.l.b16 %v2836
        %v2849 = vunpack.c.l.b16 %v2837
        %v2850 = vunpack.c.l.b16 %v2838
        %v2851 = vunpack.c.l.b16 %v2839
        %v2852 = vunpack.c.l.b16 %v2840
        %v2853 = vpack.c.b16 %v2848, %v2847
        %v2854 = vpack.c.b16 %v2850, %v2849
        %v2855 = vpack.c.b16 %v2852, %v2851
        %v2859 = vsel %vm1246, %v2768, 0
        %v2861 = vsel %vm1246, %v2770, 0
        %v2863 = vsel %vm1246, %v2772, 0
        %v2865 = vsel %vm1246, %v2774, 0
        %v2867 = vsel %vm1246, %v2776, 0
        %v2869 = vsel %vm1246, %v2778, 0
        %v2871 = vsel %vm1246, %v2780, 0
        %v2873 = vsel %vm1246, %v2782, 0
        %v2875 = vsel %vm1246, %v2784, 0
        %v2877 = vsel %vm1246, %v2786, 0
        %v2879 = vsel %vm1246, %v2788, 0
        %v2881 = vsel %vm1246, %v2790, 0
        %v2883 = vsel %vm1246, %v2792, 0
        %v2885 = vsel %vm1246, %v2794, 0
        %v2887 = vsel %vm1246, %v2796, 0
        %v2889 = vsel %vm1246, %v2798, 0
        %2891 = vmatprep.subr.bf16.mxu0 0
        %2892 = vmatpush1.bf16.msra.mxu0 %v2853
        %2893 = vmatprep.subr.bf16.mxu0 0
        %2894 = vmatpush1.bf16.msra.mxu0 %v2854
        %2895 = vmatprep.subr.bf16.mxu0 0
        %2896 = vmatpush1.bf16.msra.mxu0 %v2855
        %2897 = vmatprep.subr.bf16.mxu0 0
        %2898 = vmatpush1.bf16.msra.mxu0 0
        %2899 = vmatprep.subr.bf16.mxu0 0
        %2900 = vmatpush1.bf16.msra.mxu0 0
        %2901 = vmatprep.subr.bf16.mxu0 0
        %2902 = vmatpush1.bf16.msra.mxu0 0
        %2903 = vmatprep.subr.bf16.mxu0 0
        %2904 = vmatpush1.bf16.msra.mxu0 0
        %2905 = vmatprep.subr.bf16.mxu0 0
        %2906 = vmatpush1.bf16.msra.mxu0 0
        %2907 = vmatprep.subr.bf16.mxu0 0
        %2908 = vmatpush1.bf16.msra.mxu0 0
        %2909 = vmatprep.subr.bf16.mxu0 0
        %2910 = vmatpush1.bf16.msra.mxu0 0
        %2911 = vmatprep.subr.bf16.mxu0 0
        %2912 = vmatpush1.bf16.msra.mxu0 0
        %2913 = vmatprep.subr.bf16.mxu0 0
        %2914 = vmatpush1.bf16.msra.mxu0 0
        %2915 = vmatprep.subr.bf16.mxu0 0
        %2916 = vmatpush1.bf16.msra.mxu0 0
        %2917 = vmatprep.subr.bf16.mxu0 0
        %2918 = vmatpush1.bf16.msra.mxu0 0
        %2919 = vmatprep.subr.bf16.mxu0 0
        %2920 = vmatpush1.bf16.msra.mxu0 0
        %2921 = vmatprep.subr.bf16.mxu0 0
        %2922 = vmatpush1.bf16.msra.mxu0 0
        %2923 = vmatprep.mubr.bf16.mxu0 0
        %2924 = vmatmul.mubr.bf16.gmra.mrb[0].mxu0 %v2859
        %v2925 = vpop.f32.mrb[0].mxu0
        %v2926 = vadd.f32 0.0, %v2925
        %v2927 = vpop.f32.mrb[0].mxu0
        %v2928 = vpop.f32.mrb[0].mxu0
        %v2929 = vadd.f32 0.0, %v2928
        %v2930 = vpop.f32.mrb[0].mxu0
        %2931 = vmatprep.mubr.bf16.mxu0 0
        %2932 = vmatmul.mubr.bf16.gmra.mrb[0].mxu0 %v2861
        %v2933 = vpop.f32.mrb[0].mxu0
        %v2934 = vadd.f32 0.0, %v2933
        %v2935 = vpop.f32.mrb[0].mxu0
        %v2936 = vpop.f32.mrb[0].mxu0
        %v2937 = vadd.f32 0.0, %v2936
        %v2938 = vpop.f32.mrb[0].mxu0
        %2939 = vmatprep.mubr.bf16.mxu0 0
        %2940 = vmatmul.mubr.bf16.gmra.mrb[0].mxu0 %v2863
        %v2941 = vpop.f32.mrb[0].mxu0
        %v2942 = vadd.f32 0.0, %v2941
        %v2943 = vpop.f32.mrb[0].mxu0
        %v2944 = vpop.f32.mrb[0].mxu0
        %v2945 = vadd.f32 0.0, %v2944
        %v2946 = vpop.f32.mrb[0].mxu0
        %2947 = vmatprep.mubr.bf16.mxu0 0
        %2948 = vmatmul.mubr.bf16.gmra.mrb[0].mxu0 %v2865
        %v2949 = vpop.f32.mrb[0].mxu0
        %v2950 = vadd.f32 0.0, %v2949
        %v2951 = vpop.f32.mrb[0].mxu0
        %v2952 = vpop.f32.mrb[0].mxu0
        %v2953 = vadd.f32 0.0, %v2952
        %v2954 = vpop.f32.mrb[0].mxu0
        %2955 = vmatprep.mubr.bf16.mxu0 0
        %2956 = vmatmul.mubr.bf16.gmra.mrb[0].mxu0 %v2867
        %v2957 = vpop.f32.mrb[0].mxu0
        %v2958 = vadd.f32 0.0, %v2957
        %v2959 = vpop.f32.mrb[0].mxu0
        %v2960 = vpop.f32.mrb[0].mxu0
        %v2961 = vadd.f32 0.0, %v2960
        %v2962 = vpop.f32.mrb[0].mxu0
        %2963 = vmatprep.mubr.bf16.mxu0 0
        %2964 = vmatmul.mubr.bf16.gmra.mrb[0].mxu0 %v2869
        %v2965 = vpop.f32.mrb[0].mxu0
        %v2966 = vadd.f32 0.0, %v2965
        %v2967 = vpop.f32.mrb[0].mxu0
        %v2968 = vpop.f32.mrb[0].mxu0
        %v2969 = vadd.f32 0.0, %v2968
        %v2970 = vpop.f32.mrb[0].mxu0
        %2971 = vmatprep.mubr.bf16.mxu0 0
        %2972 = vmatmul.mubr.bf16.gmra.mrb[0].mxu0 %v2871
        %v2973 = vpop.f32.mrb[0].mxu0
        %v2974 = vadd.f32 0.0, %v2973
        %v2975 = vpop.f32.mrb[0].mxu0
        %v2976 = vpop.f32.mrb[0].mxu0
        %v2977 = vadd.f32 0.0, %v2976
        %v2978 = vpop.f32.mrb[0].mxu0
        %2979 = vmatprep.mubr.bf16.mxu0 0
        %2980 = vmatmul.mubr.bf16.gmra.mrb[0].mxu0 %v2873
        %v2981 = vpop.f32.mrb[0].mxu0
        %v2982 = vadd.f32 0.0, %v2981
        %v2983 = vpop.f32.mrb[0].mxu0
        %v2984 = vpop.f32.mrb[0].mxu0
        %v2985 = vadd.f32 0.0, %v2984
        %v2986 = vpop.f32.mrb[0].mxu0
        %2987 = vmatprep.mubr.bf16.mxu0 0
        %2988 = vmatmul.mubr.bf16.gmra.mrb[0].mxu0 %v2875
        %v2989 = vpop.f32.mrb[0].mxu0
        %v2990 = vadd.f32 0.0, %v2989
        %v2991 = vpop.f32.mrb[0].mxu0
        %v2992 = vpop.f32.mrb[0].mxu0
        %v2993 = vadd.f32 0.0, %v2992
        %v2994 = vpop.f32.mrb[0].mxu0
        %2995 = vmatprep.mubr.bf16.mxu0 0
        %2996 = vmatmul.mubr.bf16.gmra.mrb[0].mxu0 %v2877
        %v2997 = vpop.f32.mrb[0].mxu0
        %v2998 = vadd.f32 0.0, %v2997
        %v2999 = vpop.f32.mrb[0].mxu0
        %v3000 = vpop.f32.mrb[0].mxu0
        %v3001 = vadd.f32 0.0, %v3000
        %v3002 = vpop.f32.mrb[0].mxu0
        %3003 = vmatprep.mubr.bf16.mxu0 0
        %3004 = vmatmul.mubr.bf16.gmra.mrb[0].mxu0 %v2879
        %v3005 = vpop.f32.mrb[0].mxu0
        %v3006 = vadd.f32 0.0, %v3005
        %v3007 = vpop.f32.mrb[0].mxu0
        %v3008 = vpop.f32.mrb[0].mxu0
        %v3009 = vadd.f32 0.0, %v3008
        %v3010 = vpop.f32.mrb[0].mxu0
        %3011 = vmatprep.mubr.bf16.mxu0 0
        %3012 = vmatmul.mubr.bf16.gmra.mrb[0].mxu0 %v2881
        %v3013 = vpop.f32.mrb[0].mxu0
        %v3014 = vadd.f32 0.0, %v3013
        %v3015 = vpop.f32.mrb[0].mxu0
        %v3016 = vpop.f32.mrb[0].mxu0
        %v3017 = vadd.f32 0.0, %v3016
        %v3018 = vpop.f32.mrb[0].mxu0
        %3019 = vmatprep.mubr.bf16.mxu0 0
        %3020 = vmatmul.mubr.bf16.gmra.mrb[0].mxu0 %v2883
        %v3021 = vpop.f32.mrb[0].mxu0
        %v3022 = vadd.f32 0.0, %v3021
        %v3023 = vpop.f32.mrb[0].mxu0
        %v3024 = vpop.f32.mrb[0].mxu0
        %v3025 = vadd.f32 0.0, %v3024
        %v3026 = vpop.f32.mrb[0].mxu0
        %3027 = vmatprep.mubr.bf16.mxu0 0
        %3028 = vmatmul.mubr.bf16.gmra.mrb[0].mxu0 %v2885
        %v3029 = vpop.f32.mrb[0].mxu0
        %v3030 = vadd.f32 0.0, %v3029
        %v3031 = vpop.f32.mrb[0].mxu0
        %v3032 = vpop.f32.mrb[0].mxu0
        %v3033 = vadd.f32 0.0, %v3032
        %v3034 = vpop.f32.mrb[0].mxu0
        %3035 = vmatprep.mubr.bf16.mxu0 0
        %3036 = vmatmul.mubr.bf16.gmra.mrb[0].mxu0 %v2887
        %v3037 = vpop.f32.mrb[0].mxu0
        %v3038 = vadd.f32 0.0, %v3037
        %v3039 = vpop.f32.mrb[0].mxu0
        %v3040 = vpop.f32.mrb[0].mxu0
        %v3041 = vadd.f32 0.0, %v3040
        %v3042 = vpop.f32.mrb[0].mxu0
        %3043 = vmatprep.mubr.bf16.mxu0 0
        %3044 = vmatmul.mubr.bf16.gmra.mrb[0].mxu0 %v2889
        %v3045 = vpop.f32.mrb[0].mxu0
        %v3046 = vadd.f32 0.0, %v3045
        %v3047 = vpop.f32.mrb[0].mxu0
        %v3048 = vpop.f32.mrb[0].mxu0
        %v3049 = vadd.f32 0.0, %v3048
        %v3050 = vpop.f32.mrb[0].mxu0
        %3051 = vdwg.mxu0
        %v3052 = vadd.f32 %v2799, %v2926
        %v3053 = vadd.f32 %v2800, %v2929
        %v3054 = vadd.f32 %v2801, %v2934
        %v3055 = vadd.f32 %v2802, %v2937
        %v3056 = vadd.f32 %v2803, %v2942
        %v3057 = vadd.f32 %v2804, %v2945
        %v3058 = vadd.f32 %v2805, %v2950
        %v3059 = vadd.f32 %v2806, %v2953
        %v3060 = vadd.f32 %v2807, %v2958
        %v3061 = vadd.f32 %v2808, %v2961
        %v3062 = vadd.f32 %v2809, %v2966
        %v3063 = vadd.f32 %v2810, %v2969
        %v3064 = vadd.f32 %v2811, %v2974
        %v3065 = vadd.f32 %v2812, %v2977
        %v3066 = vadd.f32 %v2813, %v2982
        %v3067 = vadd.f32 %v2814, %v2985
        %v3068 = vadd.f32 %v2815, %v2990
        %v3069 = vadd.f32 %v2816, %v2993
        %v3070 = vadd.f32 %v2817, %v2998
        %v3071 = vadd.f32 %v2818, %v3001
        %v3072 = vadd.f32 %v2819, %v3006
        %v3073 = vadd.f32 %v2820, %v3009
        %v3074 = vadd.f32 %v2821, %v3014
        %v3075 = vadd.f32 %v2822, %v3017
        %v3076 = vadd.f32 %v2823, %v3022
        %v3077 = vadd.f32 %v2824, %v3025
        %v3078 = vadd.f32 %v2825, %v3030
        %v3079 = vadd.f32 %v2826, %v3033
        %v3080 = vadd.f32 %v2827, %v3038
        %v3081 = vadd.f32 %v2828, %v3041
        %v3082 = vadd.f32 %v2829, %v3046
        %v3083 = vadd.f32 %v2830, %v3049
        %3084 = vst.msk [vmem:[#allocation3] sm:$0xff] %vm1153, %v3052
        %3085 = vst.msk [vmem:[#allocation3 + $0x8] sm:$0xff] %vm1153, %v3053
        %3086 = vst.msk [vmem:[#allocation3 + $0x10] sm:$0xff] %vm1153, %v3054
        %3087 = vst.msk [vmem:[#allocation3 + $0x18] sm:$0xff] %vm1153, %v3055
        %3088 = vst.msk [vmem:[#allocation3 + $0x20] sm:$0xff] %vm1153, %v3056
        %3089 = vst.msk [vmem:[#allocation3 + $0x28] sm:$0xff] %vm1153, %v3057
        %3090 = vst.msk [vmem:[#allocation3 + $0x30] sm:$0xff] %vm1153, %v3058
        %3091 = vst.msk [vmem:[#allocation3 + $0x38] sm:$0xff] %vm1153, %v3059
        %3092 = vst.msk [vmem:[#allocation3 + $0x40] sm:$0xff] %vm1153, %v3060
        %3093 = vst.msk [vmem:[#allocation3 + $0x48] sm:$0xff] %vm1153, %v3061
        %3094 = vst.msk [vmem:[#allocation3 + $0x50] sm:$0xff] %vm1153, %v3062
        %3095 = vst.msk [vmem:[#allocation3 + $0x58] sm:$0xff] %vm1153, %v3063
        %3096 = vst.msk [vmem:[#allocation3 + $0x60] sm:$0xff] %vm1153, %v3064
        %3097 = vst.msk [vmem:[#allocation3 + $0x68] sm:$0xff] %vm1153, %v3065
        %3098 = vst.msk [vmem:[#allocation3 + $0x70] sm:$0xff] %vm1153, %v3066
        %3099 = vst.msk [vmem:[#allocation3 + $0x78] sm:$0xff] %vm1153, %v3067
        %3100 = vst.msk [vmem:[#allocation3 + $0x80] sm:$0xff] %vm1153, %v3068
        %3101 = vst.msk [vmem:[#allocation3 + $0x88] sm:$0xff] %vm1153, %v3069
        %3102 = vst.msk [vmem:[#allocation3 + $0x90] sm:$0xff] %vm1153, %v3070
        %3103 = vst.msk [vmem:[#allocation3 + $0x98] sm:$0xff] %vm1153, %v3071
        %3104 = vst.msk [vmem:[#allocation3 + $0xa0] sm:$0xff] %vm1153, %v3072
        %3105 = vst.msk [vmem:[#allocation3 + $0xa8] sm:$0xff] %vm1153, %v3073
        %3106 = vst.msk [vmem:[#allocation3 + $0xb0] sm:$0xff] %vm1153, %v3074
        %3107 = vst.msk [vmem:[#allocation3 + $0xb8] sm:$0xff] %vm1153, %v3075
        %3108 = vst.msk [vmem:[#allocation3 + $0xc0] sm:$0xff] %vm1153, %v3076
        %3109 = vst.msk [vmem:[#allocation3 + $0xc8] sm:$0xff] %vm1153, %v3077
        %3110 = vst.msk [vmem:[#allocation3 + $0xd0] sm:$0xff] %vm1153, %v3078
        %3111 = vst.msk [vmem:[#allocation3 + $0xd8] sm:$0xff] %vm1153, %v3079
        %3112 = vst.msk [vmem:[#allocation3 + $0xe0] sm:$0xff] %vm1153, %v3080
        %3113 = vst.msk [vmem:[#allocation3 + $0xe8] sm:$0xff] %vm1153, %v3081
        %3114 = vst.msk [vmem:[#allocation3 + $0xf0] sm:$0xff] %vm1153, %v3082
        %3115 = vst.msk [vmem:[#allocation3 + $0xf8] sm:$0xff] %vm1153, %v3083
        %p3116 = scmp.eq.s32.totalorder %s24, 2
        // Predicated region
        $region37: #{cogvideox_causal_conv3d.1} parent=31 // pred_check
          %p3117 = pneg %p3116
        $region38: #{cogvideox_causal_conv3d.1} parent=31 // pred_check_branch
          %3119 = sbr.rel (%p3117) target = $region40
        $region39: #{cogvideox_causal_conv3d.1} parent=31 // pred_region
          %v3120 = vld [vmem:[#allocation3] sm:$0xff]
          %v3121 = vld [vmem:[#allocation3 + $0x8] sm:$0xff]
          %v3122 = vld [vmem:[#allocation3 + $0x10] sm:$0xff]
          %v3123 = vld [vmem:[#allocation3 + $0x18] sm:$0xff]
          %v3124 = vld [vmem:[#allocation3 + $0x20] sm:$0xff]
          %v3125 = vld [vmem:[#allocation3 + $0x28] sm:$0xff]
          %v3126 = vld [vmem:[#allocation3 + $0x30] sm:$0xff]
          %v3127 = vld [vmem:[#allocation3 + $0x38] sm:$0xff]
          %v3128 = vld [vmem:[#allocation3 + $0x40] sm:$0xff]
          %v3129 = vld [vmem:[#allocation3 + $0x48] sm:$0xff]
          %v3130 = vld [vmem:[#allocation3 + $0x50] sm:$0xff]
          %v3131 = vld [vmem:[#allocation3 + $0x58] sm:$0xff]
          %v3132 = vld [vmem:[#allocation3 + $0x60] sm:$0xff]
          %v3133 = vld [vmem:[#allocation3 + $0x68] sm:$0xff]
          %v3134 = vld [vmem:[#allocation3 + $0x70] sm:$0xff]
          %v3135 = vld [vmem:[#allocation3 + $0x78] sm:$0xff]
          %v3136 = vld [vmem:[#allocation3 + $0x80] sm:$0xff]
          %v3137 = vld [vmem:[#allocation3 + $0x88] sm:$0xff]
          %v3138 = vld [vmem:[#allocation3 + $0x90] sm:$0xff]
          %v3139 = vld [vmem:[#allocation3 + $0x98] sm:$0xff]
          %v3140 = vld [vmem:[#allocation3 + $0xa0] sm:$0xff]
          %v3141 = vld [vmem:[#allocation3 + $0xa8] sm:$0xff]
          %v3142 = vld [vmem:[#allocation3 + $0xb0] sm:$0xff]
          %v3143 = vld [vmem:[#allocation3 + $0xb8] sm:$0xff]
          %v3144 = vld [vmem:[#allocation3 + $0xc0] sm:$0xff]
          %v3145 = vld [vmem:[#allocation3 + $0xc8] sm:$0xff]
          %v3146 = vld [vmem:[#allocation3 + $0xd0] sm:$0xff]
          %v3147 = vld [vmem:[#allocation3 + $0xd8] sm:$0xff]
          %v3148 = vld [vmem:[#allocation3 + $0xe0] sm:$0xff]
          %v3149 = vld [vmem:[#allocation3 + $0xe8] sm:$0xff]
          %v3150 = vld [vmem:[#allocation3 + $0xf0] sm:$0xff]
          %v3151 = vld [vmem:[#allocation3 + $0xf8] sm:$0xff]
          %v3152 = vld [vmem:[%s2] sm:$0x1]
          %v3154 = vlaneseq
          %v3155 = vshrl.u32 %v3154, 7
          %v3156 = vsub.s32 0, %v3155
          %v3157 = vrot.slane %v3152, %v3156
          %v3159 = vadd.f32 %v3120, %v3157
          %v3160 = vadd.f32 %v3121, %v3157
          %v3161 = vadd.f32 %v3122, %v3157
          %v3162 = vadd.f32 %v3123, %v3157
          %v3163 = vadd.f32 %v3124, %v3157
          %v3164 = vadd.f32 %v3125, %v3157
          %v3165 = vadd.f32 %v3126, %v3157
          %v3166 = vadd.f32 %v3127, %v3157
          %v3167 = vadd.f32 %v3128, %v3157
          %v3168 = vadd.f32 %v3129, %v3157
          %v3169 = vadd.f32 %v3130, %v3157
          %v3170 = vadd.f32 %v3131, %v3157
          %v3171 = vadd.f32 %v3132, %v3157
          %v3172 = vadd.f32 %v3133, %v3157
          %v3173 = vadd.f32 %v3134, %v3157
          %v3174 = vadd.f32 %v3135, %v3157
          %v3175 = vadd.f32 %v3136, %v3157
          %v3176 = vadd.f32 %v3137, %v3157
          %v3177 = vadd.f32 %v3138, %v3157
          %v3178 = vadd.f32 %v3139, %v3157
          %v3179 = vadd.f32 %v3140, %v3157
          %v3180 = vadd.f32 %v3141, %v3157
          %v3181 = vadd.f32 %v3142, %v3157
          %v3182 = vadd.f32 %v3143, %v3157
          %v3183 = vadd.f32 %v3144, %v3157
          %v3184 = vadd.f32 %v3145, %v3157
          %v3185 = vadd.f32 %v3146, %v3157
          %v3186 = vadd.f32 %v3147, %v3157
          %v3187 = vadd.f32 %v3148, %v3157
          %v3188 = vadd.f32 %v3149, %v3157
          %v3189 = vadd.f32 %v3150, %v3157
          %v3190 = vadd.f32 %v3151, %v3157
          %3191 = vst.msk [vmem:[%s214] sm:$0xff] %vm1153, %v3159
          %3192 = vst.msk [vmem:[%s214 + $0x8] sm:$0xff] %vm1153, %v3160
          %3193 = vst.msk [vmem:[%s214 + $0x10] sm:$0xff] %vm1153, %v3161
          %3194 = vst.msk [vmem:[%s214 + $0x18] sm:$0xff] %vm1153, %v3162
          %3195 = vst.msk [vmem:[%s214 + $0x20] sm:$0xff] %vm1153, %v3163
          %3196 = vst.msk [vmem:[%s214 + $0x28] sm:$0xff] %vm1153, %v3164
          %3197 = vst.msk [vmem:[%s214 + $0x30] sm:$0xff] %vm1153, %v3165
          %3198 = vst.msk [vmem:[%s214 + $0x38] sm:$0xff] %vm1153, %v3166
          %3199 = vst.msk [vmem:[%s214 + $0x40] sm:$0xff] %vm1153, %v3167
          %3200 = vst.msk [vmem:[%s214 + $0x48] sm:$0xff] %vm1153, %v3168
          %3201 = vst.msk [vmem:[%s214 + $0x50] sm:$0xff] %vm1153, %v3169
          %3202 = vst.msk [vmem:[%s214 + $0x58] sm:$0xff] %vm1153, %v3170
          %3203 = vst.msk [vmem:[%s214 + $0x60] sm:$0xff] %vm1153, %v3171
          %3204 = vst.msk [vmem:[%s214 + $0x68] sm:$0xff] %vm1153, %v3172
          %3205 = vst.msk [vmem:[%s214 + $0x70] sm:$0xff] %vm1153, %v3173
          %3206 = vst.msk [vmem:[%s214 + $0x78] sm:$0xff] %vm1153, %v3174
          %3207 = vst.msk [vmem:[%s214 + $0x80] sm:$0xff] %vm1153, %v3175
          %3208 = vst.msk [vmem:[%s214 + $0x88] sm:$0xff] %vm1153, %v3176
          %3209 = vst.msk [vmem:[%s214 + $0x90] sm:$0xff] %vm1153, %v3177
          %3210 = vst.msk [vmem:[%s214 + $0x98] sm:$0xff] %vm1153, %v3178
          %3211 = vst.msk [vmem:[%s214 + $0xa0] sm:$0xff] %vm1153, %v3179
          %3212 = vst.msk [vmem:[%s214 + $0xa8] sm:$0xff] %vm1153, %v3180
          %3213 = vst.msk [vmem:[%s214 + $0xb0] sm:$0xff] %vm1153, %v3181
          %3214 = vst.msk [vmem:[%s214 + $0xb8] sm:$0xff] %vm1153, %v3182
          %3215 = vst.msk [vmem:[%s214 + $0xc0] sm:$0xff] %vm1153, %v3183
          %3216 = vst.msk [vmem:[%s214 + $0xc8] sm:$0xff] %vm1153, %v3184
          %3217 = vst.msk [vmem:[%s214 + $0xd0] sm:$0xff] %vm1153, %v3185
          %3218 = vst.msk [vmem:[%s214 + $0xd8] sm:$0xff] %vm1153, %v3186
          %3219 = vst.msk [vmem:[%s214 + $0xe0] sm:$0xff] %vm1153, %v3187
          %3220 = vst.msk [vmem:[%s214 + $0xe8] sm:$0xff] %vm1153, %v3188
          %3221 = vst.msk [vmem:[%s214 + $0xf0] sm:$0xff] %vm1153, %v3189
          %3222 = vst.msk [vmem:[%s214 + $0xf8] sm:$0xff] %vm1153, %v3190
        $region40: #{cogvideox_causal_conv3d.1} parent=31 // pred_fallthru
          _
        %s3223 = sand.u32 %s124, 1
        %s3224 = scalar_lea.sflag [#allocation5], %s3223
        %s3225 = sand.u32 %s124, 1
        %s3226 = smul.addr %s3225, 256
        %s3227 = scalar_lea.vmem [#allocation4], %s3226
        // Predicated region
        $region41: #{cogvideox_causal_conv3d.1} parent=31 // pred_check
          %p3228 = pneg %p134
        $region42: #{cogvideox_causal_conv3d.1} parent=31 // pred_check_branch
          %3230 = sbr.rel (%p3228) target = $region44
        $region43: #{cogvideox_causal_conv3d.1} parent=31 // pred_region
          %s3232 = ssub.s32 4096, 4096
          %3233 = vsyncadd %s3224, %s3232
          %s3234 = smul.addr %s23, 32
          %s3235 = smul.addr %s22, 160
          %s3236 = sadd.s32 %s3234, %s3235
          %s3237 = smul.addr %s3236, 128
          %s3238 = scalar_lea.hbm %s3, %s3237
          %s3239 = sshll.u32 %s3227, 4
          %s3240 = int_to_ptr.vmem [resolvable:$true] %s3239
          %3245 = dma.vmem_to_hbm [thread:$0]  %s3240, 4096, %s3238, %s3224, 128, 128, 8
        $region44: #{cogvideox_causal_conv3d.1} parent=31 // pred_fallthru
          _
      $region32: #{cogvideox_causal_conv3d.1} parent=5 // pred_fallthru
        _
      %p3246 = scmp.le.s32.totalorder 2, %s12
      // Predicated region
      $region45: #{cogvideox_causal_conv3d.1} parent=5 // pred_check
        %p3247 = pneg %p3246
      $region46: #{cogvideox_causal_conv3d.1} parent=5 // pred_check_branch
        %3249 = sbr.rel (%p3247) target = $region48
      $region47: #{cogvideox_causal_conv3d.1} parent=5 // pred_region
        %s3250 = ssub.s32 %s12, 2
        // Predicated region
        $region49: #{cogvideox_causal_conv3d.1} parent=47 // pred_check
          %p3251 = pneg %p140
        $region50: #{cogvideox_causal_conv3d.1} parent=47 // pred_check_branch
          %3253 = sbr.rel (%p3251) target = $region52
        $region51: #{cogvideox_causal_conv3d.1} parent=47 // pred_region
          %s3254 = sand.u32 %s125, 1
          %s3255 = scalar_lea.sflag [#allocation5], %s3254
          %s3256 = sand.u32 %s125, 1
          %s3257 = smul.addr %s3256, 256
          %s3258 = scalar_lea.vmem [#allocation4], %s3257
          %3259 = dma.done %s3255, 4096
        $region52: #{cogvideox_causal_conv3d.1} parent=47 // pred_fallthru
          _
      $region48: #{cogvideox_causal_conv3d.1} parent=5 // pred_fallthru
        _
    $region6: #{cogvideox_causal_conv3d.1} parent=1 // loop_footer
      %s16 = sadd.s32 1, %s12
    $region7: #{cogvideox_causal_conv3d.1} parent=1 // loop_footer_branch
      %11 = sbr.rel target = $region3
    $region8: #{cogvideox_causal_conv3d.1} parent=1 // loop_exit
      _
    %3260 = vsyncpa [#allocation5], 1
    %s3261 = scalar_lea.sflag [#allocation5], 1
    %3262 = vsyncpa %s3261, 1

</llo_original>
